<compile_context>
chip_gen: v7x
topology: tpu7x:2x2x1
jax: 0.10.0
libtpu: 0.0.40
codegen_flags: <defaults>
</compile_context>

<pallas_src>
import numpy as np

import jax
import jax.numpy as jnp
from jax.experimental import pallas as pl
from jax.experimental.pallas import tpu as pltpu


# ----------------------------------------------------------------------------
# Host-side constant construction (done once, outside the kernel)
# ----------------------------------------------------------------------------

def _build_tap_gather(Hin, Win, K, stride, pad, out_pad):
    """Per-tap 0/1 gather matrices St[kk] of shape (P_in, A_out).

    ConvTranspose2d:  y[co, oy, ox] += x[ci, iy, ix] * w[ci, co, ky, kx]
    whenever oy = iy*stride - pad + ky and ox = ix*stride - pad + kx.
    """
    Hout = (Hin - 1) * stride - 2 * pad + K + out_pad
    Wout = (Win - 1) * stride - 2 * pad + K + out_pad
    P, A = Hin * Win, Hout * Wout
    St = np.zeros((K * K, P, A), np.float32)
    for ky in range(K):
        for kx in range(K):
            kk = ky * K + kx
            for oy in range(Hout):
                ty = oy + pad - ky
                if ty < 0 or ty % stride or ty // stride >= Hin:
                    continue
                iy = ty // stride
                for ox in range(Wout):
                    tx = ox + pad - kx
                    if tx < 0 or tx % stride or tx // stride >= Win:
                        continue
                    ix = tx // stride
                    St[kk, iy * Win + ix, oy * Wout + ox] = 1.0
    return St, Hout, Wout


def _build_dueling_matrix(Cout_full, Cf, A):
    """Linear map (Cout_full*A,) -> (Cf*A,) implementing the dueling head:
       out[cf, a] = y[0, a] + y[1+cf, a] - mean_c y[1+c, a]
    in channel-major flattened layout (row index = c*A + a)."""
    Dc = np.zeros((Cout_full, Cf), np.float32)
    Dc[0, :] = 1.0
    for cf in range(Cf):
        Dc[1 + cf, cf] += 1.0
    Dc[1:, :] -= 1.0 / Cf
    return np.kron(Dc, np.eye(A, dtype=np.float32))


def prepare_kernel_params(params, cfg):
    """Fold all constant linear structure into a few dense bf16 matrices."""
    C0, H0, W0 = cfg["reshape"]
    assert cfg["fc_sizes"][-1] == C0 * H0 * W0

    mlp = []
    for li in range(len(cfg["fc_sizes"])):
        w = params[f"mlp{li}_w"].astype(jnp.bfloat16)              # (Fin, Fout)
        b = params[f"mlp{li}_b"].reshape(1, -1).astype(jnp.float32)
        mlp.append((w, b))

    channels = list(cfg["channels"])
    if cfg["dueling"]:
        channels[-1] += 1

    conv = []
    Hin, Win = H0, W0
    Cin = C0
    Cout = channels[-1]
    for li in range(len(channels)):
        K = cfg["kernel_sizes"][li]
        St, Hout, Wout = _build_tap_gather(
            Hin, Win, K, cfg["strides"][li],
            cfg["paddings"][li], cfg["output_paddings"][li])
        A = Hout * Wout
        w_pt = np.asarray(params[f"convt{li}_w"], np.float32)      # (Cin, Cout, K, K)
        Cout = w_pt.shape[1]
        # wk[kk, co, ci] = w_pt[ci, co, ky, kx], kk = ky*K + kx
        wk = np.transpose(w_pt, (2, 3, 1, 0)).reshape(K * K, Cout, Cin)
        # Big[ci*P + p, co*A + a] = sum_kk wk[kk,co,ci] * St[kk,p,a]
        big = np.einsum("koc,kpa->cpoa", wk, St).reshape(Cin * Hin * Win, Cout * A)
        brow = np.repeat(np.asarray(params[f"convt{li}_b"], np.float32), A)

        if li == len(channels) - 1 and cfg["dueling"]:
            Cf = Cout - 1
            D = _build_dueling_matrix(Cout, Cf, A)
            big = big @ D                 # exact f32, single bf16 cast below
            brow = brow @ D
            Cout = Cf

        conv.append((jnp.asarray(big, dtype=jnp.bfloat16),
                     jnp.asarray(brow.reshape(1, -1), dtype=jnp.float32)))
        Hin, Win = Hout, Wout
        Cin = Cout

    return dict(mlp=mlp, conv=conv, out_hw=(Hin, Win), c_final=Cout)


# ----------------------------------------------------------------------------
# The fused Pallas kernel: one grid step == TM samples of the T*B batch
# ----------------------------------------------------------------------------

def _make_kernel(n_mlp, n_conv):
    def kernel(*refs):
        x_ref = refs[0]                                   # (TM, F) f32
        mlp_refs = refs[1:1 + 2 * n_mlp]                  # (w, b) per MLP layer
        conv_refs = refs[1 + 2 * n_mlp:1 + 2 * n_mlp + 2 * n_conv]
        o_ref = refs[1 + 2 * n_mlp + 2 * n_conv]          # (TM, Cf*A) f32

        h = x_ref[...]                                    # f32
        # MLP: bf16 MXU operands, f32 accumulate / bias / ReLU.
        for li in range(n_mlp):
            w = mlp_refs[2 * li][...]
            b = mlp_refs[2 * li + 1][...]
            h = jnp.dot(h.astype(jnp.bfloat16), w,
                        preferred_element_type=jnp.float32)
            h = jnp.maximum(h + b, 0.0)
        # Folded ConvTranspose2d layers (reshape/gather/channel-mix/dueling
        # already baked into the bf16 matrices host-side).
        for li in range(n_conv):
            big = conv_refs[2 * li][...]
            b = conv_refs[2 * li + 1][...]
            h = jnp.dot(h.astype(jnp.bfloat16), big,
                        preferred_element_type=jnp.float32)
            h = h + b
            if li < n_conv - 1:
                h = jnp.maximum(h, 0.0)                   # ReLU between conv layers
        o_ref[...] = h.astype(o_ref.dtype)                # lane-dense store

    return kernel


# ----------------------------------------------------------------------------
# Public forward: ONE pallas_call, lane-dense output, free reshape in wrapper
# ----------------------------------------------------------------------------

def _round_up(n, m):
    return ((n + m - 1) // m) * m


def pixel_control_forward(x, kparams, cfg, tm=256):
    """x: (T, B, input_size) -> (T, B, channels[-1], H, W).

    `tm` = samples per grid step; sweep per generation (128-multiples on v5e,
    256 on v6e/v7x; keep grid >= 2 on v7x when M is large enough).
    """
    T, B, F = x.shape
    M = T * B
    Hf, Wf = kparams["out_hw"]
    Cf = kparams["c_final"]
    CA = Cf * Hf * Wf
    n_mlp = len(kparams["mlp"])
    n_conv = len(kparams["conv"])

    TM = min(tm, _round_up(M, 8))          # sublane-aligned sample tile
    Mpad = _round_up(M, TM)
    xf = x.reshape(M, F)
    if Mpad != M:
        xf = jnp.pad(xf, ((0, Mpad - M), (0, 0)))

    inputs = [xf]
    in_specs = [pl.BlockSpec((TM, F), lambda n: (n, 0))]
    for w, b in kparams["mlp"]:
        inputs += [w, b]
        in_specs += [pl.BlockSpec(w.shape, lambda n: (0, 0)),
                     pl.BlockSpec(b.shape, lambda n: (0, 0))]
    for big, brow in kparams["conv"]:
        inputs += [big, brow]
        in_specs += [pl.BlockSpec(big.shape, lambda n: (0, 0)),
                     pl.BlockSpec(brow.shape, lambda n: (0, 0))]

    kernel = _make_kernel(n_mlp=n_mlp, n_conv=n_conv)
    out = pl.pallas_call(
        kernel,
        out_shape=jax.ShapeDtypeStruct((Mpad, CA), jnp.float32),
        grid=(Mpad // TM,),
        in_specs=in_specs,
        out_specs=pl.BlockSpec((TM, CA), lambda n: (n, 0)),
        compiler_params=pltpu.CompilerParams(
            dimension_semantics=("parallel",)),
    )(*inputs)
    # (M, C*H*W) -> (T, B, C, H, W): contiguous view, no transpose needed.
    return out[:M].reshape(T, B, Cf, Hf, Wf)


# ----------------------------------------------------------------------------
# Deterministic parameter init + pure-JAX f32 reference (PyTorch semantics)
# ----------------------------------------------------------------------------

def init_params(key, cfg):
    params = {}
    sizes = [cfg["input_size"]] + list(cfg["fc_sizes"])
    channels = list(cfg["channels"])
    if cfg["dueling"]:
        channels[-1] = channels[-1] + 1
    in_ch = [cfg["reshape"][0]] + channels[:-1]
    n_keys = 2 * len(cfg["fc_sizes"]) + 2 * len(channels)
    keys = jax.random.split(key, n_keys)
    ki = 0
    for li, (n_in, n_out) in enumerate(zip(sizes[:-1], sizes[1:])):
        params[f"mlp{li}_w"] = 0.1 * jax.random.normal(keys[ki], (n_in, n_out), jnp.float32); ki += 1
        params[f"mlp{li}_b"] = 0.1 * jax.random.normal(keys[ki], (n_out,), jnp.float32); ki += 1
    for li, (ic, oc, K) in enumerate(zip(in_ch, channels, cfg["kernel_sizes"])):
        # PyTorch ConvTranspose2d weight layout: (C_in, C_out, K, K)
        params[f"convt{li}_w"] = 0.1 * jax.random.normal(keys[ki], (ic, oc, K, K), jnp.float32); ki += 1
        params[f"convt{li}_b"] = 0.1 * jax.random.normal(keys[ki], (oc,), jnp.float32); ki += 1
    return params


def _ref_conv_transpose_nchw(x, w, b, K, s, p, op):
    N, Cin, Hin, Win = x.shape
    Cout = w.shape[1]
    Hout = (Hin - 1) * s - 2 * p + K + op
    Wout = (Win - 1) * s - 2 * p + K + op
    Hfull = (Hin - 1) * s + K + op
    Wfull = (Win - 1) * s + K + op
    y = jnp.zeros((N, Cout, Hfull, Wfull), x.dtype)
    for ky in range(K):
        for kx in range(K):
            contrib = jnp.einsum("nihw,io->nohw", x, w[:, :, ky, kx])
            y = y.at[:, :, ky:ky + (Hin - 1) * s + 1:s,
                     kx:kx + (Win - 1) * s + 1:s].add(contrib)
    y = y[:, :, p:p + Hout, p:p + Wout]
    return y + b[None, :, None, None]


def ref_forward(x, params, cfg):
    T, B = x.shape[0], x.shape[1]
    h = x.reshape(T * B, -1)
    for li in range(len(cfg["fc_sizes"])):
        h = jnp.maximum(h @ params[f"mlp{li}_w"] + params[f"mlp{li}_b"], 0.0)
    y = h.reshape(T * B, *cfg["reshape"])
    channels = list(cfg["channels"])
    if cfg["dueling"]:
        channels[-1] += 1
    for li in range(len(channels)):
        y = _ref_conv_transpose_nchw(
            y, params[f"convt{li}_w"], params[f"convt{li}_b"],
            cfg["kernel_sizes"][li], cfg["strides"][li],
            cfg["paddings"][li], cfg["output_paddings"][li])
        if li < len(channels) - 1:
            y = jnp.maximum(y, 0.0)
    if cfg["dueling"]:
        value = y[:, :1]
        adv = y[:, 1:]
        y = value + (adv - adv.mean(axis=1, keepdims=True))
    return y.reshape(T, B, *y.shape[1:])


# ----------------------------------------------------------------------------

if __name__ == "__main__":
    cfg = dict(
        input_size=32,           # input_shape = (32,)  (flat features)
        fc_sizes=[64],           # MlpModel hidden sizes; 64 == prod(reshape)
        reshape=(4, 4, 4),       # (C, H, W) fed to the transposed convs
        channels=[8, 4],         # dueling adds +1 to the last -> [8, 5]
        kernel_sizes=[3, 3],
        strides=[2, 2],
        paddings=[0, 0],
        output_paddings=[0, 0],
        dueling=True,
    )
    key = jax.random.PRNGKey(0)
    k_x, k_p = jax.random.split(key)
    T, B = 2, 3
    x = jax.random.normal(k_x, (T, B, cfg["input_size"]), jnp.float32)
    params = init_params(k_p, cfg)
    kparams = prepare_kernel_params(params, cfg)

    out = pixel_control_forward(x, kparams, cfg)
    out = jax.block_until_ready(out)

    ref = ref_forward(x, params, cfg)
    assert out.shape == ref.shape == (T, B, 4, 19, 19), (out.shape, ref.shape)
    max_err = float(jnp.max(jnp.abs(out - ref)))
    assert max_err < 2e-2, f"max abs error too large: {max_err}"

    print("KERNEL_OK")
</pallas_src>

<mosaic_0001>
module attributes {stable_mosaic.version = 11 : i64} {
  func.func @kernel(%arg0: i32, %arg1: memref<8x32xf32, #tpu.memory_space<vmem>>, %arg2: memref<32x64xbf16, #tpu.memory_space<vmem>>, %arg3: memref<1x64xf32, #tpu.memory_space<vmem>>, %arg4: memref<64x648xbf16, #tpu.memory_space<vmem>>, %arg5: memref<1x648xf32, #tpu.memory_space<vmem>>, %arg6: memref<648x1444xbf16, #tpu.memory_space<vmem>>, %arg7: memref<1x1444xf32, #tpu.memory_space<vmem>>, %arg8: memref<8x1444xf32, #tpu.memory_space<vmem>>) attributes {dimension_semantics = [#tpu.dimension_semantics<parallel>], iteration_bounds = array<i64: 1>, scalar_prefetch = 0 : i64, scratch_operands = 0 : i64, tpu.core_type = #tpu.core_type<tc>, window_params = [{transform_indices = @transform_0, window_bounds = array<i64: 8, 32>}, {pipeline_mode = #tpu.pipeline_mode<synchronous>, transform_indices = @transform_1, window_bounds = array<i64: 32, 64>}, {pipeline_mode = #tpu.pipeline_mode<synchronous>, transform_indices = @transform_2, window_bounds = array<i64: 1, 64>}, {pipeline_mode = #tpu.pipeline_mode<synchronous>, transform_indices = @transform_3, window_bounds = array<i64: 64, 648>}, {pipeline_mode = #tpu.pipeline_mode<synchronous>, transform_indices = @transform_4, window_bounds = array<i64: 1, 648>}, {pipeline_mode = #tpu.pipeline_mode<synchronous>, transform_indices = @transform_5, window_bounds = array<i64: 648, 1444>}, {pipeline_mode = #tpu.pipeline_mode<synchronous>, transform_indices = @transform_6, window_bounds = array<i64: 1, 1444>}, {transform_indices = @transform_7, window_bounds = array<i64: 8, 1444>}]} {
    %c0 = arith.constant 0 : index
    %c0_0 = arith.constant 0 : index
    %0 = vector.load %arg1[%c0, %c0_0] : memref<8x32xf32, #tpu.memory_space<vmem>>, vector<8x32xf32>
    %c0_1 = arith.constant 0 : index
    %c0_2 = arith.constant 0 : index
    %1 = vector.load %arg2[%c0_1, %c0_2] : memref<32x64xbf16, #tpu.memory_space<vmem>>, vector<32x64xbf16>
    %c0_3 = arith.constant 0 : index
    %c0_4 = arith.constant 0 : index
    %2 = vector.load %arg3[%c0_3, %c0_4] : memref<1x64xf32, #tpu.memory_space<vmem>>, vector<1x64xf32>
    %3 = arith.truncf %0 : vector<8x32xf32> to vector<8x32xbf16>
    %cst = arith.constant dense<0.000000e+00> : vector<8x64xf32>
    %4 = tpu.matmul %3, %1, %cst {dimension_numbers = #tpu.dot_dimension_numbers<[1], [0], [0], [1], [0, 0, 1, 1], [], []>} : vector<8x32xbf16>, vector<32x64xbf16>, vector<8x64xf32> -> vector<8x64xf32>
    %5 = vector.broadcast %2 : vector<1x64xf32> to vector<8x64xf32>
    %6 = arith.addf %4, %5 : vector<8x64xf32>
    %cst_5 = arith.constant 0.000000e+00 : f32
    %7 = vector.broadcast %cst_5 : f32 to vector<8x64xf32>
    %8 = arith.maximumf %6, %7 : vector<8x64xf32>
    %c0_6 = arith.constant 0 : index
    %c0_7 = arith.constant 0 : index
    %9 = vector.load %arg4[%c0_6, %c0_7] : memref<64x648xbf16, #tpu.memory_space<vmem>>, vector<64x648xbf16>
    %c0_8 = arith.constant 0 : index
    %c0_9 = arith.constant 0 : index
    %10 = vector.load %arg5[%c0_8, %c0_9] : memref<1x648xf32, #tpu.memory_space<vmem>>, vector<1x648xf32>
    %11 = arith.truncf %8 : vector<8x64xf32> to vector<8x64xbf16>
    %cst_10 = arith.constant dense<0.000000e+00> : vector<8x648xf32>
    %12 = tpu.matmul %11, %9, %cst_10 {dimension_numbers = #tpu.dot_dimension_numbers<[1], [0], [0], [1], [0, 0, 1, 1], [], []>} : vector<8x64xbf16>, vector<64x648xbf16>, vector<8x648xf32> -> vector<8x648xf32>
    %13 = vector.broadcast %10 : vector<1x648xf32> to vector<8x648xf32>
    %14 = arith.addf %12, %13 : vector<8x648xf32>
    %cst_11 = arith.constant 0.000000e+00 : f32
    %15 = vector.broadcast %cst_11 : f32 to vector<8x648xf32>
    %16 = arith.maximumf %14, %15 : vector<8x648xf32>
    %c0_12 = arith.constant 0 : index
    %c0_13 = arith.constant 0 : index
    %17 = vector.load %arg6[%c0_12, %c0_13] : memref<648x1444xbf16, #tpu.memory_space<vmem>>, vector<648x1444xbf16>
    %c0_14 = arith.constant 0 : index
    %c0_15 = arith.constant 0 : index
    %18 = vector.load %arg7[%c0_14, %c0_15] : memref<1x1444xf32, #tpu.memory_space<vmem>>, vector<1x1444xf32>
    %19 = arith.truncf %16 : vector<8x648xf32> to vector<8x648xbf16>
    %cst_16 = arith.constant dense<0.000000e+00> : vector<8x1444xf32>
    %20 = tpu.matmul %19, %17, %cst_16 {dimension_numbers = #tpu.dot_dimension_numbers<[1], [0], [0], [1], [0, 0, 1, 1], [], []>} : vector<8x648xbf16>, vector<648x1444xbf16>, vector<8x1444xf32> -> vector<8x1444xf32>
    %21 = vector.broadcast %18 : vector<1x1444xf32> to vector<8x1444xf32>
    %22 = arith.addf %20, %21 : vector<8x1444xf32>
    %c0_17 = arith.constant 0 : index
    %c0_18 = arith.constant 0 : index
    %23 = vector.load %arg8[%c0_17, %c0_18] : memref<8x1444xf32, #tpu.memory_space<vmem>>, vector<8x1444xf32>
    tpu.vector_store %arg8[%c0_17, %c0_18], %22 {strides = array<i32>} : memref<8x1444xf32, #tpu.memory_space<vmem>>, vector<8x1444xf32>,
    return
  }
  func.func @transform_0(%arg0: i32) -> (i32, i32) {
    %c0_i32 = arith.constant 0 : i32
    %c0_i32_0 = arith.constant 0 : i32
    return %arg0, %c0_i32 : i32, i32
  }
  func.func @transform_1(%arg0: i32) -> (i32, i32) {
    %c0_i32 = arith.constant 0 : i32
    %c0_i32_0 = arith.constant 0 : i32
    %c0_i32_1 = arith.constant 0 : i32
    return %c0_i32, %c0_i32_0 : i32, i32
  }
  func.func @transform_2(%arg0: i32) -> (i32, i32) {
    %c0_i32 = arith.constant 0 : i32
    %c0_i32_0 = arith.constant 0 : i32
    %c0_i32_1 = arith.constant 0 : i32
    return %c0_i32, %c0_i32_0 : i32, i32
  }
  func.func @transform_3(%arg0: i32) -> (i32, i32) {
    %c0_i32 = arith.constant 0 : i32
    %c0_i32_0 = arith.constant 0 : i32
    %c0_i32_1 = arith.constant 0 : i32
    return %c0_i32, %c0_i32_0 : i32, i32
  }
  func.func @transform_4(%arg0: i32) -> (i32, i32) {
    %c0_i32 = arith.constant 0 : i32
    %c0_i32_0 = arith.constant 0 : i32
    %c0_i32_1 = arith.constant 0 : i32
    return %c0_i32, %c0_i32_0 : i32, i32
  }
  func.func @transform_5(%arg0: i32) -> (i32, i32) {
    %c0_i32 = arith.constant 0 : i32
    %c0_i32_0 = arith.constant 0 : i32
    %c0_i32_1 = arith.constant 0 : i32
    return %c0_i32, %c0_i32_0 : i32, i32
  }
  func.func @transform_6(%arg0: i32) -> (i32, i32) {
    %c0_i32 = arith.constant 0 : i32
    %c0_i32_0 = arith.constant 0 : i32
    %c0_i32_1 = arith.constant 0 : i32
    return %c0_i32, %c0_i32_0 : i32, i32
  }
  func.func @transform_7(%arg0: i32) -> (i32, i32) {
    %c0_i32 = arith.constant 0 : i32
    %c0_i32_0 = arith.constant 0 : i32
    return %arg0, %c0_i32 : i32, i32
  }
}

</mosaic_0001>

<llo_original>
// kernel: tpu_custom_call.1
$region0: #{tpu_custom_call.1}
  #allocation0 [shape = 'u32[]', space=smem, size = 0x4, offset = 0x4, fixed_abs, tag = 'smem constant byte address 0x4 - core index']
  #allocation1 [shape = 'u32[144,128]{1,0:T(1,128)}', space=vmem, size = 0x12000, scoped, tag = 'internal scratch']
  %s0 = inlined_call_operand.hbm [shape: f32[8,32], index: 0, kind: input, shape index: {}]
  %s1 = inlined_call_operand.hbm [shape: bf16[32,64], index: 1, kind: input, shape index: {}]
  %s2 = inlined_call_operand.hbm [shape: f32[1,64], index: 2, kind: input, shape index: {}]
  %s3 = inlined_call_operand.hbm [shape: bf16[64,648], index: 3, kind: input, shape index: {}]
  %s4 = inlined_call_operand.hbm [shape: f32[1,648], index: 4, kind: input, shape index: {}]
  %s5 = inlined_call_operand.hbm [shape: bf16[648,1444], index: 5, kind: input, shape index: {}]
  %s6 = inlined_call_operand.hbm [shape: f32[1,1444], index: 6, kind: input, shape index: {}]
  %s7 = inlined_call_operand.hbm [shape: f32[8,1444], index: 7, kind: output, shape index: {}]
  %s8 = sld [smem:[#allocation0]]
  $region66: #{tpu_custom_call.1} parent=0
    _
  %s10 = ssub.s32 1, %s8
  %s11 = scalar_select 0, %s10, %s8
  $region1: #{tpu_custom_call.1} parent=0
    #allocation2 [shape = 'u8[4096]{0}', space=vmem, size = 0x1000, scoped, tag = 'input window, operand 0, single buffered']
    #allocation3 [shape = 's32[1]{0}', space=sflag, size = 0x4, scoped, tag = 'scoped memory for tpu_custom_call.1']
    #allocation4 [shape = 's32[1]{0}', space=sflag, size = 0x4, scoped, tag = 'scoped memory for tpu_custom_call.1']
    #allocation5 [shape = 'u8[8192]{0}', space=vmem, size = 0x2000, scoped, tag = 'input window, operand 1, single buffered']
    #allocation6 [shape = 's32[1]{0}', space=sflag, size = 0x4, scoped, tag = 'scoped memory for tpu_custom_call.1']
    #allocation7 [shape = 'u8[512]{0}', space=vmem, size = 0x400, scoped, tag = 'input window, operand 2, single buffered']
    #allocation8 [shape = 'u8[98304]{0}', space=vmem, size = 0x18000, scoped, tag = 'input window, operand 3, single buffered']
    #allocation9 [shape = 's32[1]{0}', space=sflag, size = 0x4, scoped, tag = 'scoped memory for tpu_custom_call.1']
    #allocation10 [shape = 'u8[3072]{0}', space=vmem, size = 0xc00, scoped, tag = 'input window, operand 4, single buffered']
    #allocation11 [shape = 'u8[1990656]{0}', space=vmem, size = 0x1e6000, scoped, tag = 'input window, operand 5, single buffered']
    #allocation12 [shape = 's32[1]{0}', space=sflag, size = 0x4, scoped, tag = 'scoped memory for tpu_custom_call.1']
    #allocation13 [shape = 'u8[6144]{0}', space=vmem, size = 0x1800, scoped, tag = 'input window, operand 6, single buffered']
    #allocation14 [shape = 'u8[49152]{0}', space=vmem, size = 0xc000, scoped, tag = 'output window, operand 0, single buffered']
    %12 = vsyncpa [#allocation3], 0
    %13 = vsyncpa [#allocation6], 0
    %14 = vsyncpa [#allocation9], 0
    %15 = vsyncpa [#allocation12], 0
    %16 = vsyncpa [#allocation4], 0
    // Predicated region
    $region2: #{tpu_custom_call.1} parent=1 // pred_check
      _
    $region3: #{tpu_custom_call.1} parent=1 // pred_check_branch
      %18 = sbr.rel (0) target = $region5
    $region4: #{tpu_custom_call.1} parent=1 // pred_region
      %s20 = ssub.s32 128, 128
      %21 = vsyncadd [#allocation3], %s20
      %s23 = sshll.u32 [#allocation2], 4
      %s24 = int_to_ptr.vmem [resolvable:$true] %s23
      %26 = dma.hbm_to_vmem [thread:$0]  %s0, 128, %s24, [#allocation3]
    $region5: #{tpu_custom_call.1} parent=1 // pred_fallthru
      _
    // Predicated region
    $region6: #{tpu_custom_call.1} parent=1 // pred_check
      _
    $region7: #{tpu_custom_call.1} parent=1 // pred_check_branch
      %28 = sbr.rel (0) target = $region9
    $region8: #{tpu_custom_call.1} parent=1 // pred_region
      %s30 = ssub.s32 256, 256
      %31 = vsyncadd [#allocation6], %s30
      %s32 = sshll.u32 [#allocation5], 4
      %s33 = int_to_ptr.vmem [resolvable:$true] %s32
      %38 = dma.hbm_to_vmem [thread:$0]  %s1, 256, %s33, [#allocation6], 64, 64, 4
    $region9: #{tpu_custom_call.1} parent=1 // pred_fallthru
      _
    // Predicated region
    $region10: #{tpu_custom_call.1} parent=1 // pred_check
      _
    $region11: #{tpu_custom_call.1} parent=1 // pred_check_branch
      %40 = sbr.rel (0) target = $region13
    $region12: #{tpu_custom_call.1} parent=1 // pred_region
      %s42 = ssub.s32 16, 16
      %43 = vsyncadd [#allocation6], %s42
      %s45 = sshll.u32 [#allocation7], 4
      %s46 = int_to_ptr.vmem [resolvable:$true] %s45
      %48 = dma.hbm_to_vmem [thread:$0]  %s2, 16, %s46, [#allocation6]
    $region13: #{tpu_custom_call.1} parent=1 // pred_fallthru
      _
    // Predicated region
    $region14: #{tpu_custom_call.1} parent=1 // pred_check
      _
    $region15: #{tpu_custom_call.1} parent=1 // pred_check_branch
      %50 = sbr.rel (0) target = $region17
    $region16: #{tpu_custom_call.1} parent=1 // pred_region
      %s52 = ssub.s32 3072, 3072
      %53 = vsyncadd [#allocation9], %s52
      %s54 = sshll.u32 [#allocation8], 4
      %s55 = int_to_ptr.vmem [resolvable:$true] %s54
      %60 = dma.hbm_to_vmem [thread:$0]  %s3, 3072, %s55, [#allocation9], 384, 384, 24
    $region17: #{tpu_custom_call.1} parent=1 // pred_fallthru
      _
    // Predicated region
    $region18: #{tpu_custom_call.1} parent=1 // pred_check
      _
    $region19: #{tpu_custom_call.1} parent=1 // pred_check_branch
      %62 = sbr.rel (0) target = $region21
    $region20: #{tpu_custom_call.1} parent=1 // pred_region
      %s64 = ssub.s32 96, 96
      %65 = vsyncadd [#allocation9], %s64
      %s67 = sshll.u32 [#allocation10], 4
      %s68 = int_to_ptr.vmem [resolvable:$true] %s67
      %70 = dma.hbm_to_vmem [thread:$0]  %s4, 96, %s68, [#allocation9]
    $region21: #{tpu_custom_call.1} parent=1 // pred_fallthru
      _
    // Predicated region
    $region22: #{tpu_custom_call.1} parent=1 // pred_check
      _
    $region23: #{tpu_custom_call.1} parent=1 // pred_check_branch
      %72 = sbr.rel (0) target = $region25
    $region24: #{tpu_custom_call.1} parent=1 // pred_region
      %s74 = ssub.s32 62208, 62208
      %75 = vsyncadd [#allocation12], %s74
      %s76 = sshll.u32 [#allocation11], 4
      %s77 = int_to_ptr.vmem [resolvable:$true] %s76
      %82 = dma.hbm_to_vmem [thread:$0]  %s5, 62208, %s77, [#allocation12], 768, 768, 48
    $region25: #{tpu_custom_call.1} parent=1 // pred_fallthru
      _
    // Predicated region
    $region26: #{tpu_custom_call.1} parent=1 // pred_check
      _
    $region27: #{tpu_custom_call.1} parent=1 // pred_check_branch
      %84 = sbr.rel (0) target = $region29
    $region28: #{tpu_custom_call.1} parent=1 // pred_region
      %s86 = ssub.s32 192, 192
      %87 = vsyncadd [#allocation12], %s86
      %s89 = sshll.u32 [#allocation13], 4
      %s90 = int_to_ptr.vmem [resolvable:$true] %s89
      %92 = dma.hbm_to_vmem [thread:$0]  %s6, 192, %s90, [#allocation12]
    $region29: #{tpu_custom_call.1} parent=1 // pred_fallthru
      _
    // Predicated region
    $region30: #{tpu_custom_call.1} parent=1 // pred_check
      _
    $region31: #{tpu_custom_call.1} parent=1 // pred_check_branch
      %94 = sbr.rel (0) target = $region33
    $region32: #{tpu_custom_call.1} parent=1 // pred_region
      %95 = dma.done [#allocation3], 128
    $region33: #{tpu_custom_call.1} parent=1 // pred_fallthru
      _
    // Predicated region
    $region34: #{tpu_custom_call.1} parent=1 // pred_check
      _
    $region35: #{tpu_custom_call.1} parent=1 // pred_check_branch
      %97 = sbr.rel (0) target = $region37
    $region36: #{tpu_custom_call.1} parent=1 // pred_region
      %98 = dma.done [#allocation6], 256
    $region37: #{tpu_custom_call.1} parent=1 // pred_fallthru
      _
    // Predicated region
    $region38: #{tpu_custom_call.1} parent=1 // pred_check
      _
    $region39: #{tpu_custom_call.1} parent=1 // pred_check_branch
      %100 = sbr.rel (0) target = $region41
    $region40: #{tpu_custom_call.1} parent=1 // pred_region
      %101 = dma.done [#allocation6], 16
    $region41: #{tpu_custom_call.1} parent=1 // pred_fallthru
      _
    // Predicated region
    $region42: #{tpu_custom_call.1} parent=1 // pred_check
      _
    $region43: #{tpu_custom_call.1} parent=1 // pred_check_branch
      %103 = sbr.rel (0) target = $region45
    $region44: #{tpu_custom_call.1} parent=1 // pred_region
      %104 = dma.done [#allocation9], 3072
    $region45: #{tpu_custom_call.1} parent=1 // pred_fallthru
      _
    // Predicated region
    $region46: #{tpu_custom_call.1} parent=1 // pred_check
      _
    $region47: #{tpu_custom_call.1} parent=1 // pred_check_branch
      %106 = sbr.rel (0) target = $region49
    $region48: #{tpu_custom_call.1} parent=1 // pred_region
      %107 = dma.done [#allocation9], 96
    $region49: #{tpu_custom_call.1} parent=1 // pred_fallthru
      _
    // Predicated region
    $region50: #{tpu_custom_call.1} parent=1 // pred_check
      _
    $region51: #{tpu_custom_call.1} parent=1 // pred_check_branch
      %109 = sbr.rel (0) target = $region53
    $region52: #{tpu_custom_call.1} parent=1 // pred_region
      %110 = dma.done [#allocation12], 62208
    $region53: #{tpu_custom_call.1} parent=1 // pred_fallthru
      _
    // Predicated region
    $region54: #{tpu_custom_call.1} parent=1 // pred_check
      _
    $region55: #{tpu_custom_call.1} parent=1 // pred_check_branch
      %112 = sbr.rel (0) target = $region57
    $region56: #{tpu_custom_call.1} parent=1 // pred_region
      %113 = dma.done [#allocation12], 192
    $region57: #{tpu_custom_call.1} parent=1 // pred_fallthru
      _
    %v115 = vld [vmem:[#allocation2] sm:$0xff]
    %v116 = vld [vmem:[#allocation5] sm:$0xf]
    %v117 = vld [vmem:[#allocation5 + $0x4] sm:$0xf]
    %v118 = vld [vmem:[#allocation5 + $0x8] sm:$0xf]
    %v119 = vld [vmem:[#allocation5 + $0xc] sm:$0xf]
    %v120 = vld [vmem:[#allocation7] sm:$0x1]
    %v121 = vpack.c.bf16 %v115, %v115
    %v123 = vlaneseq
    %v124 = vshrl.u32 %v123, 7
    %v125 = vsub.s32 0, %v124
    %v126 = vrot.slane %v120, %v125
    %v132 = vunpack.c.l.b16 %v116
    %v133 = vunpack.c.l.b16 %v117
    %v134 = vunpack.c.l.b16 %v118
    %v135 = vunpack.c.l.b16 %v119
    %v136 = vpack.c.b16 %v133, %v132
    %v137 = vpack.c.b16 %v135, %v134
    %vm140 = vcmask 261120
    %v142 = vsel %vm140, %v121, 0
    %144 = vmatprep.subr.bf16.mxu0 0
    %145 = vmatpush1.bf16.msra.mxu0 %v136
    %146 = vmatprep.subr.bf16.mxu0 0
    %147 = vmatpush1.bf16.msra.mxu0 %v137
    %148 = vmatprep.subr.bf16.mxu0 0
    %149 = vmatpush1.bf16.msra.mxu0 0
    %150 = vmatprep.subr.bf16.mxu0 0
    %151 = vmatpush1.bf16.msra.mxu0 0
    %152 = vmatprep.subr.bf16.mxu0 0
    %153 = vmatpush1.bf16.msra.mxu0 0
    %154 = vmatprep.subr.bf16.mxu0 0
    %155 = vmatpush1.bf16.msra.mxu0 0
    %156 = vmatprep.subr.bf16.mxu0 0
    %157 = vmatpush1.bf16.msra.mxu0 0
    %158 = vmatprep.subr.bf16.mxu0 0
    %159 = vmatpush1.bf16.msra.mxu0 0
    %160 = vmatprep.subr.bf16.mxu0 0
    %161 = vmatpush1.bf16.msra.mxu0 0
    %162 = vmatprep.subr.bf16.mxu0 0
    %163 = vmatpush1.bf16.msra.mxu0 0
    %164 = vmatprep.subr.bf16.mxu0 0
    %165 = vmatpush1.bf16.msra.mxu0 0
    %166 = vmatprep.subr.bf16.mxu0 0
    %167 = vmatpush1.bf16.msra.mxu0 0
    %168 = vmatprep.subr.bf16.mxu0 0
    %169 = vmatpush1.bf16.msra.mxu0 0
    %170 = vmatprep.subr.bf16.mxu0 0
    %171 = vmatpush1.bf16.msra.mxu0 0
    %172 = vmatprep.subr.bf16.mxu0 0
    %173 = vmatpush1.bf16.msra.mxu0 0
    %174 = vmatprep.subr.bf16.mxu0 0
    %175 = vmatpush1.bf16.msra.mxu0 0
    %176 = vmatprep.mubr.bf16.mxu0 0
    %177 = vmatmul.mubr.bf16.gmra.mrb[0].mxu0 %v142
    %v178 = vpop.f32.mrb[0].mxu0
    %v179 = vadd.f32 %v126, %v178
    %v180 = vpop.f32.mrb[0].mxu0
    %v181 = vpop.f32.mrb[0].mxu0
    %v182 = vpop.f32.mrb[0].mxu0
    %183 = vdwg.mxu0
    %v184 = vmax.f32 %v179, 0.0
    %v185 = vld [vmem:[#allocation8] sm:$0xff]
    %v186 = vld [vmem:[#allocation8 + $0x8] sm:$0xff]
    %v187 = vld [vmem:[#allocation8 + $0x10] sm:$0xff]
    %v188 = vld [vmem:[#allocation8 + $0x18] sm:$0xff]
    %v189 = vld [vmem:[#allocation8 + $0x20] sm:$0xff]
    %v190 = vld [vmem:[#allocation8 + $0x28] sm:$0xff]
    %v191 = vld [vmem:[#allocation8 + $0x30] sm:$0xff]
    %v192 = vld [vmem:[#allocation8 + $0x38] sm:$0xff]
    %v193 = vld [vmem:[#allocation8 + $0x40] sm:$0xff]
    %v194 = vld [vmem:[#allocation8 + $0x48] sm:$0xff]
    %v195 = vld [vmem:[#allocation8 + $0x50] sm:$0xff]
    %v196 = vld [vmem:[#allocation8 + $0x58] sm:$0xff]
    %v197 = vld [vmem:[#allocation8 + $0x60] sm:$0xff]
    %v198 = vld [vmem:[#allocation8 + $0x68] sm:$0xff]
    %v199 = vld [vmem:[#allocation8 + $0x70] sm:$0xff]
    %v200 = vld [vmem:[#allocation8 + $0x78] sm:$0xff]
    %v201 = vld [vmem:[#allocation8 + $0x80] sm:$0xff]
    %v202 = vld [vmem:[#allocation8 + $0x88] sm:$0xff]
    %v203 = vld [vmem:[#allocation8 + $0x90] sm:$0xff]
    %v204 = vld [vmem:[#allocation8 + $0x98] sm:$0xff]
    %v205 = vld [vmem:[#allocation8 + $0xa0] sm:$0xff]
    %v206 = vld [vmem:[#allocation8 + $0xa8] sm:$0xff]
    %v207 = vld [vmem:[#allocation8 + $0xb0] sm:$0xff]
    %v208 = vld [vmem:[#allocation8 + $0xb8] sm:$0xff]
    %v209 = vld [vmem:[#allocation10] sm:$0x3f]
    %v210 = vpack.c.bf16 %v184, %v184
    %v212 = vlaneseq
    %v213 = vshrl.u32 %v212, 7
    %v214 = vsub.s32 0, %v213
    %v215 = vrot.slane %v209, %v214
    %v216 = vlaneseq
    %v217 = vshrl.u32 %v216, 7
    %v218 = vsub.s32 1, %v217
    %v219 = vrot.slane %v209, %v218
    %v220 = vlaneseq
    %v221 = vshrl.u32 %v220, 7
    %v222 = vsub.s32 2, %v221
    %v223 = vrot.slane %v209, %v222
    %v224 = vlaneseq
    %v225 = vshrl.u32 %v224, 7
    %v226 = vsub.s32 3, %v225
    %v227 = vrot.slane %v209, %v226
    %v228 = vlaneseq
    %v229 = vshrl.u32 %v228, 7
    %v230 = vsub.s32 4, %v229
    %v231 = vrot.slane %v209, %v230
    %v232 = vlaneseq
    %v233 = vshrl.u32 %v232, 7
    %v234 = vsub.s32 5, %v233
    %v235 = vrot.slane %v209, %v234
    %v266 = vunpack.c.l.b16 %v185
    %v267 = vunpack.c.h.b16 %v185
    %v268 = vunpack.c.l.b16 %v186
    %v269 = vunpack.c.h.b16 %v186
    %v270 = vunpack.c.l.b16 %v187
    %v271 = vunpack.c.h.b16 %v187
    %v272 = vunpack.c.l.b16 %v188
    %v273 = vunpack.c.h.b16 %v188
    %v274 = vunpack.c.l.b16 %v189
    %v275 = vunpack.c.h.b16 %v189
    %v276 = vunpack.c.l.b16 %v190
    %v277 = vunpack.c.h.b16 %v190
    %v278 = vunpack.c.l.b16 %v191
    %v279 = vunpack.c.h.b16 %v191
    %v280 = vunpack.c.l.b16 %v192
    %v281 = vunpack.c.h.b16 %v192
    %v282 = vunpack.c.l.b16 %v193
    %v283 = vunpack.c.h.b16 %v193
    %v284 = vunpack.c.l.b16 %v194
    %v285 = vunpack.c.h.b16 %v194
    %v286 = vunpack.c.l.b16 %v195
    %v287 = vunpack.c.h.b16 %v195
    %v288 = vunpack.c.l.b16 %v196
    %v289 = vunpack.c.h.b16 %v196
    %v290 = vunpack.c.l.b16 %v197
    %v291 = vunpack.c.h.b16 %v197
    %v292 = vunpack.c.l.b16 %v198
    %v293 = vunpack.c.h.b16 %v198
    %v294 = vunpack.c.l.b16 %v199
    %v295 = vunpack.c.h.b16 %v199
    %v296 = vunpack.c.l.b16 %v200
    %v297 = vunpack.c.h.b16 %v200
    %v298 = vunpack.c.l.b16 %v201
    %v299 = vunpack.c.h.b16 %v201
    %v300 = vunpack.c.l.b16 %v202
    %v301 = vunpack.c.h.b16 %v202
    %v302 = vunpack.c.l.b16 %v203
    %v303 = vunpack.c.h.b16 %v203
    %v304 = vunpack.c.l.b16 %v204
    %v305 = vunpack.c.h.b16 %v204
    %v306 = vunpack.c.l.b16 %v205
    %v307 = vunpack.c.h.b16 %v205
    %v308 = vunpack.c.l.b16 %v206
    %v309 = vunpack.c.h.b16 %v206
    %v310 = vunpack.c.l.b16 %v207
    %v311 = vunpack.c.h.b16 %v207
    %v312 = vunpack.c.l.b16 %v208
    %v313 = vunpack.c.h.b16 %v208
    %v314 = vpack.c.b16 %v272, %v266
    %v315 = vpack.c.b16 %v273, %v267
    %v316 = vpack.c.b16 %v274, %v268
    %v317 = vpack.c.b16 %v275, %v269
    %v318 = vpack.c.b16 %v276, %v270
    %v319 = vpack.c.b16 %v277, %v271
    %v320 = vpack.c.b16 %v284, %v278
    %v321 = vpack.c.b16 %v285, %v279
    %v322 = vpack.c.b16 %v286, %v280
    %v323 = vpack.c.b16 %v287, %v281
    %v324 = vpack.c.b16 %v288, %v282
    %v325 = vpack.c.b16 %v289, %v283
    %v326 = vpack.c.b16 %v296, %v290
    %v327 = vpack.c.b16 %v297, %v291
    %v328 = vpack.c.b16 %v298, %v292
    %v329 = vpack.c.b16 %v299, %v293
    %v330 = vpack.c.b16 %v300, %v294
    %v331 = vpack.c.b16 %v301, %v295
    %v332 = vpack.c.b16 %v308, %v302
    %v333 = vpack.c.b16 %v309, %v303
    %v334 = vpack.c.b16 %v310, %v304
    %v335 = vpack.c.b16 %v311, %v305
    %v336 = vpack.c.b16 %v312, %v306
    %v337 = vpack.c.b16 %v313, %v307
    %vm362 = vcmask 523264
    %v364 = vsel %vm362, %v210, 0
    %366 = vmatprep.subr.bf16.mxu0 %v315
    %367 = vmatpush1.bf16.msra.mxu0 %v314
    %368 = vmatprep.subr.bf16.mxu0 %v321
    %369 = vmatpush1.bf16.msra.mxu0 %v320
    %370 = vmatprep.subr.bf16.mxu0 %v327
    %371 = vmatpush1.bf16.msra.mxu0 %v326
    %372 = vmatprep.subr.bf16.mxu0 %v333
    %373 = vmatpush1.bf16.msra.mxu0 %v332
    %374 = vmatprep.subr.bf16.mxu0 0
    %375 = vmatpush1.bf16.msra.mxu0 0
    %376 = vmatprep.subr.bf16.mxu0 0
    %377 = vmatpush1.bf16.msra.mxu0 0
    %378 = vmatprep.subr.bf16.mxu0 0
    %379 = vmatpush1.bf16.msra.mxu0 0
    %380 = vmatprep.subr.bf16.mxu0 0
    %381 = vmatpush1.bf16.msra.mxu0 0
    %382 = vmatprep.subr.bf16.mxu0 0
    %383 = vmatpush1.bf16.msra.mxu0 0
    %384 = vmatprep.subr.bf16.mxu0 0
    %385 = vmatpush1.bf16.msra.mxu0 0
    %386 = vmatprep.subr.bf16.mxu0 0
    %387 = vmatpush1.bf16.msra.mxu0 0
    %388 = vmatprep.subr.bf16.mxu0 0
    %389 = vmatpush1.bf16.msra.mxu0 0
    %390 = vmatprep.subr.bf16.mxu0 0
    %391 = vmatpush1.bf16.msra.mxu0 0
    %392 = vmatprep.subr.bf16.mxu0 0
    %393 = vmatpush1.bf16.msra.mxu0 0
    %394 = vmatprep.subr.bf16.mxu0 0
    %395 = vmatpush1.bf16.msra.mxu0 0
    %396 = vmatprep.subr.bf16.mxu0 0
    %397 = vmatpush1.bf16.msra.mxu0 0
    %398 = vmatprep.mubr.bf16.mxu0 0
    %399 = vmatmul.mubr.bf16.gmra.mrb[0].mxu0 %v364
    %v400 = vpop.f32.mrb[0].mxu0
    %v401 = vadd.f32 %v215, %v400
    %v402 = vpop.f32.mrb[0].mxu0
    %v403 = vadd.f32 %v219, %v402
    %v404 = vpop.f32.mrb[0].mxu0
    %v405 = vpop.f32.mrb[0].mxu0
    %406 = vdwg.mxu0
    %407 = vmatprep.subr.bf16.mxu0 %v317
    %408 = vmatpush1.bf16.msra.mxu0 %v316
    %409 = vmatprep.subr.bf16.mxu0 %v323
    %410 = vmatpush1.bf16.msra.mxu0 %v322
    %411 = vmatprep.subr.bf16.mxu0 %v329
    %412 = vmatpush1.bf16.msra.mxu0 %v328
    %413 = vmatprep.subr.bf16.mxu0 %v335
    %414 = vmatpush1.bf16.msra.mxu0 %v334
    %415 = vmatprep.subr.bf16.mxu0 0
    %416 = vmatpush1.bf16.msra.mxu0 0
    %417 = vmatprep.subr.bf16.mxu0 0
    %418 = vmatpush1.bf16.msra.mxu0 0
    %419 = vmatprep.subr.bf16.mxu0 0
    %420 = vmatpush1.bf16.msra.mxu0 0
    %421 = vmatprep.subr.bf16.mxu0 0
    %422 = vmatpush1.bf16.msra.mxu0 0
    %423 = vmatprep.subr.bf16.mxu0 0
    %424 = vmatpush1.bf16.msra.mxu0 0
    %425 = vmatprep.subr.bf16.mxu0 0
    %426 = vmatpush1.bf16.msra.mxu0 0
    %427 = vmatprep.subr.bf16.mxu0 0
    %428 = vmatpush1.bf16.msra.mxu0 0
    %429 = vmatprep.subr.bf16.mxu0 0
    %430 = vmatpush1.bf16.msra.mxu0 0
    %431 = vmatprep.subr.bf16.mxu0 0
    %432 = vmatpush1.bf16.msra.mxu0 0
    %433 = vmatprep.subr.bf16.mxu0 0
    %434 = vmatpush1.bf16.msra.mxu0 0
    %435 = vmatprep.subr.bf16.mxu0 0
    %436 = vmatpush1.bf16.msra.mxu0 0
    %437 = vmatprep.subr.bf16.mxu0 0
    %438 = vmatpush1.bf16.msra.mxu0 0
    %439 = vmatprep.mubr.bf16.mxu0 0
    %440 = vmatmul.mubr.bf16.gmra.mrb[0].mxu0 %v364
    %v441 = vpop.f32.mrb[0].mxu0
    %v442 = vadd.f32 %v223, %v441
    %v443 = vpop.f32.mrb[0].mxu0
    %v444 = vadd.f32 %v227, %v443
    %v445 = vpop.f32.mrb[0].mxu0
    %v446 = vpop.f32.mrb[0].mxu0
    %447 = vdwg.mxu0
    %448 = vmatprep.subr.bf16.mxu0 %v319
    %449 = vmatpush1.bf16.msra.mxu0 %v318
    %450 = vmatprep.subr.bf16.mxu0 %v325
    %451 = vmatpush1.bf16.msra.mxu0 %v324
    %452 = vmatprep.subr.bf16.mxu0 %v331
    %453 = vmatpush1.bf16.msra.mxu0 %v330
    %454 = vmatprep.subr.bf16.mxu0 %v337
    %455 = vmatpush1.bf16.msra.mxu0 %v336
    %456 = vmatprep.subr.bf16.mxu0 0
    %457 = vmatpush1.bf16.msra.mxu0 0
    %458 = vmatprep.subr.bf16.mxu0 0
    %459 = vmatpush1.bf16.msra.mxu0 0
    %460 = vmatprep.subr.bf16.mxu0 0
    %461 = vmatpush1.bf16.msra.mxu0 0
    %462 = vmatprep.subr.bf16.mxu0 0
    %463 = vmatpush1.bf16.msra.mxu0 0
    %464 = vmatprep.subr.bf16.mxu0 0
    %465 = vmatpush1.bf16.msra.mxu0 0
    %466 = vmatprep.subr.bf16.mxu0 0
    %467 = vmatpush1.bf16.msra.mxu0 0
    %468 = vmatprep.subr.bf16.mxu0 0
    %469 = vmatpush1.bf16.msra.mxu0 0
    %470 = vmatprep.subr.bf16.mxu0 0
    %471 = vmatpush1.bf16.msra.mxu0 0
    %472 = vmatprep.subr.bf16.mxu0 0
    %473 = vmatpush1.bf16.msra.mxu0 0
    %474 = vmatprep.subr.bf16.mxu0 0
    %475 = vmatpush1.bf16.msra.mxu0 0
    %476 = vmatprep.subr.bf16.mxu0 0
    %477 = vmatpush1.bf16.msra.mxu0 0
    %478 = vmatprep.subr.bf16.mxu0 0
    %479 = vmatpush1.bf16.msra.mxu0 0
    %480 = vmatprep.mubr.bf16.mxu0 0
    %481 = vmatmul.mubr.bf16.gmra.mrb[0].mxu0 %v364
    %v482 = vpop.f32.mrb[0].mxu0
    %v483 = vadd.f32 %v231, %v482
    %v484 = vpop.f32.mrb[0].mxu0
    %v485 = vadd.f32 %v235, %v484
    %v486 = vpop.f32.mrb[0].mxu0
    %v487 = vpop.f32.mrb[0].mxu0
    %488 = vdwg.mxu0
    %v489 = vmax.f32 %v401, 0.0
    %v490 = vmax.f32 %v403, 0.0
    %v491 = vmax.f32 %v442, 0.0
    %v492 = vmax.f32 %v444, 0.0
    %v493 = vmax.f32 %v483, 0.0
    %v494 = vmax.f32 %v485, 0.0
    %v495 = vld [vmem:[#allocation11] sm:$0xff]
    %v496 = vld [vmem:[#allocation11 + $0x8] sm:$0xff]
    %v497 = vld [vmem:[#allocation11 + $0x10] sm:$0xff]
    %v498 = vld [vmem:[#allocation11 + $0x18] sm:$0xff]
    %v499 = vld [vmem:[#allocation11 + $0x20] sm:$0xff]
    %v500 = vld [vmem:[#allocation11 + $0x28] sm:$0xff]
    %v501 = vld [vmem:[#allocation11 + $0x30] sm:$0xff]
    %v502 = vld [vmem:[#allocation11 + $0x38] sm:$0xff]
    %v503 = vld [vmem:[#allocation11 + $0x40] sm:$0xff]
    %v504 = vld [vmem:[#allocation11 + $0x48] sm:$0xff]
    %v505 = vld [vmem:[#allocation11 + $0x50] sm:$0xff]
    %v506 = vld [vmem:[#allocation11 + $0x58] sm:$0xff]
    %v507 = vld [vmem:[#allocation11 + $0x60] sm:$0xff]
    %v508 = vld [vmem:[#allocation11 + $0x68] sm:$0xff]
    %v509 = vld [vmem:[#allocation11 + $0x70] sm:$0xff]
    %v510 = vld [vmem:[#allocation11 + $0x78] sm:$0xff]
    %v511 = vld [vmem:[#allocation11 + $0x80] sm:$0xff]
    %v512 = vld [vmem:[#allocation11 + $0x88] sm:$0xff]
    %v513 = vld [vmem:[#allocation11 + $0x90] sm:$0xff]
    %v514 = vld [vmem:[#allocation11 + $0x98] sm:$0xff]
    %v515 = vld [vmem:[#allocation11 + $0xa0] sm:$0xff]
    %v516 = vld [vmem:[#allocation11 + $0xa8] sm:$0xff]
    %v517 = vld [vmem:[#allocation11 + $0xb0] sm:$0xff]
    %v518 = vld [vmem:[#allocation11 + $0xb8] sm:$0xff]
    %v519 = vld [vmem:[#allocation11 + $0xc0] sm:$0xff]
    %v520 = vld [vmem:[#allocation11 + $0xc8] sm:$0xff]
    %v521 = vld [vmem:[#allocation11 + $0xd0] sm:$0xff]
    %v522 = vld [vmem:[#allocation11 + $0xd8] sm:$0xff]
    %v523 = vld [vmem:[#allocation11 + $0xe0] sm:$0xff]
    %v524 = vld [vmem:[#allocation11 + $0xe8] sm:$0xff]
    %v525 = vld [vmem:[#allocation11 + $0xf0] sm:$0xff]
    %v526 = vld [vmem:[#allocation11 + $0xf8] sm:$0xff]
    %v527 = vld [vmem:[#allocation11 + $0x100] sm:$0xff]
    %v528 = vld [vmem:[#allocation11 + $0x108] sm:$0xff]
    %v529 = vld [vmem:[#allocation11 + $0x110] sm:$0xff]
    %v530 = vld [vmem:[#allocation11 + $0x118] sm:$0xff]
    %v531 = vld [vmem:[#allocation11 + $0x120] sm:$0xff]
    %v532 = vld [vmem:[#allocation11 + $0x128] sm:$0xff]
    %v533 = vld [vmem:[#allocation11 + $0x130] sm:$0xff]
    %v534 = vld [vmem:[#allocation11 + $0x138] sm:$0xff]
    %v535 = vld [vmem:[#allocation11 + $0x140] sm:$0xff]
    %v536 = vld [vmem:[#allocation11 + $0x148] sm:$0xff]
    %v537 = vld [vmem:[#allocation11 + $0x150] sm:$0xff]
    %v538 = vld [vmem:[#allocation11 + $0x158] sm:$0xff]
    %v539 = vld [vmem:[#allocation11 + $0x160] sm:$0xff]
    %v540 = vld [vmem:[#allocation11 + $0x168] sm:$0xff]
    %v541 = vld [vmem:[#allocation11 + $0x170] sm:$0xff]
    %v542 = vld [vmem:[#allocation11 + $0x178] sm:$0xff]
    %v543 = vld [vmem:[#allocation11 + $0x180] sm:$0xff]
    %v544 = vld [vmem:[#allocation11 + $0x188] sm:$0xff]
    %v545 = vld [vmem:[#allocation11 + $0x190] sm:$0xff]
    %v546 = vld [vmem:[#allocation11 + $0x198] sm:$0xff]
    %v547 = vld [vmem:[#allocation11 + $0x1a0] sm:$0xff]
    %v548 = vld [vmem:[#allocation11 + $0x1a8] sm:$0xff]
    %v549 = vld [vmem:[#allocation11 + $0x1b0] sm:$0xff]
    %v550 = vld [vmem:[#allocation11 + $0x1b8] sm:$0xff]
    %v551 = vld [vmem:[#allocation11 + $0x1c0] sm:$0xff]
    %v552 = vld [vmem:[#allocation11 + $0x1c8] sm:$0xff]
    %v553 = vld [vmem:[#allocation11 + $0x1d0] sm:$0xff]
    %v554 = vld [vmem:[#allocation11 + $0x1d8] sm:$0xff]
    %v555 = vld [vmem:[#allocation11 + $0x1e0] sm:$0xff]
    %v556 = vld [vmem:[#allocation11 + $0x1e8] sm:$0xff]
    %v557 = vld [vmem:[#allocation11 + $0x1f0] sm:$0xff]
    %v558 = vld [vmem:[#allocation11 + $0x1f8] sm:$0xff]
    %v559 = vld [vmem:[#allocation11 + $0x200] sm:$0xff]
    %v560 = vld [vmem:[#allocation11 + $0x208] sm:$0xff]
    %v561 = vld [vmem:[#allocation11 + $0x210] sm:$0xff]
    %v562 = vld [vmem:[#allocation11 + $0x218] sm:$0xff]
    %v563 = vld [vmem:[#allocation11 + $0x220] sm:$0xff]
    %v564 = vld [vmem:[#allocation11 + $0x228] sm:$0xff]
    %v565 = vld [vmem:[#allocation11 + $0x230] sm:$0xff]
    %v566 = vld [vmem:[#allocation11 + $0x238] sm:$0xff]
    %v567 = vld [vmem:[#allocation11 + $0x240] sm:$0xff]
    %v568 = vld [vmem:[#allocation11 + $0x248] sm:$0xff]
    %v569 = vld [vmem:[#allocation11 + $0x250] sm:$0xff]
    %v570 = vld [vmem:[#allocation11 + $0x258] sm:$0xff]
    %v571 = vld [vmem:[#allocation11 + $0x260] sm:$0xff]
    %v572 = vld [vmem:[#allocation11 + $0x268] sm:$0xff]
    %v573 = vld [vmem:[#allocation11 + $0x270] sm:$0xff]
    %v574 = vld [vmem:[#allocation11 + $0x278] sm:$0xff]
    %v575 = vld [vmem:[#allocation11 + $0x280] sm:$0xff]
    %v576 = vld [vmem:[#allocation11 + $0x288] sm:$0xff]
    %v577 = vld [vmem:[#allocation11 + $0x290] sm:$0xff]
    %v578 = vld [vmem:[#allocation11 + $0x298] sm:$0xff]
    %v579 = vld [vmem:[#allocation11 + $0x2a0] sm:$0xff]
    %v580 = vld [vmem:[#allocation11 + $0x2a8] sm:$0xff]
    %v581 = vld [vmem:[#allocation11 + $0x2b0] sm:$0xff]
    %v582 = vld [vmem:[#allocation11 + $0x2b8] sm:$0xff]
    %v583 = vld [vmem:[#allocation11 + $0x2c0] sm:$0xff]
    %v584 = vld [vmem:[#allocation11 + $0x2c8] sm:$0xff]
    %v585 = vld [vmem:[#allocation11 + $0x2d0] sm:$0xff]
    %v586 = vld [vmem:[#allocation11 + $0x2d8] sm:$0xff]
    %v587 = vld [vmem:[#allocation11 + $0x2e0] sm:$0xff]
    %v588 = vld [vmem:[#allocation11 + $0x2e8] sm:$0xff]
    %v589 = vld [vmem:[#allocation11 + $0x2f0] sm:$0xff]
    %v590 = vld [vmem:[#allocation11 + $0x2f8] sm:$0xff]
    %v591 = vld [vmem:[#allocation11 + $0x300] sm:$0xff]
    %v592 = vld [vmem:[#allocation11 + $0x308] sm:$0xff]
    %v593 = vld [vmem:[#allocation11 + $0x310] sm:$0xff]
    %v594 = vld [vmem:[#allocation11 + $0x318] sm:$0xff]
    %v595 = vld [vmem:[#allocation11 + $0x320] sm:$0xff]
    %v596 = vld [vmem:[#allocation11 + $0x328] sm:$0xff]
    %v597 = vld [vmem:[#allocation11 + $0x330] sm:$0xff]
    %v598 = vld [vmem:[#allocation11 + $0x338] sm:$0xff]
    %v599 = vld [vmem:[#allocation11 + $0x340] sm:$0xff]
    %v600 = vld [vmem:[#allocation11 + $0x348] sm:$0xff]
    %v601 = vld [vmem:[#allocation11 + $0x350] sm:$0xff]
    %v602 = vld [vmem:[#allocation11 + $0x358] sm:$0xff]
    %v603 = vld [vmem:[#allocation11 + $0x360] sm:$0xff]
    %v604 = vld [vmem:[#allocation11 + $0x368] sm:$0xff]
    %v605 = vld [vmem:[#allocation11 + $0x370] sm:$0xff]
    %v606 = vld [vmem:[#allocation11 + $0x378] sm:$0xff]
    %v607 = vld [vmem:[#allocation11 + $0x380] sm:$0xff]
    %v608 = vld [vmem:[#allocation11 + $0x388] sm:$0xff]
    %v609 = vld [vmem:[#allocation11 + $0x390] sm:$0xff]
    %v610 = vld [vmem:[#allocation11 + $0x398] sm:$0xff]
    %v611 = vld [vmem:[#allocation11 + $0x3a0] sm:$0xff]
    %v612 = vld [vmem:[#allocation11 + $0x3a8] sm:$0xff]
    %v613 = vld [vmem:[#allocation11 + $0x3b0] sm:$0xff]
    %v614 = vld [vmem:[#allocation11 + $0x3b8] sm:$0xff]
    %v615 = vld [vmem:[#allocation11 + $0x3c0] sm:$0xff]
    %v616 = vld [vmem:[#allocation11 + $0x3c8] sm:$0xff]
    %v617 = vld [vmem:[#allocation11 + $0x3d0] sm:$0xff]
    %v618 = vld [vmem:[#allocation11 + $0x3d8] sm:$0xff]
    %v619 = vld [vmem:[#allocation11 + $0x3e0] sm:$0xff]
    %v620 = vld [vmem:[#allocation11 + $0x3e8] sm:$0xff]
    %v621 = vld [vmem:[#allocation11 + $0x3f0] sm:$0xff]
    %v622 = vld [vmem:[#allocation11 + $0x3f8] sm:$0xff]
    %v623 = vld [vmem:[#allocation11 + $0x400] sm:$0xff]
    %v624 = vld [vmem:[#allocation11 + $0x408] sm:$0xff]
    %v625 = vld [vmem:[#allocation11 + $0x410] sm:$0xff]
    %v626 = vld [vmem:[#allocation11 + $0x418] sm:$0xff]
    %v627 = vld [vmem:[#allocation11 + $0x420] sm:$0xff]
    %v628 = vld [vmem:[#allocation11 + $0x428] sm:$0xff]
    %v629 = vld [vmem:[#allocation11 + $0x430] sm:$0xff]
    %v630 = vld [vmem:[#allocation11 + $0x438] sm:$0xff]
    %v631 = vld [vmem:[#allocation11 + $0x440] sm:$0xff]
    %v632 = vld [vmem:[#allocation11 + $0x448] sm:$0xff]
    %v633 = vld [vmem:[#allocation11 + $0x450] sm:$0xff]
    %v634 = vld [vmem:[#allocation11 + $0x458] sm:$0xff]
    %v635 = vld [vmem:[#allocation11 + $0x460] sm:$0xff]
    %v636 = vld [vmem:[#allocation11 + $0x468] sm:$0xff]
    %v637 = vld [vmem:[#allocation11 + $0x470] sm:$0xff]
    %v638 = vld [vmem:[#allocation11 + $0x478] sm:$0xff]
    %v639 = vld [vmem:[#allocation11 + $0x480] sm:$0xff]
    %v640 = vld [vmem:[#allocation11 + $0x488] sm:$0xff]
    %v641 = vld [vmem:[#allocation11 + $0x490] sm:$0xff]
    %v642 = vld [vmem:[#allocation11 + $0x498] sm:$0xff]
    %v643 = vld [vmem:[#allocation11 + $0x4a0] sm:$0xff]
    %v644 = vld [vmem:[#allocation11 + $0x4a8] sm:$0xff]
    %v645 = vld [vmem:[#allocation11 + $0x4b0] sm:$0xff]
    %v646 = vld [vmem:[#allocation11 + $0x4b8] sm:$0xff]
    %v647 = vld [vmem:[#allocation11 + $0x4c0] sm:$0xff]
    %v648 = vld [vmem:[#allocation11 + $0x4c8] sm:$0xff]
    %v649 = vld [vmem:[#allocation11 + $0x4d0] sm:$0xff]
    %v650 = vld [vmem:[#allocation11 + $0x4d8] sm:$0xff]
    %v651 = vld [vmem:[#allocation11 + $0x4e0] sm:$0xff]
    %v652 = vld [vmem:[#allocation11 + $0x4e8] sm:$0xff]
    %v653 = vld [vmem:[#allocation11 + $0x4f0] sm:$0xff]
    %v654 = vld [vmem:[#allocation11 + $0x4f8] sm:$0xff]
    %v655 = vld [vmem:[#allocation11 + $0x500] sm:$0xff]
    %v656 = vld [vmem:[#allocation11 + $0x508] sm:$0xff]
    %v657 = vld [vmem:[#allocation11 + $0x510] sm:$0xff]
    %v658 = vld [vmem:[#allocation11 + $0x518] sm:$0xff]
    %v659 = vld [vmem:[#allocation11 + $0x520] sm:$0xff]
    %v660 = vld [vmem:[#allocation11 + $0x528] sm:$0xff]
    %v661 = vld [vmem:[#allocation11 + $0x530] sm:$0xff]
    %v662 = vld [vmem:[#allocation11 + $0x538] sm:$0xff]
    %v663 = vld [vmem:[#allocation11 + $0x540] sm:$0xff]
    %v664 = vld [vmem:[#allocation11 + $0x548] sm:$0xff]
    %v665 = vld [vmem:[#allocation11 + $0x550] sm:$0xff]
    %v666 = vld [vmem:[#allocation11 + $0x558] sm:$0xff]
    %v667 = vld [vmem:[#allocation11 + $0x560] sm:$0xff]
    %v668 = vld [vmem:[#allocation11 + $0x568] sm:$0xff]
    %v669 = vld [vmem:[#allocation11 + $0x570] sm:$0xff]
    %v670 = vld [vmem:[#allocation11 + $0x578] sm:$0xff]
    %v671 = vld [vmem:[#allocation11 + $0x580] sm:$0xff]
    %v672 = vld [vmem:[#allocation11 + $0x588] sm:$0xff]
    %v673 = vld [vmem:[#allocation11 + $0x590] sm:$0xff]
    %v674 = vld [vmem:[#allocation11 + $0x598] sm:$0xff]
    %v675 = vld [vmem:[#allocation11 + $0x5a0] sm:$0xff]
    %v676 = vld [vmem:[#allocation11 + $0x5a8] sm:$0xff]
    %v677 = vld [vmem:[#allocation11 + $0x5b0] sm:$0xff]
    %v678 = vld [vmem:[#allocation11 + $0x5b8] sm:$0xff]
    %v679 = vld [vmem:[#allocation11 + $0x5c0] sm:$0xff]
    %v680 = vld [vmem:[#allocation11 + $0x5c8] sm:$0xff]
    %v681 = vld [vmem:[#allocation11 + $0x5d0] sm:$0xff]
    %v682 = vld [vmem:[#allocation11 + $0x5d8] sm:$0xff]
    %v683 = vld [vmem:[#allocation11 + $0x5e0] sm:$0xff]
    %v684 = vld [vmem:[#allocation11 + $0x5e8] sm:$0xff]
    %v685 = vld [vmem:[#allocation11 + $0x5f0] sm:$0xff]
    %v686 = vld [vmem:[#allocation11 + $0x5f8] sm:$0xff]
    %v687 = vld [vmem:[#allocation11 + $0x600] sm:$0xff]
    %v688 = vld [vmem:[#allocation11 + $0x608] sm:$0xff]
    %v689 = vld [vmem:[#allocation11 + $0x610] sm:$0xff]
    %v690 = vld [vmem:[#allocation11 + $0x618] sm:$0xff]
    %v691 = vld [vmem:[#allocation11 + $0x620] sm:$0xff]
    %v692 = vld [vmem:[#allocation11 + $0x628] sm:$0xff]
    %v693 = vld [vmem:[#allocation11 + $0x630] sm:$0xff]
    %v694 = vld [vmem:[#allocation11 + $0x638] sm:$0xff]
    %v695 = vld [vmem:[#allocation11 + $0x640] sm:$0xff]
    %v696 = vld [vmem:[#allocation11 + $0x648] sm:$0xff]
    %v697 = vld [vmem:[#allocation11 + $0x650] sm:$0xff]
    %v698 = vld [vmem:[#allocation11 + $0x658] sm:$0xff]
    %v699 = vld [vmem:[#allocation11 + $0x660] sm:$0xff]
    %v700 = vld [vmem:[#allocation11 + $0x668] sm:$0xff]
    %v701 = vld [vmem:[#allocation11 + $0x670] sm:$0xff]
    %v702 = vld [vmem:[#allocation11 + $0x678] sm:$0xff]
    %v703 = vld [vmem:[#allocation11 + $0x680] sm:$0xff]
    %v704 = vld [vmem:[#allocation11 + $0x688] sm:$0xff]
    %v705 = vld [vmem:[#allocation11 + $0x690] sm:$0xff]
    %v706 = vld [vmem:[#allocation11 + $0x698] sm:$0xff]
    %v707 = vld [vmem:[#allocation11 + $0x6a0] sm:$0xff]
    %v708 = vld [vmem:[#allocation11 + $0x6a8] sm:$0xff]
    %v709 = vld [vmem:[#allocation11 + $0x6b0] sm:$0xff]
    %v710 = vld [vmem:[#allocation11 + $0x6b8] sm:$0xff]
    %v711 = vld [vmem:[#allocation11 + $0x6c0] sm:$0xff]
    %v712 = vld [vmem:[#allocation11 + $0x6c8] sm:$0xff]
    %v713 = vld [vmem:[#allocation11 + $0x6d0] sm:$0xff]
    %v714 = vld [vmem:[#allocation11 + $0x6d8] sm:$0xff]
    %v715 = vld [vmem:[#allocation11 + $0x6e0] sm:$0xff]
    %v716 = vld [vmem:[#allocation11 + $0x6e8] sm:$0xff]
    %v717 = vld [vmem:[#allocation11 + $0x6f0] sm:$0xff]
    %v718 = vld [vmem:[#allocation11 + $0x6f8] sm:$0xff]
    %v719 = vld [vmem:[#allocation11 + $0x700] sm:$0xff]
    %v720 = vld [vmem:[#allocation11 + $0x708] sm:$0xff]
    %v721 = vld [vmem:[#allocation11 + $0x710] sm:$0xff]
    %v722 = vld [vmem:[#allocation11 + $0x718] sm:$0xff]
    %v723 = vld [vmem:[#allocation11 + $0x720] sm:$0xff]
    %v724 = vld [vmem:[#allocation11 + $0x728] sm:$0xff]
    %v725 = vld [vmem:[#allocation11 + $0x730] sm:$0xff]
    %v726 = vld [vmem:[#allocation11 + $0x738] sm:$0xff]
    %v727 = vld [vmem:[#allocation11 + $0x740] sm:$0xff]
    %v728 = vld [vmem:[#allocation11 + $0x748] sm:$0xff]
    %v729 = vld [vmem:[#allocation11 + $0x750] sm:$0xff]
    %v730 = vld [vmem:[#allocation11 + $0x758] sm:$0xff]
    %v731 = vld [vmem:[#allocation11 + $0x760] sm:$0xff]
    %v732 = vld [vmem:[#allocation11 + $0x768] sm:$0xff]
    %v733 = vld [vmem:[#allocation11 + $0x770] sm:$0xff]
    %v734 = vld [vmem:[#allocation11 + $0x778] sm:$0xff]
    %v735 = vld [vmem:[#allocation11 + $0x780] sm:$0xff]
    %v736 = vld [vmem:[#allocation11 + $0x788] sm:$0xff]
    %v737 = vld [vmem:[#allocation11 + $0x790] sm:$0xff]
    %v738 = vld [vmem:[#allocation11 + $0x798] sm:$0xff]
    %v739 = vld [vmem:[#allocation11 + $0x7a0] sm:$0xff]
    %v740 = vld [vmem:[#allocation11 + $0x7a8] sm:$0xff]
    %v741 = vld [vmem:[#allocation11 + $0x7b0] sm:$0xff]
    %v742 = vld [vmem:[#allocation11 + $0x7b8] sm:$0xff]
    %v743 = vld [vmem:[#allocation11 + $0x7c0] sm:$0xff]
    %v744 = vld [vmem:[#allocation11 + $0x7c8] sm:$0xff]
    %v745 = vld [vmem:[#allocation11 + $0x7d0] sm:$0xff]
    %v746 = vld [vmem:[#allocation11 + $0x7d8] sm:$0xff]
    %v747 = vld [vmem:[#allocation11 + $0x7e0] sm:$0xff]
    %v748 = vld [vmem:[#allocation11 + $0x7e8] sm:$0xff]
    %v749 = vld [vmem:[#allocation11 + $0x7f0] sm:$0xff]
    %v750 = vld [vmem:[#allocation11 + $0x7f8] sm:$0xff]
    %v751 = vld [vmem:[#allocation11 + $0x800] sm:$0xff]
    %v752 = vld [vmem:[#allocation11 + $0x808] sm:$0xff]
    %v753 = vld [vmem:[#allocation11 + $0x810] sm:$0xff]
    %v754 = vld [vmem:[#allocation11 + $0x818] sm:$0xff]
    %v755 = vld [vmem:[#allocation11 + $0x820] sm:$0xff]
    %v756 = vld [vmem:[#allocation11 + $0x828] sm:$0xff]
    %v757 = vld [vmem:[#allocation11 + $0x830] sm:$0xff]
    %v758 = vld [vmem:[#allocation11 + $0x838] sm:$0xff]
    %v759 = vld [vmem:[#allocation11 + $0x840] sm:$0xff]
    %v760 = vld [vmem:[#allocation11 + $0x848] sm:$0xff]
    %v761 = vld [vmem:[#allocation11 + $0x850] sm:$0xff]
    %v762 = vld [vmem:[#allocation11 + $0x858] sm:$0xff]
    %v763 = vld [vmem:[#allocation11 + $0x860] sm:$0xff]
    %v764 = vld [vmem:[#allocation11 + $0x868] sm:$0xff]
    %v765 = vld [vmem:[#allocation11 + $0x870] sm:$0xff]
    %v766 = vld [vmem:[#allocation11 + $0x878] sm:$0xff]
    %v767 = vld [vmem:[#allocation11 + $0x880] sm:$0xff]
    %v768 = vld [vmem:[#allocation11 + $0x888] sm:$0xff]
    %v769 = vld [vmem:[#allocation11 + $0x890] sm:$0xff]
    %v770 = vld [vmem:[#allocation11 + $0x898] sm:$0xff]
    %v771 = vld [vmem:[#allocation11 + $0x8a0] sm:$0xff]
    %v772 = vld [vmem:[#allocation11 + $0x8a8] sm:$0xff]
    %v773 = vld [vmem:[#allocation11 + $0x8b0] sm:$0xff]
    %v774 = vld [vmem:[#allocation11 + $0x8b8] sm:$0xff]
    %v775 = vld [vmem:[#allocation11 + $0x8c0] sm:$0xff]
    %v776 = vld [vmem:[#allocation11 + $0x8c8] sm:$0xff]
    %v777 = vld [vmem:[#allocation11 + $0x8d0] sm:$0xff]
    %v778 = vld [vmem:[#allocation11 + $0x8d8] sm:$0xff]
    %v779 = vld [vmem:[#allocation11 + $0x8e0] sm:$0xff]
    %v780 = vld [vmem:[#allocation11 + $0x8e8] sm:$0xff]
    %v781 = vld [vmem:[#allocation11 + $0x8f0] sm:$0xff]
    %v782 = vld [vmem:[#allocation11 + $0x8f8] sm:$0xff]
    %v783 = vld [vmem:[#allocation11 + $0x900] sm:$0xff]
    %v784 = vld [vmem:[#allocation11 + $0x908] sm:$0xff]
    %v785 = vld [vmem:[#allocation11 + $0x910] sm:$0xff]
    %v786 = vld [vmem:[#allocation11 + $0x918] sm:$0xff]
    %v787 = vld [vmem:[#allocation11 + $0x920] sm:$0xff]
    %v788 = vld [vmem:[#allocation11 + $0x928] sm:$0xff]
    %v789 = vld [vmem:[#allocation11 + $0x930] sm:$0xff]
    %v790 = vld [vmem:[#allocation11 + $0x938] sm:$0xff]
    %v791 = vld [vmem:[#allocation11 + $0x940] sm:$0xff]
    %v792 = vld [vmem:[#allocation11 + $0x948] sm:$0xff]
    %v793 = vld [vmem:[#allocation11 + $0x950] sm:$0xff]
    %v794 = vld [vmem:[#allocation11 + $0x958] sm:$0xff]
    %v795 = vld [vmem:[#allocation11 + $0x960] sm:$0xff]
    %v796 = vld [vmem:[#allocation11 + $0x968] sm:$0xff]
    %v797 = vld [vmem:[#allocation11 + $0x970] sm:$0xff]
    %v798 = vld [vmem:[#allocation11 + $0x978] sm:$0xff]
    %v799 = vld [vmem:[#allocation11 + $0x980] sm:$0xff]
    %v800 = vld [vmem:[#allocation11 + $0x988] sm:$0xff]
    %v801 = vld [vmem:[#allocation11 + $0x990] sm:$0xff]
    %v802 = vld [vmem:[#allocation11 + $0x998] sm:$0xff]
    %v803 = vld [vmem:[#allocation11 + $0x9a0] sm:$0xff]
    %v804 = vld [vmem:[#allocation11 + $0x9a8] sm:$0xff]
    %v805 = vld [vmem:[#allocation11 + $0x9b0] sm:$0xff]
    %v806 = vld [vmem:[#allocation11 + $0x9b8] sm:$0xff]
    %v807 = vld [vmem:[#allocation11 + $0x9c0] sm:$0xff]
    %v808 = vld [vmem:[#allocation11 + $0x9c8] sm:$0xff]
    %v809 = vld [vmem:[#allocation11 + $0x9d0] sm:$0xff]
    %v810 = vld [vmem:[#allocation11 + $0x9d8] sm:$0xff]
    %v811 = vld [vmem:[#allocation11 + $0x9e0] sm:$0xff]
    %v812 = vld [vmem:[#allocation11 + $0x9e8] sm:$0xff]
    %v813 = vld [vmem:[#allocation11 + $0x9f0] sm:$0xff]
    %v814 = vld [vmem:[#allocation11 + $0x9f8] sm:$0xff]
    %v815 = vld [vmem:[#allocation11 + $0xa00] sm:$0xff]
    %v816 = vld [vmem:[#allocation11 + $0xa08] sm:$0xff]
    %v817 = vld [vmem:[#allocation11 + $0xa10] sm:$0xff]
    %v818 = vld [vmem:[#allocation11 + $0xa18] sm:$0xff]
    %v819 = vld [vmem:[#allocation11 + $0xa20] sm:$0xff]
    %v820 = vld [vmem:[#allocation11 + $0xa28] sm:$0xff]
    %v821 = vld [vmem:[#allocation11 + $0xa30] sm:$0xff]
    %v822 = vld [vmem:[#allocation11 + $0xa38] sm:$0xff]
    %v823 = vld [vmem:[#allocation11 + $0xa40] sm:$0xff]
    %v824 = vld [vmem:[#allocation11 + $0xa48] sm:$0xff]
    %v825 = vld [vmem:[#allocation11 + $0xa50] sm:$0xff]
    %v826 = vld [vmem:[#allocation11 + $0xa58] sm:$0xff]
    %v827 = vld [vmem:[#allocation11 + $0xa60] sm:$0xff]
    %v828 = vld [vmem:[#allocation11 + $0xa68] sm:$0xff]
    %v829 = vld [vmem:[#allocation11 + $0xa70] sm:$0xff]
    %v830 = vld [vmem:[#allocation11 + $0xa78] sm:$0xff]
    %v831 = vld [vmem:[#allocation11 + $0xa80] sm:$0xff]
    %v832 = vld [vmem:[#allocation11 + $0xa88] sm:$0xff]
    %v833 = vld [vmem:[#allocation11 + $0xa90] sm:$0xff]
    %v834 = vld [vmem:[#allocation11 + $0xa98] sm:$0xff]
    %v835 = vld [vmem:[#allocation11 + $0xaa0] sm:$0xff]
    %v836 = vld [vmem:[#allocation11 + $0xaa8] sm:$0xff]
    %v837 = vld [vmem:[#allocation11 + $0xab0] sm:$0xff]
    %v838 = vld [vmem:[#allocation11 + $0xab8] sm:$0xff]
    %v839 = vld [vmem:[#allocation11 + $0xac0] sm:$0xff]
    %v840 = vld [vmem:[#allocation11 + $0xac8] sm:$0xff]
    %v841 = vld [vmem:[#allocation11 + $0xad0] sm:$0xff]
    %v842 = vld [vmem:[#allocation11 + $0xad8] sm:$0xff]
    %v843 = vld [vmem:[#allocation11 + $0xae0] sm:$0xff]
    %v844 = vld [vmem:[#allocation11 + $0xae8] sm:$0xff]
    %v845 = vld [vmem:[#allocation11 + $0xaf0] sm:$0xff]
    %v846 = vld [vmem:[#allocation11 + $0xaf8] sm:$0xff]
    %v847 = vld [vmem:[#allocation11 + $0xb00] sm:$0xff]
    %v848 = vld [vmem:[#allocation11 + $0xb08] sm:$0xff]
    %v849 = vld [vmem:[#allocation11 + $0xb10] sm:$0xff]
    %v850 = vld [vmem:[#allocation11 + $0xb18] sm:$0xff]
    %v851 = vld [vmem:[#allocation11 + $0xb20] sm:$0xff]
    %v852 = vld [vmem:[#allocation11 + $0xb28] sm:$0xff]
    %v853 = vld [vmem:[#allocation11 + $0xb30] sm:$0xff]
    %v854 = vld [vmem:[#allocation11 + $0xb38] sm:$0xff]
    %v855 = vld [vmem:[#allocation11 + $0xb40] sm:$0xff]
    %v856 = vld [vmem:[#allocation11 + $0xb48] sm:$0xff]
    %v857 = vld [vmem:[#allocation11 + $0xb50] sm:$0xff]
    %v858 = vld [vmem:[#allocation11 + $0xb58] sm:$0xff]
    %v859 = vld [vmem:[#allocation11 + $0xb60] sm:$0xff]
    %v860 = vld [vmem:[#allocation11 + $0xb68] sm:$0xff]
    %v861 = vld [vmem:[#allocation11 + $0xb70] sm:$0xff]
    %v862 = vld [vmem:[#allocation11 + $0xb78] sm:$0xff]
    %v863 = vld [vmem:[#allocation11 + $0xb80] sm:$0xff]
    %v864 = vld [vmem:[#allocation11 + $0xb88] sm:$0xff]
    %v865 = vld [vmem:[#allocation11 + $0xb90] sm:$0xff]
    %v866 = vld [vmem:[#allocation11 + $0xb98] sm:$0xff]
    %v867 = vld [vmem:[#allocation11 + $0xba0] sm:$0xff]
    %v868 = vld [vmem:[#allocation11 + $0xba8] sm:$0xff]
    %v869 = vld [vmem:[#allocation11 + $0xbb0] sm:$0xff]
    %v870 = vld [vmem:[#allocation11 + $0xbb8] sm:$0xff]
    %v871 = vld [vmem:[#allocation11 + $0xbc0] sm:$0xff]
    %v872 = vld [vmem:[#allocation11 + $0xbc8] sm:$0xff]
    %v873 = vld [vmem:[#allocation11 + $0xbd0] sm:$0xff]
    %v874 = vld [vmem:[#allocation11 + $0xbd8] sm:$0xff]
    %v875 = vld [vmem:[#allocation11 + $0xbe0] sm:$0xff]
    %v876 = vld [vmem:[#allocation11 + $0xbe8] sm:$0xff]
    %v877 = vld [vmem:[#allocation11 + $0xbf0] sm:$0xff]
    %v878 = vld [vmem:[#allocation11 + $0xbf8] sm:$0xff]
    %v879 = vld [vmem:[#allocation11 + $0xc00] sm:$0xff]
    %v880 = vld [vmem:[#allocation11 + $0xc08] sm:$0xff]
    %v881 = vld [vmem:[#allocation11 + $0xc10] sm:$0xff]
    %v882 = vld [vmem:[#allocation11 + $0xc18] sm:$0xff]
    %v883 = vld [vmem:[#allocation11 + $0xc20] sm:$0xff]
    %v884 = vld [vmem:[#allocation11 + $0xc28] sm:$0xff]
    %v885 = vld [vmem:[#allocation11 + $0xc30] sm:$0xff]
    %v886 = vld [vmem:[#allocation11 + $0xc38] sm:$0xff]
    %v887 = vld [vmem:[#allocation11 + $0xc40] sm:$0xff]
    %v888 = vld [vmem:[#allocation11 + $0xc48] sm:$0xff]
    %v889 = vld [vmem:[#allocation11 + $0xc50] sm:$0xff]
    %v890 = vld [vmem:[#allocation11 + $0xc58] sm:$0xff]
    %v891 = vld [vmem:[#allocation11 + $0xc60] sm:$0xff]
    %v892 = vld [vmem:[#allocation11 + $0xc68] sm:$0xff]
    %v893 = vld [vmem:[#allocation11 + $0xc70] sm:$0xff]
    %v894 = vld [vmem:[#allocation11 + $0xc78] sm:$0xff]
    %v895 = vld [vmem:[#allocation11 + $0xc80] sm:$0xff]
    %v896 = vld [vmem:[#allocation11 + $0xc88] sm:$0xff]
    %v897 = vld [vmem:[#allocation11 + $0xc90] sm:$0xff]
    %v898 = vld [vmem:[#allocation11 + $0xc98] sm:$0xff]
    %v899 = vld [vmem:[#allocation11 + $0xca0] sm:$0xff]
    %v900 = vld [vmem:[#allocation11 + $0xca8] sm:$0xff]
    %v901 = vld [vmem:[#allocation11 + $0xcb0] sm:$0xff]
    %v902 = vld [vmem:[#allocation11 + $0xcb8] sm:$0xff]
    %v903 = vld [vmem:[#allocation11 + $0xcc0] sm:$0xff]
    %v904 = vld [vmem:[#allocation11 + $0xcc8] sm:$0xff]
    %v905 = vld [vmem:[#allocation11 + $0xcd0] sm:$0xff]
    %v906 = vld [vmem:[#allocation11 + $0xcd8] sm:$0xff]
    %v907 = vld [vmem:[#allocation11 + $0xce0] sm:$0xff]
    %v908 = vld [vmem:[#allocation11 + $0xce8] sm:$0xff]
    %v909 = vld [vmem:[#allocation11 + $0xcf0] sm:$0xff]
    %v910 = vld [vmem:[#allocation11 + $0xcf8] sm:$0xff]
    %v911 = vld [vmem:[#allocation11 + $0xd00] sm:$0xff]
    %v912 = vld [vmem:[#allocation11 + $0xd08] sm:$0xff]
    %v913 = vld [vmem:[#allocation11 + $0xd10] sm:$0xff]
    %v914 = vld [vmem:[#allocation11 + $0xd18] sm:$0xff]
    %v915 = vld [vmem:[#allocation11 + $0xd20] sm:$0xff]
    %v916 = vld [vmem:[#allocation11 + $0xd28] sm:$0xff]
    %v917 = vld [vmem:[#allocation11 + $0xd30] sm:$0xff]
    %v918 = vld [vmem:[#allocation11 + $0xd38] sm:$0xff]
    %v919 = vld [vmem:[#allocation11 + $0xd40] sm:$0xff]
    %v920 = vld [vmem:[#allocation11 + $0xd48] sm:$0xff]
    %v921 = vld [vmem:[#allocation11 + $0xd50] sm:$0xff]
    %v922 = vld [vmem:[#allocation11 + $0xd58] sm:$0xff]
    %v923 = vld [vmem:[#allocation11 + $0xd60] sm:$0xff]
    %v924 = vld [vmem:[#allocation11 + $0xd68] sm:$0xff]
    %v925 = vld [vmem:[#allocation11 + $0xd70] sm:$0xff]
    %v926 = vld [vmem:[#allocation11 + $0xd78] sm:$0xff]
    %v927 = vld [vmem:[#allocation11 + $0xd80] sm:$0xff]
    %v928 = vld [vmem:[#allocation11 + $0xd88] sm:$0xff]
    %v929 = vld [vmem:[#allocation11 + $0xd90] sm:$0xff]
    %v930 = vld [vmem:[#allocation11 + $0xd98] sm:$0xff]
    %v931 = vld [vmem:[#allocation11 + $0xda0] sm:$0xff]
    %v932 = vld [vmem:[#allocation11 + $0xda8] sm:$0xff]
    %v933 = vld [vmem:[#allocation11 + $0xdb0] sm:$0xff]
    %v934 = vld [vmem:[#allocation11 + $0xdb8] sm:$0xff]
    %v935 = vld [vmem:[#allocation11 + $0xdc0] sm:$0xff]
    %v936 = vld [vmem:[#allocation11 + $0xdc8] sm:$0xff]
    %v937 = vld [vmem:[#allocation11 + $0xdd0] sm:$0xff]
    %v938 = vld [vmem:[#allocation11 + $0xdd8] sm:$0xff]
    %v939 = vld [vmem:[#allocation11 + $0xde0] sm:$0xff]
    %v940 = vld [vmem:[#allocation11 + $0xde8] sm:$0xff]
    %v941 = vld [vmem:[#allocation11 + $0xdf0] sm:$0xff]
    %v942 = vld [vmem:[#allocation11 + $0xdf8] sm:$0xff]
    %v943 = vld [vmem:[#allocation11 + $0xe00] sm:$0xff]
    %v944 = vld [vmem:[#allocation11 + $0xe08] sm:$0xff]
    %v945 = vld [vmem:[#allocation11 + $0xe10] sm:$0xff]
    %v946 = vld [vmem:[#allocation11 + $0xe18] sm:$0xff]
    %v947 = vld [vmem:[#allocation11 + $0xe20] sm:$0xff]
    %v948 = vld [vmem:[#allocation11 + $0xe28] sm:$0xff]
    %v949 = vld [vmem:[#allocation11 + $0xe30] sm:$0xff]
    %v950 = vld [vmem:[#allocation11 + $0xe38] sm:$0xff]
    %v951 = vld [vmem:[#allocation11 + $0xe40] sm:$0xff]
    %v952 = vld [vmem:[#allocation11 + $0xe48] sm:$0xff]
    %v953 = vld [vmem:[#allocation11 + $0xe50] sm:$0xff]
    %v954 = vld [vmem:[#allocation11 + $0xe58] sm:$0xff]
    %v955 = vld [vmem:[#allocation11 + $0xe60] sm:$0xff]
    %v956 = vld [vmem:[#allocation11 + $0xe68] sm:$0xff]
    %v957 = vld [vmem:[#allocation11 + $0xe70] sm:$0xff]
    %v958 = vld [vmem:[#allocation11 + $0xe78] sm:$0xff]
    %v959 = vld [vmem:[#allocation11 + $0xe80] sm:$0xff]
    %v960 = vld [vmem:[#allocation11 + $0xe88] sm:$0xff]
    %v961 = vld [vmem:[#allocation11 + $0xe90] sm:$0xff]
    %v962 = vld [vmem:[#allocation11 + $0xe98] sm:$0xff]
    %v963 = vld [vmem:[#allocation11 + $0xea0] sm:$0xff]
    %v964 = vld [vmem:[#allocation11 + $0xea8] sm:$0xff]
    %v965 = vld [vmem:[#allocation11 + $0xeb0] sm:$0xff]
    %v966 = vld [vmem:[#allocation11 + $0xeb8] sm:$0xff]
    %v967 = vld [vmem:[#allocation11 + $0xec0] sm:$0xff]
    %v968 = vld [vmem:[#allocation11 + $0xec8] sm:$0xff]
    %v969 = vld [vmem:[#allocation11 + $0xed0] sm:$0xff]
    %v970 = vld [vmem:[#allocation11 + $0xed8] sm:$0xff]
    %v971 = vld [vmem:[#allocation11 + $0xee0] sm:$0xff]
    %v972 = vld [vmem:[#allocation11 + $0xee8] sm:$0xff]
    %v973 = vld [vmem:[#allocation11 + $0xef0] sm:$0xff]
    %v974 = vld [vmem:[#allocation11 + $0xef8] sm:$0xff]
    %v975 = vld [vmem:[#allocation11 + $0xf00] sm:$0xff]
    %v976 = vld [vmem:[#allocation11 + $0xf08] sm:$0xff]
    %v977 = vld [vmem:[#allocation11 + $0xf10] sm:$0xff]
    %v978 = vld [vmem:[#allocation11 + $0xf18] sm:$0xff]
    %v979 = vld [vmem:[#allocation11 + $0xf20] sm:$0xff]
    %v980 = vld [vmem:[#allocation11 + $0xf28] sm:$0xff]
    %v981 = vld [vmem:[#allocation13] sm:$0xff]
    %v982 = vld [vmem:[#allocation13 + $0x8] sm:$0xf]
    %v983 = vpack.c.bf16 %v489, %v489
    %v984 = vpack.c.bf16 %v490, %v490
    %v985 = vpack.c.bf16 %v491, %v491
    %v986 = vpack.c.bf16 %v492, %v492
    %v987 = vpack.c.bf16 %v493, %v493
    %v988 = vpack.c.bf16 %v494, %v494
    %v991 = vlaneseq
    %v992 = vshrl.u32 %v991, 7
    %v993 = vsub.s32 0, %v992
    %v994 = vrot.slane %v981, %v993
    %v995 = vlaneseq
    %v996 = vshrl.u32 %v995, 7
    %v997 = vsub.s32 1, %v996
    %v998 = vrot.slane %v981, %v997
    %v999 = vlaneseq
    %v1000 = vshrl.u32 %v999, 7
    %v1001 = vsub.s32 2, %v1000
    %v1002 = vrot.slane %v981, %v1001
    %v1003 = vlaneseq
    %v1004 = vshrl.u32 %v1003, 7
    %v1005 = vsub.s32 3, %v1004
    %v1006 = vrot.slane %v981, %v1005
    %v1007 = vlaneseq
    %v1008 = vshrl.u32 %v1007, 7
    %v1009 = vsub.s32 4, %v1008
    %v1010 = vrot.slane %v981, %v1009
    %v1011 = vlaneseq
    %v1012 = vshrl.u32 %v1011, 7
    %v1013 = vsub.s32 5, %v1012
    %v1014 = vrot.slane %v981, %v1013
    %v1015 = vlaneseq
    %v1016 = vshrl.u32 %v1015, 7
    %v1017 = vsub.s32 6, %v1016
    %v1018 = vrot.slane %v981, %v1017
    %v1019 = vlaneseq
    %v1020 = vshrl.u32 %v1019, 7
    %v1021 = vsub.s32 7, %v1020
    %v1022 = vrot.slane %v981, %v1021
    %v1023 = vlaneseq
    %v1024 = vshrl.u32 %v1023, 7
    %v1025 = vsub.s32 0, %v1024
    %v1026 = vrot.slane %v982, %v1025
    %v1027 = vlaneseq
    %v1028 = vshrl.u32 %v1027, 7
    %v1029 = vsub.s32 1, %v1028
    %v1030 = vrot.slane %v982, %v1029
    %v1031 = vlaneseq
    %v1032 = vshrl.u32 %v1031, 7
    %v1033 = vsub.s32 2, %v1032
    %v1034 = vrot.slane %v982, %v1033
    %v1035 = vlaneseq
    %v1036 = vshrl.u32 %v1035, 7
    %v1037 = vsub.s32 3, %v1036
    %v1038 = vrot.slane %v982, %v1037
    %v1537 = vunpack.c.l.b16 %v495
    %v1538 = vunpack.c.h.b16 %v495
    %v1539 = vunpack.c.l.b16 %v496
    %v1540 = vunpack.c.h.b16 %v496
    %v1541 = vunpack.c.l.b16 %v497
    %v1542 = vunpack.c.h.b16 %v497
    %v1543 = vunpack.c.l.b16 %v498
    %v1544 = vunpack.c.h.b16 %v498
    %v1545 = vunpack.c.l.b16 %v499
    %v1546 = vunpack.c.h.b16 %v499
    %v1547 = vunpack.c.l.b16 %v500
    %v1548 = vunpack.c.h.b16 %v500
    %v1549 = vunpack.c.l.b16 %v501
    %v1550 = vunpack.c.h.b16 %v501
    %v1551 = vunpack.c.l.b16 %v502
    %v1552 = vunpack.c.h.b16 %v502
    %v1553 = vunpack.c.l.b16 %v503
    %v1554 = vunpack.c.h.b16 %v503
    %v1555 = vunpack.c.l.b16 %v504
    %v1556 = vunpack.c.h.b16 %v504
    %v1557 = vunpack.c.l.b16 %v505
    %v1558 = vunpack.c.h.b16 %v505
    %v1559 = vunpack.c.l.b16 %v506
    %v1560 = vunpack.c.h.b16 %v506
    %v1561 = vunpack.c.l.b16 %v507
    %v1562 = vunpack.c.h.b16 %v507
    %v1563 = vunpack.c.l.b16 %v508
    %v1564 = vunpack.c.h.b16 %v508
    %v1565 = vunpack.c.l.b16 %v509
    %v1566 = vunpack.c.h.b16 %v509
    %v1567 = vunpack.c.l.b16 %v510
    %v1568 = vunpack.c.h.b16 %v510
    %v1569 = vunpack.c.l.b16 %v511
    %v1570 = vunpack.c.h.b16 %v511
    %v1571 = vunpack.c.l.b16 %v512
    %v1572 = vunpack.c.h.b16 %v512
    %v1573 = vunpack.c.l.b16 %v513
    %v1574 = vunpack.c.h.b16 %v513
    %v1575 = vunpack.c.l.b16 %v514
    %v1576 = vunpack.c.h.b16 %v514
    %v1577 = vunpack.c.l.b16 %v515
    %v1578 = vunpack.c.h.b16 %v515
    %v1579 = vunpack.c.l.b16 %v516
    %v1580 = vunpack.c.h.b16 %v516
    %v1581 = vunpack.c.l.b16 %v517
    %v1582 = vunpack.c.h.b16 %v517
    %v1583 = vunpack.c.l.b16 %v518
    %v1584 = vunpack.c.h.b16 %v518
    %v1585 = vunpack.c.l.b16 %v519
    %v1586 = vunpack.c.h.b16 %v519
    %v1587 = vunpack.c.l.b16 %v520
    %v1588 = vunpack.c.h.b16 %v520
    %v1589 = vunpack.c.l.b16 %v521
    %v1590 = vunpack.c.h.b16 %v521
    %v1591 = vunpack.c.l.b16 %v522
    %v1592 = vunpack.c.h.b16 %v522
    %v1593 = vunpack.c.l.b16 %v523
    %v1594 = vunpack.c.h.b16 %v523
    %v1595 = vunpack.c.l.b16 %v524
    %v1596 = vunpack.c.h.b16 %v524
    %v1597 = vunpack.c.l.b16 %v525
    %v1598 = vunpack.c.h.b16 %v525
    %v1599 = vunpack.c.l.b16 %v526
    %v1600 = vunpack.c.h.b16 %v526
    %v1601 = vunpack.c.l.b16 %v527
    %v1602 = vunpack.c.h.b16 %v527
    %v1603 = vunpack.c.l.b16 %v528
    %v1604 = vunpack.c.h.b16 %v528
    %v1605 = vunpack.c.l.b16 %v529
    %v1606 = vunpack.c.h.b16 %v529
    %v1607 = vunpack.c.l.b16 %v530
    %v1608 = vunpack.c.h.b16 %v530
    %v1609 = vunpack.c.l.b16 %v531
    %v1610 = vunpack.c.h.b16 %v531
    %v1611 = vunpack.c.l.b16 %v532
    %v1612 = vunpack.c.h.b16 %v532
    %v1613 = vunpack.c.l.b16 %v533
    %v1614 = vunpack.c.h.b16 %v533
    %v1615 = vunpack.c.l.b16 %v534
    %v1616 = vunpack.c.h.b16 %v534
    %v1617 = vunpack.c.l.b16 %v535
    %v1618 = vunpack.c.h.b16 %v535
    %v1619 = vunpack.c.l.b16 %v536
    %v1620 = vunpack.c.h.b16 %v536
    %v1621 = vunpack.c.l.b16 %v537
    %v1622 = vunpack.c.h.b16 %v537
    %v1623 = vunpack.c.l.b16 %v538
    %v1624 = vunpack.c.h.b16 %v538
    %v1625 = vunpack.c.l.b16 %v539
    %v1626 = vunpack.c.h.b16 %v539
    %v1627 = vunpack.c.l.b16 %v540
    %v1628 = vunpack.c.h.b16 %v540
    %v1629 = vunpack.c.l.b16 %v541
    %v1630 = vunpack.c.h.b16 %v541
    %v1631 = vunpack.c.l.b16 %v542
    %v1632 = vunpack.c.h.b16 %v542
    %v1633 = vunpack.c.l.b16 %v543
    %v1634 = vunpack.c.h.b16 %v543
    %v1635 = vunpack.c.l.b16 %v544
    %v1636 = vunpack.c.h.b16 %v544
    %v1637 = vunpack.c.l.b16 %v545
    %v1638 = vunpack.c.h.b16 %v545
    %v1639 = vunpack.c.l.b16 %v546
    %v1640 = vunpack.c.h.b16 %v546
    %v1641 = vunpack.c.l.b16 %v547
    %v1642 = vunpack.c.h.b16 %v547
    %v1643 = vunpack.c.l.b16 %v548
    %v1644 = vunpack.c.h.b16 %v548
    %v1645 = vunpack.c.l.b16 %v549
    %v1646 = vunpack.c.h.b16 %v549
    %v1647 = vunpack.c.l.b16 %v550
    %v1648 = vunpack.c.h.b16 %v550
    %v1649 = vunpack.c.l.b16 %v551
    %v1650 = vunpack.c.h.b16 %v551
    %v1651 = vunpack.c.l.b16 %v552
    %v1652 = vunpack.c.h.b16 %v552
    %v1653 = vunpack.c.l.b16 %v553
    %v1654 = vunpack.c.h.b16 %v553
    %v1655 = vunpack.c.l.b16 %v554
    %v1656 = vunpack.c.h.b16 %v554
    %v1657 = vunpack.c.l.b16 %v555
    %v1658 = vunpack.c.h.b16 %v555
    %v1659 = vunpack.c.l.b16 %v556
    %v1660 = vunpack.c.h.b16 %v556
    %v1661 = vunpack.c.l.b16 %v557
    %v1662 = vunpack.c.h.b16 %v557
    %v1663 = vunpack.c.l.b16 %v558
    %v1664 = vunpack.c.h.b16 %v558
    %v1665 = vunpack.c.l.b16 %v559
    %v1666 = vunpack.c.h.b16 %v559
    %v1667 = vunpack.c.l.b16 %v560
    %v1668 = vunpack.c.h.b16 %v560
    %v1669 = vunpack.c.l.b16 %v561
    %v1670 = vunpack.c.h.b16 %v561
    %v1671 = vunpack.c.l.b16 %v562
    %v1672 = vunpack.c.h.b16 %v562
    %v1673 = vunpack.c.l.b16 %v563
    %v1674 = vunpack.c.h.b16 %v563
    %v1675 = vunpack.c.l.b16 %v564
    %v1676 = vunpack.c.h.b16 %v564
    %v1677 = vunpack.c.l.b16 %v565
    %v1678 = vunpack.c.h.b16 %v565
    %v1679 = vunpack.c.l.b16 %v566
    %v1680 = vunpack.c.h.b16 %v566
    %v1681 = vunpack.c.l.b16 %v567
    %v1682 = vunpack.c.h.b16 %v567
    %v1683 = vunpack.c.l.b16 %v568
    %v1684 = vunpack.c.h.b16 %v568
    %v1685 = vunpack.c.l.b16 %v569
    %v1686 = vunpack.c.h.b16 %v569
    %v1687 = vunpack.c.l.b16 %v570
    %v1688 = vunpack.c.h.b16 %v570
    %v1689 = vunpack.c.l.b16 %v571
    %v1690 = vunpack.c.h.b16 %v571
    %v1691 = vunpack.c.l.b16 %v572
    %v1692 = vunpack.c.h.b16 %v572
    %v1693 = vunpack.c.l.b16 %v573
    %v1694 = vunpack.c.h.b16 %v573
    %v1695 = vunpack.c.l.b16 %v574
    %v1696 = vunpack.c.h.b16 %v574
    %v1697 = vunpack.c.l.b16 %v575
    %v1698 = vunpack.c.h.b16 %v575
    %v1699 = vunpack.c.l.b16 %v576
    %v1700 = vunpack.c.h.b16 %v576
    %v1701 = vunpack.c.l.b16 %v577
    %v1702 = vunpack.c.h.b16 %v577
    %v1703 = vunpack.c.l.b16 %v578
    %v1704 = vunpack.c.h.b16 %v578
    %v1705 = vunpack.c.l.b16 %v579
    %v1706 = vunpack.c.h.b16 %v579
    %v1707 = vunpack.c.l.b16 %v580
    %v1708 = vunpack.c.h.b16 %v580
    %v1709 = vunpack.c.l.b16 %v581
    %v1710 = vunpack.c.h.b16 %v581
    %v1711 = vunpack.c.l.b16 %v582
    %v1712 = vunpack.c.h.b16 %v582
    %v1713 = vunpack.c.l.b16 %v583
    %v1714 = vunpack.c.h.b16 %v583
    %v1715 = vunpack.c.l.b16 %v584
    %v1716 = vunpack.c.h.b16 %v584
    %v1717 = vunpack.c.l.b16 %v585
    %v1718 = vunpack.c.h.b16 %v585
    %v1719 = vunpack.c.l.b16 %v586
    %v1720 = vunpack.c.h.b16 %v586
    %v1721 = vunpack.c.l.b16 %v587
    %v1722 = vunpack.c.h.b16 %v587
    %v1723 = vunpack.c.l.b16 %v588
    %v1724 = vunpack.c.h.b16 %v588
    %v1725 = vunpack.c.l.b16 %v589
    %v1726 = vunpack.c.h.b16 %v589
    %v1727 = vunpack.c.l.b16 %v590
    %v1728 = vunpack.c.h.b16 %v590
    %v1729 = vunpack.c.l.b16 %v591
    %v1730 = vunpack.c.h.b16 %v591
    %v1731 = vunpack.c.l.b16 %v592
    %v1732 = vunpack.c.h.b16 %v592
    %v1733 = vunpack.c.l.b16 %v593
    %v1734 = vunpack.c.h.b16 %v593
    %v1735 = vunpack.c.l.b16 %v594
    %v1736 = vunpack.c.h.b16 %v594
    %v1737 = vunpack.c.l.b16 %v595
    %v1738 = vunpack.c.h.b16 %v595
    %v1739 = vunpack.c.l.b16 %v596
    %v1740 = vunpack.c.h.b16 %v596
    %v1741 = vunpack.c.l.b16 %v597
    %v1742 = vunpack.c.h.b16 %v597
    %v1743 = vunpack.c.l.b16 %v598
    %v1744 = vunpack.c.h.b16 %v598
    %v1745 = vunpack.c.l.b16 %v599
    %v1746 = vunpack.c.h.b16 %v599
    %v1747 = vunpack.c.l.b16 %v600
    %v1748 = vunpack.c.h.b16 %v600
    %v1749 = vunpack.c.l.b16 %v601
    %v1750 = vunpack.c.h.b16 %v601
    %v1751 = vunpack.c.l.b16 %v602
    %v1752 = vunpack.c.h.b16 %v602
    %v1753 = vunpack.c.l.b16 %v603
    %v1754 = vunpack.c.h.b16 %v603
    %v1755 = vunpack.c.l.b16 %v604
    %v1756 = vunpack.c.h.b16 %v604
    %v1757 = vunpack.c.l.b16 %v605
    %v1758 = vunpack.c.h.b16 %v605
    %v1759 = vunpack.c.l.b16 %v606
    %v1760 = vunpack.c.h.b16 %v606
    %v1761 = vunpack.c.l.b16 %v607
    %v1762 = vunpack.c.h.b16 %v607
    %v1763 = vunpack.c.l.b16 %v608
    %v1764 = vunpack.c.h.b16 %v608
    %v1765 = vunpack.c.l.b16 %v609
    %v1766 = vunpack.c.h.b16 %v609
    %v1767 = vunpack.c.l.b16 %v610
    %v1768 = vunpack.c.h.b16 %v610
    %v1769 = vunpack.c.l.b16 %v611
    %v1770 = vunpack.c.h.b16 %v611
    %v1771 = vunpack.c.l.b16 %v612
    %v1772 = vunpack.c.h.b16 %v612
    %v1773 = vunpack.c.l.b16 %v613
    %v1774 = vunpack.c.h.b16 %v613
    %v1775 = vunpack.c.l.b16 %v614
    %v1776 = vunpack.c.h.b16 %v614
    %v1777 = vunpack.c.l.b16 %v615
    %v1778 = vunpack.c.h.b16 %v615
    %v1779 = vunpack.c.l.b16 %v616
    %v1780 = vunpack.c.h.b16 %v616
    %v1781 = vunpack.c.l.b16 %v617
    %v1782 = vunpack.c.h.b16 %v617
    %v1783 = vunpack.c.l.b16 %v618
    %v1784 = vunpack.c.h.b16 %v618
    %v1785 = vunpack.c.l.b16 %v619
    %v1786 = vunpack.c.h.b16 %v619
    %v1787 = vunpack.c.l.b16 %v620
    %v1788 = vunpack.c.h.b16 %v620
    %v1789 = vunpack.c.l.b16 %v621
    %v1790 = vunpack.c.h.b16 %v621
    %v1791 = vunpack.c.l.b16 %v622
    %v1792 = vunpack.c.h.b16 %v622
    %v1793 = vunpack.c.l.b16 %v623
    %v1794 = vunpack.c.h.b16 %v623
    %v1795 = vunpack.c.l.b16 %v624
    %v1796 = vunpack.c.h.b16 %v624
    %v1797 = vunpack.c.l.b16 %v625
    %v1798 = vunpack.c.h.b16 %v625
    %v1799 = vunpack.c.l.b16 %v626
    %v1800 = vunpack.c.h.b16 %v626
    %v1801 = vunpack.c.l.b16 %v627
    %v1802 = vunpack.c.h.b16 %v627
    %v1803 = vunpack.c.l.b16 %v628
    %v1804 = vunpack.c.h.b16 %v628
    %v1805 = vunpack.c.l.b16 %v629
    %v1806 = vunpack.c.h.b16 %v629
    %v1807 = vunpack.c.l.b16 %v630
    %v1808 = vunpack.c.h.b16 %v630
    %v1809 = vunpack.c.l.b16 %v631
    %v1810 = vunpack.c.h.b16 %v631
    %v1811 = vunpack.c.l.b16 %v632
    %v1812 = vunpack.c.h.b16 %v632
    %v1813 = vunpack.c.l.b16 %v633
    %v1814 = vunpack.c.h.b16 %v633
    %v1815 = vunpack.c.l.b16 %v634
    %v1816 = vunpack.c.h.b16 %v634
    %v1817 = vunpack.c.l.b16 %v635
    %v1818 = vunpack.c.h.b16 %v635
    %v1819 = vunpack.c.l.b16 %v636
    %v1820 = vunpack.c.h.b16 %v636
    %v1821 = vunpack.c.l.b16 %v637
    %v1822 = vunpack.c.h.b16 %v637
    %v1823 = vunpack.c.l.b16 %v638
    %v1824 = vunpack.c.h.b16 %v638
    %v1825 = vunpack.c.l.b16 %v639
    %v1826 = vunpack.c.h.b16 %v639
    %v1827 = vunpack.c.l.b16 %v640
    %v1828 = vunpack.c.h.b16 %v640
    %v1829 = vunpack.c.l.b16 %v641
    %v1830 = vunpack.c.h.b16 %v641
    %v1831 = vunpack.c.l.b16 %v642
    %v1832 = vunpack.c.h.b16 %v642
    %v1833 = vunpack.c.l.b16 %v643
    %v1834 = vunpack.c.h.b16 %v643
    %v1835 = vunpack.c.l.b16 %v644
    %v1836 = vunpack.c.h.b16 %v644
    %v1837 = vunpack.c.l.b16 %v645
    %v1838 = vunpack.c.h.b16 %v645
    %v1839 = vunpack.c.l.b16 %v646
    %v1840 = vunpack.c.h.b16 %v646
    %v1841 = vunpack.c.l.b16 %v647
    %v1842 = vunpack.c.h.b16 %v647
    %v1843 = vunpack.c.l.b16 %v648
    %v1844 = vunpack.c.h.b16 %v648
    %v1845 = vunpack.c.l.b16 %v649
    %v1846 = vunpack.c.h.b16 %v649
    %v1847 = vunpack.c.l.b16 %v650
    %v1848 = vunpack.c.h.b16 %v650
    %v1849 = vunpack.c.l.b16 %v651
    %v1850 = vunpack.c.h.b16 %v651
    %v1851 = vunpack.c.l.b16 %v652
    %v1852 = vunpack.c.h.b16 %v652
    %v1853 = vunpack.c.l.b16 %v653
    %v1854 = vunpack.c.h.b16 %v653
    %v1855 = vunpack.c.l.b16 %v654
    %v1856 = vunpack.c.h.b16 %v654
    %v1857 = vunpack.c.l.b16 %v655
    %v1858 = vunpack.c.h.b16 %v655
    %v1859 = vunpack.c.l.b16 %v656
    %v1860 = vunpack.c.h.b16 %v656
    %v1861 = vunpack.c.l.b16 %v657
    %v1862 = vunpack.c.h.b16 %v657
    %v1863 = vunpack.c.l.b16 %v658
    %v1864 = vunpack.c.h.b16 %v658
    %v1865 = vunpack.c.l.b16 %v659
    %v1866 = vunpack.c.h.b16 %v659
    %v1867 = vunpack.c.l.b16 %v660
    %v1868 = vunpack.c.h.b16 %v660
    %v1869 = vunpack.c.l.b16 %v661
    %v1870 = vunpack.c.h.b16 %v661
    %v1871 = vunpack.c.l.b16 %v662
    %v1872 = vunpack.c.h.b16 %v662
    %v1873 = vunpack.c.l.b16 %v663
    %v1874 = vunpack.c.h.b16 %v663
    %v1875 = vunpack.c.l.b16 %v664
    %v1876 = vunpack.c.h.b16 %v664
    %v1877 = vunpack.c.l.b16 %v665
    %v1878 = vunpack.c.h.b16 %v665
    %v1879 = vunpack.c.l.b16 %v666
    %v1880 = vunpack.c.h.b16 %v666
    %v1881 = vunpack.c.l.b16 %v667
    %v1882 = vunpack.c.h.b16 %v667
    %v1883 = vunpack.c.l.b16 %v668
    %v1884 = vunpack.c.h.b16 %v668
    %v1885 = vunpack.c.l.b16 %v669
    %v1886 = vunpack.c.h.b16 %v669
    %v1887 = vunpack.c.l.b16 %v670
    %v1888 = vunpack.c.h.b16 %v670
    %v1889 = vunpack.c.l.b16 %v671
    %v1890 = vunpack.c.h.b16 %v671
    %v1891 = vunpack.c.l.b16 %v672
    %v1892 = vunpack.c.h.b16 %v672
    %v1893 = vunpack.c.l.b16 %v673
    %v1894 = vunpack.c.h.b16 %v673
    %v1895 = vunpack.c.l.b16 %v674
    %v1896 = vunpack.c.h.b16 %v674
    %v1897 = vunpack.c.l.b16 %v675
    %v1898 = vunpack.c.h.b16 %v675
    %v1899 = vunpack.c.l.b16 %v676
    %v1900 = vunpack.c.h.b16 %v676
    %v1901 = vunpack.c.l.b16 %v677
    %v1902 = vunpack.c.h.b16 %v677
    %v1903 = vunpack.c.l.b16 %v678
    %v1904 = vunpack.c.h.b16 %v678
    %v1905 = vunpack.c.l.b16 %v679
    %v1906 = vunpack.c.h.b16 %v679
    %v1907 = vunpack.c.l.b16 %v680
    %v1908 = vunpack.c.h.b16 %v680
    %v1909 = vunpack.c.l.b16 %v681
    %v1910 = vunpack.c.h.b16 %v681
    %v1911 = vunpack.c.l.b16 %v682
    %v1912 = vunpack.c.h.b16 %v682
    %v1913 = vunpack.c.l.b16 %v683
    %v1914 = vunpack.c.h.b16 %v683
    %v1915 = vunpack.c.l.b16 %v684
    %v1916 = vunpack.c.h.b16 %v684
    %v1917 = vunpack.c.l.b16 %v685
    %v1918 = vunpack.c.h.b16 %v685
    %v1919 = vunpack.c.l.b16 %v686
    %v1920 = vunpack.c.h.b16 %v686
    %v1921 = vunpack.c.l.b16 %v687
    %v1922 = vunpack.c.h.b16 %v687
    %v1923 = vunpack.c.l.b16 %v688
    %v1924 = vunpack.c.h.b16 %v688
    %v1925 = vunpack.c.l.b16 %v689
    %v1926 = vunpack.c.h.b16 %v689
    %v1927 = vunpack.c.l.b16 %v690
    %v1928 = vunpack.c.h.b16 %v690
    %v1929 = vunpack.c.l.b16 %v691
    %v1930 = vunpack.c.h.b16 %v691
    %v1931 = vunpack.c.l.b16 %v692
    %v1932 = vunpack.c.h.b16 %v692
    %v1933 = vunpack.c.l.b16 %v693
    %v1934 = vunpack.c.h.b16 %v693
    %v1935 = vunpack.c.l.b16 %v694
    %v1936 = vunpack.c.h.b16 %v694
    %v1937 = vunpack.c.l.b16 %v695
    %v1938 = vunpack.c.h.b16 %v695
    %v1939 = vunpack.c.l.b16 %v696
    %v1940 = vunpack.c.h.b16 %v696
    %v1941 = vunpack.c.l.b16 %v697
    %v1942 = vunpack.c.h.b16 %v697
    %v1943 = vunpack.c.l.b16 %v698
    %v1944 = vunpack.c.h.b16 %v698
    %v1945 = vunpack.c.l.b16 %v699
    %v1946 = vunpack.c.h.b16 %v699
    %v1947 = vunpack.c.l.b16 %v700
    %v1948 = vunpack.c.h.b16 %v700
    %v1949 = vunpack.c.l.b16 %v701
    %v1950 = vunpack.c.h.b16 %v701
    %v1951 = vunpack.c.l.b16 %v702
    %v1952 = vunpack.c.h.b16 %v702
    %v1953 = vunpack.c.l.b16 %v703
    %v1954 = vunpack.c.h.b16 %v703
    %v1955 = vunpack.c.l.b16 %v704
    %v1956 = vunpack.c.h.b16 %v704
    %v1957 = vunpack.c.l.b16 %v705
    %v1958 = vunpack.c.h.b16 %v705
    %v1959 = vunpack.c.l.b16 %v706
    %v1960 = vunpack.c.h.b16 %v706
    %v1961 = vunpack.c.l.b16 %v707
    %v1962 = vunpack.c.h.b16 %v707
    %v1963 = vunpack.c.l.b16 %v708
    %v1964 = vunpack.c.h.b16 %v708
    %v1965 = vunpack.c.l.b16 %v709
    %v1966 = vunpack.c.h.b16 %v709
    %v1967 = vunpack.c.l.b16 %v710
    %v1968 = vunpack.c.h.b16 %v710
    %v1969 = vunpack.c.l.b16 %v711
    %v1970 = vunpack.c.h.b16 %v711
    %v1971 = vunpack.c.l.b16 %v712
    %v1972 = vunpack.c.h.b16 %v712
    %v1973 = vunpack.c.l.b16 %v713
    %v1974 = vunpack.c.h.b16 %v713
    %v1975 = vunpack.c.l.b16 %v714
    %v1976 = vunpack.c.h.b16 %v714
    %v1977 = vunpack.c.l.b16 %v715
    %v1978 = vunpack.c.h.b16 %v715
    %v1979 = vunpack.c.l.b16 %v716
    %v1980 = vunpack.c.h.b16 %v716
    %v1981 = vunpack.c.l.b16 %v717
    %v1982 = vunpack.c.h.b16 %v717
    %v1983 = vunpack.c.l.b16 %v718
    %v1984 = vunpack.c.h.b16 %v718
    %v1985 = vunpack.c.l.b16 %v719
    %v1986 = vunpack.c.h.b16 %v719
    %v1987 = vunpack.c.l.b16 %v720
    %v1988 = vunpack.c.h.b16 %v720
    %v1989 = vunpack.c.l.b16 %v721
    %v1990 = vunpack.c.h.b16 %v721
    %v1991 = vunpack.c.l.b16 %v722
    %v1992 = vunpack.c.h.b16 %v722
    %v1993 = vunpack.c.l.b16 %v723
    %v1994 = vunpack.c.h.b16 %v723
    %v1995 = vunpack.c.l.b16 %v724
    %v1996 = vunpack.c.h.b16 %v724
    %v1997 = vunpack.c.l.b16 %v725
    %v1998 = vunpack.c.h.b16 %v725
    %v1999 = vunpack.c.l.b16 %v726
    %v2000 = vunpack.c.h.b16 %v726
    %v2001 = vunpack.c.l.b16 %v727
    %v2002 = vunpack.c.h.b16 %v727
    %v2003 = vunpack.c.l.b16 %v728
    %v2004 = vunpack.c.h.b16 %v728
    %v2005 = vunpack.c.l.b16 %v729
    %v2006 = vunpack.c.h.b16 %v729
    %v2007 = vunpack.c.l.b16 %v730
    %v2008 = vunpack.c.h.b16 %v730
    %v2009 = vunpack.c.l.b16 %v731
    %v2010 = vunpack.c.h.b16 %v731
    %v2011 = vunpack.c.l.b16 %v732
    %v2012 = vunpack.c.h.b16 %v732
    %v2013 = vunpack.c.l.b16 %v733
    %v2014 = vunpack.c.h.b16 %v733
    %v2015 = vunpack.c.l.b16 %v734
    %v2016 = vunpack.c.h.b16 %v734
    %v2017 = vunpack.c.l.b16 %v735
    %v2018 = vunpack.c.h.b16 %v735
    %v2019 = vunpack.c.l.b16 %v736
    %v2020 = vunpack.c.h.b16 %v736
    %v2021 = vunpack.c.l.b16 %v737
    %v2022 = vunpack.c.h.b16 %v737
    %v2023 = vunpack.c.l.b16 %v738
    %v2024 = vunpack.c.h.b16 %v738
    %v2025 = vunpack.c.l.b16 %v739
    %v2026 = vunpack.c.h.b16 %v739
    %v2027 = vunpack.c.l.b16 %v740
    %v2028 = vunpack.c.h.b16 %v740
    %v2029 = vunpack.c.l.b16 %v741
    %v2030 = vunpack.c.h.b16 %v741
    %v2031 = vunpack.c.l.b16 %v742
    %v2032 = vunpack.c.h.b16 %v742
    %v2033 = vunpack.c.l.b16 %v743
    %v2034 = vunpack.c.h.b16 %v743
    %v2035 = vunpack.c.l.b16 %v744
    %v2036 = vunpack.c.h.b16 %v744
    %v2037 = vunpack.c.l.b16 %v745
    %v2038 = vunpack.c.h.b16 %v745
    %v2039 = vunpack.c.l.b16 %v746
    %v2040 = vunpack.c.h.b16 %v746
    %v2041 = vunpack.c.l.b16 %v747
    %v2042 = vunpack.c.h.b16 %v747
    %v2043 = vunpack.c.l.b16 %v748
    %v2044 = vunpack.c.h.b16 %v748
    %v2045 = vunpack.c.l.b16 %v749
    %v2046 = vunpack.c.h.b16 %v749
    %v2047 = vunpack.c.l.b16 %v750
    %v2048 = vunpack.c.h.b16 %v750
    %v2049 = vunpack.c.l.b16 %v751
    %v2050 = vunpack.c.h.b16 %v751
    %v2051 = vunpack.c.l.b16 %v752
    %v2052 = vunpack.c.h.b16 %v752
    %v2053 = vunpack.c.l.b16 %v753
    %v2054 = vunpack.c.h.b16 %v753
    %v2055 = vunpack.c.l.b16 %v754
    %v2056 = vunpack.c.h.b16 %v754
    %v2057 = vunpack.c.l.b16 %v755
    %v2058 = vunpack.c.h.b16 %v755
    %v2059 = vunpack.c.l.b16 %v756
    %v2060 = vunpack.c.h.b16 %v756
    %v2061 = vunpack.c.l.b16 %v757
    %v2062 = vunpack.c.h.b16 %v757
    %v2063 = vunpack.c.l.b16 %v758
    %v2064 = vunpack.c.h.b16 %v758
    %v2065 = vunpack.c.l.b16 %v759
    %v2066 = vunpack.c.h.b16 %v759
    %v2067 = vunpack.c.l.b16 %v760
    %v2068 = vunpack.c.h.b16 %v760
    %v2069 = vunpack.c.l.b16 %v761
    %v2070 = vunpack.c.h.b16 %v761
    %v2071 = vunpack.c.l.b16 %v762
    %v2072 = vunpack.c.h.b16 %v762
    %v2073 = vunpack.c.l.b16 %v763
    %v2074 = vunpack.c.h.b16 %v763
    %v2075 = vunpack.c.l.b16 %v764
    %v2076 = vunpack.c.h.b16 %v764
    %v2077 = vunpack.c.l.b16 %v765
    %v2078 = vunpack.c.h.b16 %v765
    %v2079 = vunpack.c.l.b16 %v766
    %v2080 = vunpack.c.h.b16 %v766
    %v2081 = vunpack.c.l.b16 %v767
    %v2082 = vunpack.c.h.b16 %v767
    %v2083 = vunpack.c.l.b16 %v768
    %v2084 = vunpack.c.h.b16 %v768
    %v2085 = vunpack.c.l.b16 %v769
    %v2086 = vunpack.c.h.b16 %v769
    %v2087 = vunpack.c.l.b16 %v770
    %v2088 = vunpack.c.h.b16 %v770
    %v2089 = vunpack.c.l.b16 %v771
    %v2090 = vunpack.c.h.b16 %v771
    %v2091 = vunpack.c.l.b16 %v772
    %v2092 = vunpack.c.h.b16 %v772
    %v2093 = vunpack.c.l.b16 %v773
    %v2094 = vunpack.c.h.b16 %v773
    %v2095 = vunpack.c.l.b16 %v774
    %v2096 = vunpack.c.h.b16 %v774
    %v2097 = vunpack.c.l.b16 %v775
    %v2098 = vunpack.c.h.b16 %v775
    %v2099 = vunpack.c.l.b16 %v776
    %v2100 = vunpack.c.h.b16 %v776
    %v2101 = vunpack.c.l.b16 %v777
    %v2102 = vunpack.c.h.b16 %v777
    %v2103 = vunpack.c.l.b16 %v778
    %v2104 = vunpack.c.h.b16 %v778
    %v2105 = vunpack.c.l.b16 %v779
    %v2106 = vunpack.c.h.b16 %v779
    %v2107 = vunpack.c.l.b16 %v780
    %v2108 = vunpack.c.h.b16 %v780
    %v2109 = vunpack.c.l.b16 %v781
    %v2110 = vunpack.c.h.b16 %v781
    %v2111 = vunpack.c.l.b16 %v782
    %v2112 = vunpack.c.h.b16 %v782
    %v2113 = vunpack.c.l.b16 %v783
    %v2114 = vunpack.c.h.b16 %v783
    %v2115 = vunpack.c.l.b16 %v784
    %v2116 = vunpack.c.h.b16 %v784
    %v2117 = vunpack.c.l.b16 %v785
    %v2118 = vunpack.c.h.b16 %v785
    %v2119 = vunpack.c.l.b16 %v786
    %v2120 = vunpack.c.h.b16 %v786
    %v2121 = vunpack.c.l.b16 %v787
    %v2122 = vunpack.c.h.b16 %v787
    %v2123 = vunpack.c.l.b16 %v788
    %v2124 = vunpack.c.h.b16 %v788
    %v2125 = vunpack.c.l.b16 %v789
    %v2126 = vunpack.c.h.b16 %v789
    %v2127 = vunpack.c.l.b16 %v790
    %v2128 = vunpack.c.h.b16 %v790
    %v2129 = vunpack.c.l.b16 %v791
    %v2130 = vunpack.c.h.b16 %v791
    %v2131 = vunpack.c.l.b16 %v792
    %v2132 = vunpack.c.h.b16 %v792
    %v2133 = vunpack.c.l.b16 %v793
    %v2134 = vunpack.c.h.b16 %v793
    %v2135 = vunpack.c.l.b16 %v794
    %v2136 = vunpack.c.h.b16 %v794
    %v2137 = vunpack.c.l.b16 %v795
    %v2138 = vunpack.c.h.b16 %v795
    %v2139 = vunpack.c.l.b16 %v796
    %v2140 = vunpack.c.h.b16 %v796
    %v2141 = vunpack.c.l.b16 %v797
    %v2142 = vunpack.c.h.b16 %v797
    %v2143 = vunpack.c.l.b16 %v798
    %v2144 = vunpack.c.h.b16 %v798
    %v2145 = vunpack.c.l.b16 %v799
    %v2146 = vunpack.c.h.b16 %v799
    %v2147 = vunpack.c.l.b16 %v800
    %v2148 = vunpack.c.h.b16 %v800
    %v2149 = vunpack.c.l.b16 %v801
    %v2150 = vunpack.c.h.b16 %v801
    %v2151 = vunpack.c.l.b16 %v802
    %v2152 = vunpack.c.h.b16 %v802
    %v2153 = vunpack.c.l.b16 %v803
    %v2154 = vunpack.c.h.b16 %v803
    %v2155 = vunpack.c.l.b16 %v804
    %v2156 = vunpack.c.h.b16 %v804
    %v2157 = vunpack.c.l.b16 %v805
    %v2158 = vunpack.c.h.b16 %v805
    %v2159 = vunpack.c.l.b16 %v806
    %v2160 = vunpack.c.h.b16 %v806
    %v2161 = vunpack.c.l.b16 %v807
    %v2162 = vunpack.c.h.b16 %v807
    %v2163 = vunpack.c.l.b16 %v808
    %v2164 = vunpack.c.h.b16 %v808
    %v2165 = vunpack.c.l.b16 %v809
    %v2166 = vunpack.c.h.b16 %v809
    %v2167 = vunpack.c.l.b16 %v810
    %v2168 = vunpack.c.h.b16 %v810
    %v2169 = vunpack.c.l.b16 %v811
    %v2170 = vunpack.c.h.b16 %v811
    %v2171 = vunpack.c.l.b16 %v812
    %v2172 = vunpack.c.h.b16 %v812
    %v2173 = vunpack.c.l.b16 %v813
    %v2174 = vunpack.c.h.b16 %v813
    %v2175 = vunpack.c.l.b16 %v814
    %v2176 = vunpack.c.h.b16 %v814
    %v2177 = vunpack.c.l.b16 %v815
    %v2178 = vunpack.c.h.b16 %v815
    %v2179 = vunpack.c.l.b16 %v816
    %v2180 = vunpack.c.h.b16 %v816
    %v2181 = vunpack.c.l.b16 %v817
    %v2182 = vunpack.c.h.b16 %v817
    %v2183 = vunpack.c.l.b16 %v818
    %v2184 = vunpack.c.h.b16 %v818
    %v2185 = vunpack.c.l.b16 %v819
    %v2186 = vunpack.c.h.b16 %v819
    %v2187 = vunpack.c.l.b16 %v820
    %v2188 = vunpack.c.h.b16 %v820
    %v2189 = vunpack.c.l.b16 %v821
    %v2190 = vunpack.c.h.b16 %v821
    %v2191 = vunpack.c.l.b16 %v822
    %v2192 = vunpack.c.h.b16 %v822
    %v2193 = vunpack.c.l.b16 %v823
    %v2194 = vunpack.c.h.b16 %v823
    %v2195 = vunpack.c.l.b16 %v824
    %v2196 = vunpack.c.h.b16 %v824
    %v2197 = vunpack.c.l.b16 %v825
    %v2198 = vunpack.c.h.b16 %v825
    %v2199 = vunpack.c.l.b16 %v826
    %v2200 = vunpack.c.h.b16 %v826
    %v2201 = vunpack.c.l.b16 %v827
    %v2202 = vunpack.c.h.b16 %v827
    %v2203 = vunpack.c.l.b16 %v828
    %v2204 = vunpack.c.h.b16 %v828
    %v2205 = vunpack.c.l.b16 %v829
    %v2206 = vunpack.c.h.b16 %v829
    %v2207 = vunpack.c.l.b16 %v830
    %v2208 = vunpack.c.h.b16 %v830
    %v2209 = vunpack.c.l.b16 %v831
    %v2210 = vunpack.c.h.b16 %v831
    %v2211 = vunpack.c.l.b16 %v832
    %v2212 = vunpack.c.h.b16 %v832
    %v2213 = vunpack.c.l.b16 %v833
    %v2214 = vunpack.c.h.b16 %v833
    %v2215 = vunpack.c.l.b16 %v834
    %v2216 = vunpack.c.h.b16 %v834
    %v2217 = vunpack.c.l.b16 %v835
    %v2218 = vunpack.c.h.b16 %v835
    %v2219 = vunpack.c.l.b16 %v836
    %v2220 = vunpack.c.h.b16 %v836
    %v2221 = vunpack.c.l.b16 %v837
    %v2222 = vunpack.c.h.b16 %v837
    %v2223 = vunpack.c.l.b16 %v838
    %v2224 = vunpack.c.h.b16 %v838
    %v2225 = vunpack.c.l.b16 %v839
    %v2226 = vunpack.c.h.b16 %v839
    %v2227 = vunpack.c.l.b16 %v840
    %v2228 = vunpack.c.h.b16 %v840
    %v2229 = vunpack.c.l.b16 %v841
    %v2230 = vunpack.c.h.b16 %v841
    %v2231 = vunpack.c.l.b16 %v842
    %v2232 = vunpack.c.h.b16 %v842
    %v2233 = vunpack.c.l.b16 %v843
    %v2234 = vunpack.c.h.b16 %v843
    %v2235 = vunpack.c.l.b16 %v844
    %v2236 = vunpack.c.h.b16 %v844
    %v2237 = vunpack.c.l.b16 %v845
    %v2238 = vunpack.c.h.b16 %v845
    %v2239 = vunpack.c.l.b16 %v846
    %v2240 = vunpack.c.h.b16 %v846
    %v2241 = vunpack.c.l.b16 %v847
    %v2242 = vunpack.c.h.b16 %v847
    %v2243 = vunpack.c.l.b16 %v848
    %v2244 = vunpack.c.h.b16 %v848
    %v2245 = vunpack.c.l.b16 %v849
    %v2246 = vunpack.c.h.b16 %v849
    %v2247 = vunpack.c.l.b16 %v850
    %v2248 = vunpack.c.h.b16 %v850
    %v2249 = vunpack.c.l.b16 %v851
    %v2250 = vunpack.c.h.b16 %v851
    %v2251 = vunpack.c.l.b16 %v852
    %v2252 = vunpack.c.h.b16 %v852
    %v2253 = vunpack.c.l.b16 %v853
    %v2254 = vunpack.c.h.b16 %v853
    %v2255 = vunpack.c.l.b16 %v854
    %v2256 = vunpack.c.h.b16 %v854
    %v2257 = vunpack.c.l.b16 %v855
    %v2258 = vunpack.c.h.b16 %v855
    %v2259 = vunpack.c.l.b16 %v856
    %v2260 = vunpack.c.h.b16 %v856
    %v2261 = vunpack.c.l.b16 %v857
    %v2262 = vunpack.c.h.b16 %v857
    %v2263 = vunpack.c.l.b16 %v858
    %v2264 = vunpack.c.h.b16 %v858
    %v2265 = vunpack.c.l.b16 %v859
    %v2266 = vunpack.c.h.b16 %v859
    %v2267 = vunpack.c.l.b16 %v860
    %v2268 = vunpack.c.h.b16 %v860
    %v2269 = vunpack.c.l.b16 %v861
    %v2270 = vunpack.c.h.b16 %v861
    %v2271 = vunpack.c.l.b16 %v862
    %v2272 = vunpack.c.h.b16 %v862
    %v2273 = vunpack.c.l.b16 %v863
    %v2274 = vunpack.c.h.b16 %v863
    %v2275 = vunpack.c.l.b16 %v864
    %v2276 = vunpack.c.h.b16 %v864
    %v2277 = vunpack.c.l.b16 %v865
    %v2278 = vunpack.c.h.b16 %v865
    %v2279 = vunpack.c.l.b16 %v866
    %v2280 = vunpack.c.h.b16 %v866
    %v2281 = vunpack.c.l.b16 %v867
    %v2282 = vunpack.c.h.b16 %v867
    %v2283 = vunpack.c.l.b16 %v868
    %v2284 = vunpack.c.h.b16 %v868
    %v2285 = vunpack.c.l.b16 %v869
    %v2286 = vunpack.c.h.b16 %v869
    %v2287 = vunpack.c.l.b16 %v870
    %v2288 = vunpack.c.h.b16 %v870
    %v2289 = vunpack.c.l.b16 %v871
    %v2290 = vunpack.c.h.b16 %v871
    %v2291 = vunpack.c.l.b16 %v872
    %v2292 = vunpack.c.h.b16 %v872
    %v2293 = vunpack.c.l.b16 %v873
    %v2294 = vunpack.c.h.b16 %v873
    %v2295 = vunpack.c.l.b16 %v874
    %v2296 = vunpack.c.h.b16 %v874
    %v2297 = vunpack.c.l.b16 %v875
    %v2298 = vunpack.c.h.b16 %v875
    %v2299 = vunpack.c.l.b16 %v876
    %v2300 = vunpack.c.h.b16 %v876
    %v2301 = vunpack.c.l.b16 %v877
    %v2302 = vunpack.c.h.b16 %v877
    %v2303 = vunpack.c.l.b16 %v878
    %v2304 = vunpack.c.h.b16 %v878
    %v2305 = vunpack.c.l.b16 %v879
    %v2306 = vunpack.c.h.b16 %v879
    %v2307 = vunpack.c.l.b16 %v880
    %v2308 = vunpack.c.h.b16 %v880
    %v2309 = vunpack.c.l.b16 %v881
    %v2310 = vunpack.c.h.b16 %v881
    %v2311 = vunpack.c.l.b16 %v882
    %v2312 = vunpack.c.h.b16 %v882
    %v2313 = vunpack.c.l.b16 %v883
    %v2314 = vunpack.c.h.b16 %v883
    %v2315 = vunpack.c.l.b16 %v884
    %v2316 = vunpack.c.h.b16 %v884
    %v2317 = vunpack.c.l.b16 %v885
    %v2318 = vunpack.c.h.b16 %v885
    %v2319 = vunpack.c.l.b16 %v886
    %v2320 = vunpack.c.h.b16 %v886
    %v2321 = vunpack.c.l.b16 %v887
    %v2322 = vunpack.c.h.b16 %v887
    %v2323 = vunpack.c.l.b16 %v888
    %v2324 = vunpack.c.h.b16 %v888
    %v2325 = vunpack.c.l.b16 %v889
    %v2326 = vunpack.c.h.b16 %v889
    %v2327 = vunpack.c.l.b16 %v890
    %v2328 = vunpack.c.h.b16 %v890
    %v2329 = vunpack.c.l.b16 %v891
    %v2330 = vunpack.c.h.b16 %v891
    %v2331 = vunpack.c.l.b16 %v892
    %v2332 = vunpack.c.h.b16 %v892
    %v2333 = vunpack.c.l.b16 %v893
    %v2334 = vunpack.c.h.b16 %v893
    %v2335 = vunpack.c.l.b16 %v894
    %v2336 = vunpack.c.h.b16 %v894
    %v2337 = vunpack.c.l.b16 %v895
    %v2338 = vunpack.c.h.b16 %v895
    %v2339 = vunpack.c.l.b16 %v896
    %v2340 = vunpack.c.h.b16 %v896
    %v2341 = vunpack.c.l.b16 %v897
    %v2342 = vunpack.c.h.b16 %v897
    %v2343 = vunpack.c.l.b16 %v898
    %v2344 = vunpack.c.h.b16 %v898
    %v2345 = vunpack.c.l.b16 %v899
    %v2346 = vunpack.c.h.b16 %v899
    %v2347 = vunpack.c.l.b16 %v900
    %v2348 = vunpack.c.h.b16 %v900
    %v2349 = vunpack.c.l.b16 %v901
    %v2350 = vunpack.c.h.b16 %v901
    %v2351 = vunpack.c.l.b16 %v902
    %v2352 = vunpack.c.h.b16 %v902
    %v2353 = vunpack.c.l.b16 %v903
    %v2354 = vunpack.c.h.b16 %v903
    %v2355 = vunpack.c.l.b16 %v904
    %v2356 = vunpack.c.h.b16 %v904
    %v2357 = vunpack.c.l.b16 %v905
    %v2358 = vunpack.c.h.b16 %v905
    %v2359 = vunpack.c.l.b16 %v906
    %v2360 = vunpack.c.h.b16 %v906
    %v2361 = vunpack.c.l.b16 %v907
    %v2362 = vunpack.c.h.b16 %v907
    %v2363 = vunpack.c.l.b16 %v908
    %v2364 = vunpack.c.h.b16 %v908
    %v2365 = vunpack.c.l.b16 %v909
    %v2366 = vunpack.c.h.b16 %v909
    %v2367 = vunpack.c.l.b16 %v910
    %v2368 = vunpack.c.h.b16 %v910
    %v2369 = vunpack.c.l.b16 %v911
    %v2370 = vunpack.c.h.b16 %v911
    %v2371 = vunpack.c.l.b16 %v912
    %v2372 = vunpack.c.h.b16 %v912
    %v2373 = vunpack.c.l.b16 %v913
    %v2374 = vunpack.c.h.b16 %v913
    %v2375 = vunpack.c.l.b16 %v914
    %v2376 = vunpack.c.h.b16 %v914
    %v2377 = vunpack.c.l.b16 %v915
    %v2378 = vunpack.c.h.b16 %v915
    %v2379 = vunpack.c.l.b16 %v916
    %v2380 = vunpack.c.h.b16 %v916
    %v2381 = vunpack.c.l.b16 %v917
    %v2382 = vunpack.c.h.b16 %v917
    %v2383 = vunpack.c.l.b16 %v918
    %v2384 = vunpack.c.h.b16 %v918
    %v2385 = vunpack.c.l.b16 %v919
    %v2386 = vunpack.c.h.b16 %v919
    %v2387 = vunpack.c.l.b16 %v920
    %v2388 = vunpack.c.h.b16 %v920
    %v2389 = vunpack.c.l.b16 %v921
    %v2390 = vunpack.c.h.b16 %v921
    %v2391 = vunpack.c.l.b16 %v922
    %v2392 = vunpack.c.h.b16 %v922
    %v2393 = vunpack.c.l.b16 %v923
    %v2394 = vunpack.c.h.b16 %v923
    %v2395 = vunpack.c.l.b16 %v924
    %v2396 = vunpack.c.h.b16 %v924
    %v2397 = vunpack.c.l.b16 %v925
    %v2398 = vunpack.c.h.b16 %v925
    %v2399 = vunpack.c.l.b16 %v926
    %v2400 = vunpack.c.h.b16 %v926
    %v2401 = vunpack.c.l.b16 %v927
    %v2402 = vunpack.c.h.b16 %v927
    %v2403 = vunpack.c.l.b16 %v928
    %v2404 = vunpack.c.h.b16 %v928
    %v2405 = vunpack.c.l.b16 %v929
    %v2406 = vunpack.c.h.b16 %v929
    %v2407 = vunpack.c.l.b16 %v930
    %v2408 = vunpack.c.h.b16 %v930
    %v2409 = vunpack.c.l.b16 %v931
    %v2410 = vunpack.c.h.b16 %v931
    %v2411 = vunpack.c.l.b16 %v932
    %v2412 = vunpack.c.h.b16 %v932
    %v2413 = vunpack.c.l.b16 %v933
    %v2414 = vunpack.c.h.b16 %v933
    %v2415 = vunpack.c.l.b16 %v934
    %v2416 = vunpack.c.h.b16 %v934
    %v2417 = vunpack.c.l.b16 %v935
    %v2418 = vunpack.c.h.b16 %v935
    %v2419 = vunpack.c.l.b16 %v936
    %v2420 = vunpack.c.h.b16 %v936
    %v2421 = vunpack.c.l.b16 %v937
    %v2422 = vunpack.c.h.b16 %v937
    %v2423 = vunpack.c.l.b16 %v938
    %v2424 = vunpack.c.h.b16 %v938
    %v2425 = vunpack.c.l.b16 %v939
    %v2426 = vunpack.c.h.b16 %v939
    %v2427 = vunpack.c.l.b16 %v940
    %v2428 = vunpack.c.h.b16 %v940
    %v2429 = vunpack.c.l.b16 %v941
    %v2430 = vunpack.c.h.b16 %v941
    %v2431 = vunpack.c.l.b16 %v942
    %v2432 = vunpack.c.h.b16 %v942
    %v2433 = vunpack.c.l.b16 %v943
    %v2434 = vunpack.c.h.b16 %v943
    %v2435 = vunpack.c.l.b16 %v944
    %v2436 = vunpack.c.h.b16 %v944
    %v2437 = vunpack.c.l.b16 %v945
    %v2438 = vunpack.c.h.b16 %v945
    %v2439 = vunpack.c.l.b16 %v946
    %v2440 = vunpack.c.h.b16 %v946
    %v2441 = vunpack.c.l.b16 %v947
    %v2442 = vunpack.c.h.b16 %v947
    %v2443 = vunpack.c.l.b16 %v948
    %v2444 = vunpack.c.h.b16 %v948
    %v2445 = vunpack.c.l.b16 %v949
    %v2446 = vunpack.c.h.b16 %v949
    %v2447 = vunpack.c.l.b16 %v950
    %v2448 = vunpack.c.h.b16 %v950
    %v2449 = vunpack.c.l.b16 %v951
    %v2450 = vunpack.c.h.b16 %v951
    %v2451 = vunpack.c.l.b16 %v952
    %v2452 = vunpack.c.h.b16 %v952
    %v2453 = vunpack.c.l.b16 %v953
    %v2454 = vunpack.c.h.b16 %v953
    %v2455 = vunpack.c.l.b16 %v954
    %v2456 = vunpack.c.h.b16 %v954
    %v2457 = vunpack.c.l.b16 %v955
    %v2458 = vunpack.c.h.b16 %v955
    %v2459 = vunpack.c.l.b16 %v956
    %v2460 = vunpack.c.h.b16 %v956
    %v2461 = vunpack.c.l.b16 %v957
    %v2462 = vunpack.c.h.b16 %v957
    %v2463 = vunpack.c.l.b16 %v958
    %v2464 = vunpack.c.h.b16 %v958
    %v2465 = vunpack.c.l.b16 %v959
    %v2466 = vunpack.c.h.b16 %v959
    %v2467 = vunpack.c.l.b16 %v960
    %v2468 = vunpack.c.h.b16 %v960
    %v2469 = vunpack.c.l.b16 %v961
    %v2470 = vunpack.c.h.b16 %v961
    %v2471 = vunpack.c.l.b16 %v962
    %v2472 = vunpack.c.h.b16 %v962
    %v2473 = vunpack.c.l.b16 %v963
    %v2474 = vunpack.c.h.b16 %v963
    %v2475 = vunpack.c.l.b16 %v964
    %v2476 = vunpack.c.h.b16 %v964
    %v2477 = vunpack.c.l.b16 %v965
    %v2478 = vunpack.c.h.b16 %v965
    %v2479 = vunpack.c.l.b16 %v966
    %v2480 = vunpack.c.h.b16 %v966
    %v2481 = vunpack.c.l.b16 %v967
    %v2482 = vunpack.c.h.b16 %v967
    %v2483 = vunpack.c.l.b16 %v968
    %v2484 = vunpack.c.h.b16 %v968
    %v2485 = vunpack.c.l.b16 %v969
    %v2486 = vunpack.c.h.b16 %v969
    %v2487 = vunpack.c.l.b16 %v970
    %v2488 = vunpack.c.h.b16 %v970
    %v2489 = vunpack.c.l.b16 %v971
    %v2490 = vunpack.c.h.b16 %v971
    %v2491 = vunpack.c.l.b16 %v972
    %v2492 = vunpack.c.h.b16 %v972
    %v2493 = vunpack.c.l.b16 %v973
    %v2494 = vunpack.c.h.b16 %v973
    %v2495 = vunpack.c.l.b16 %v974
    %v2496 = vunpack.c.h.b16 %v974
    %v2497 = vunpack.c.l.b16 %v975
    %v2498 = vunpack.c.h.b16 %v975
    %v2499 = vunpack.c.l.b16 %v976
    %v2500 = vunpack.c.h.b16 %v976
    %v2501 = vunpack.c.l.b16 %v977
    %v2502 = vunpack.c.h.b16 %v977
    %v2503 = vunpack.c.l.b16 %v978
    %v2504 = vunpack.c.h.b16 %v978
    %v2505 = vunpack.c.l.b16 %v979
    %v2506 = vunpack.c.h.b16 %v979
    %v2507 = vunpack.c.l.b16 %v980
    %v2508 = vunpack.c.h.b16 %v980
    %v2509 = vpack.c.b16 %v1549, %v1537
    %v2510 = vpack.c.b16 %v1550, %v1538
    %v2511 = vpack.c.b16 %v1551, %v1539
    %v2512 = vpack.c.b16 %v1552, %v1540
    %v2513 = vpack.c.b16 %v1553, %v1541
    %v2514 = vpack.c.b16 %v1554, %v1542
    %v2515 = vpack.c.b16 %v1555, %v1543
    %v2516 = vpack.c.b16 %v1556, %v1544
    %v2517 = vpack.c.b16 %v1557, %v1545
    %v2518 = vpack.c.b16 %v1558, %v1546
    %v2519 = vpack.c.b16 %v1559, %v1547
    %v2520 = vpack.c.b16 %v1560, %v1548
    %v2521 = vpack.c.b16 %v1573, %v1561
    %v2522 = vpack.c.b16 %v1574, %v1562
    %v2523 = vpack.c.b16 %v1575, %v1563
    %v2524 = vpack.c.b16 %v1576, %v1564
    %v2525 = vpack.c.b16 %v1577, %v1565
    %v2526 = vpack.c.b16 %v1578, %v1566
    %v2527 = vpack.c.b16 %v1579, %v1567
    %v2528 = vpack.c.b16 %v1580, %v1568
    %v2529 = vpack.c.b16 %v1581, %v1569
    %v2530 = vpack.c.b16 %v1582, %v1570
    %v2531 = vpack.c.b16 %v1583, %v1571
    %v2532 = vpack.c.b16 %v1584, %v1572
    %v2533 = vpack.c.b16 %v1597, %v1585
    %v2534 = vpack.c.b16 %v1598, %v1586
    %v2535 = vpack.c.b16 %v1599, %v1587
    %v2536 = vpack.c.b16 %v1600, %v1588
    %v2537 = vpack.c.b16 %v1601, %v1589
    %v2538 = vpack.c.b16 %v1602, %v1590
    %v2539 = vpack.c.b16 %v1603, %v1591
    %v2540 = vpack.c.b16 %v1604, %v1592
    %v2541 = vpack.c.b16 %v1605, %v1593
    %v2542 = vpack.c.b16 %v1606, %v1594
    %v2543 = vpack.c.b16 %v1607, %v1595
    %v2544 = vpack.c.b16 %v1608, %v1596
    %v2545 = vpack.c.b16 %v1621, %v1609
    %v2546 = vpack.c.b16 %v1622, %v1610
    %v2547 = vpack.c.b16 %v1623, %v1611
    %v2548 = vpack.c.b16 %v1624, %v1612
    %v2549 = vpack.c.b16 %v1625, %v1613
    %v2550 = vpack.c.b16 %v1626, %v1614
    %v2551 = vpack.c.b16 %v1627, %v1615
    %v2552 = vpack.c.b16 %v1628, %v1616
    %v2553 = vpack.c.b16 %v1629, %v1617
    %v2554 = vpack.c.b16 %v1630, %v1618
    %v2555 = vpack.c.b16 %v1631, %v1619
    %v2556 = vpack.c.b16 %v1632, %v1620
    %v2557 = vpack.c.b16 %v1645, %v1633
    %v2558 = vpack.c.b16 %v1646, %v1634
    %v2559 = vpack.c.b16 %v1647, %v1635
    %v2560 = vpack.c.b16 %v1648, %v1636
    %v2561 = vpack.c.b16 %v1649, %v1637
    %v2562 = vpack.c.b16 %v1650, %v1638
    %v2563 = vpack.c.b16 %v1651, %v1639
    %v2564 = vpack.c.b16 %v1652, %v1640
    %v2565 = vpack.c.b16 %v1653, %v1641
    %v2566 = vpack.c.b16 %v1654, %v1642
    %v2567 = vpack.c.b16 %v1655, %v1643
    %v2568 = vpack.c.b16 %v1656, %v1644
    %v2569 = vpack.c.b16 %v1669, %v1657
    %v2570 = vpack.c.b16 %v1670, %v1658
    %v2571 = vpack.c.b16 %v1671, %v1659
    %v2572 = vpack.c.b16 %v1672, %v1660
    %v2573 = vpack.c.b16 %v1673, %v1661
    %v2574 = vpack.c.b16 %v1674, %v1662
    %v2575 = vpack.c.b16 %v1675, %v1663
    %v2576 = vpack.c.b16 %v1676, %v1664
    %v2577 = vpack.c.b16 %v1677, %v1665
    %v2578 = vpack.c.b16 %v1678, %v1666
    %v2579 = vpack.c.b16 %v1679, %v1667
    %v2580 = vpack.c.b16 %v1680, %v1668
    %v2581 = vpack.c.b16 %v1693, %v1681
    %v2582 = vpack.c.b16 %v1694, %v1682
    %v2583 = vpack.c.b16 %v1695, %v1683
    %v2584 = vpack.c.b16 %v1696, %v1684
    %v2585 = vpack.c.b16 %v1697, %v1685
    %v2586 = vpack.c.b16 %v1698, %v1686
    %v2587 = vpack.c.b16 %v1699, %v1687
    %v2588 = vpack.c.b16 %v1700, %v1688
    %v2589 = vpack.c.b16 %v1701, %v1689
    %v2590 = vpack.c.b16 %v1702, %v1690
    %v2591 = vpack.c.b16 %v1703, %v1691
    %v2592 = vpack.c.b16 %v1704, %v1692
    %v2593 = vpack.c.b16 %v1717, %v1705
    %v2594 = vpack.c.b16 %v1718, %v1706
    %v2595 = vpack.c.b16 %v1719, %v1707
    %v2596 = vpack.c.b16 %v1720, %v1708
    %v2597 = vpack.c.b16 %v1721, %v1709
    %v2598 = vpack.c.b16 %v1722, %v1710
    %v2599 = vpack.c.b16 %v1723, %v1711
    %v2600 = vpack.c.b16 %v1724, %v1712
    %v2601 = vpack.c.b16 %v1725, %v1713
    %v2602 = vpack.c.b16 %v1726, %v1714
    %v2603 = vpack.c.b16 %v1727, %v1715
    %v2604 = vpack.c.b16 %v1728, %v1716
    %v2605 = vpack.c.b16 %v1741, %v1729
    %v2606 = vpack.c.b16 %v1742, %v1730
    %v2607 = vpack.c.b16 %v1743, %v1731
    %v2608 = vpack.c.b16 %v1744, %v1732
    %v2609 = vpack.c.b16 %v1745, %v1733
    %v2610 = vpack.c.b16 %v1746, %v1734
    %v2611 = vpack.c.b16 %v1747, %v1735
    %v2612 = vpack.c.b16 %v1748, %v1736
    %v2613 = vpack.c.b16 %v1749, %v1737
    %v2614 = vpack.c.b16 %v1750, %v1738
    %v2615 = vpack.c.b16 %v1751, %v1739
    %v2616 = vpack.c.b16 %v1752, %v1740
    %v2617 = vpack.c.b16 %v1765, %v1753
    %v2618 = vpack.c.b16 %v1766, %v1754
    %v2619 = vpack.c.b16 %v1767, %v1755
    %v2620 = vpack.c.b16 %v1768, %v1756
    %v2621 = vpack.c.b16 %v1769, %v1757
    %v2622 = vpack.c.b16 %v1770, %v1758
    %v2623 = vpack.c.b16 %v1771, %v1759
    %v2624 = vpack.c.b16 %v1772, %v1760
    %v2625 = vpack.c.b16 %v1773, %v1761
    %v2626 = vpack.c.b16 %v1774, %v1762
    %v2627 = vpack.c.b16 %v1775, %v1763
    %v2628 = vpack.c.b16 %v1776, %v1764
    %v2629 = vpack.c.b16 %v1789, %v1777
    %v2630 = vpack.c.b16 %v1790, %v1778
    %v2631 = vpack.c.b16 %v1791, %v1779
    %v2632 = vpack.c.b16 %v1792, %v1780
    %v2633 = vpack.c.b16 %v1793, %v1781
    %v2634 = vpack.c.b16 %v1794, %v1782
    %v2635 = vpack.c.b16 %v1795, %v1783
    %v2636 = vpack.c.b16 %v1796, %v1784
    %v2637 = vpack.c.b16 %v1797, %v1785
    %v2638 = vpack.c.b16 %v1798, %v1786
    %v2639 = vpack.c.b16 %v1799, %v1787
    %v2640 = vpack.c.b16 %v1800, %v1788
    %v2641 = vpack.c.b16 %v1813, %v1801
    %v2642 = vpack.c.b16 %v1814, %v1802
    %v2643 = vpack.c.b16 %v1815, %v1803
    %v2644 = vpack.c.b16 %v1816, %v1804
    %v2645 = vpack.c.b16 %v1817, %v1805
    %v2646 = vpack.c.b16 %v1818, %v1806
    %v2647 = vpack.c.b16 %v1819, %v1807
    %v2648 = vpack.c.b16 %v1820, %v1808
    %v2649 = vpack.c.b16 %v1821, %v1809
    %v2650 = vpack.c.b16 %v1822, %v1810
    %v2651 = vpack.c.b16 %v1823, %v1811
    %v2652 = vpack.c.b16 %v1824, %v1812
    %v2653 = vpack.c.b16 %v1837, %v1825
    %v2654 = vpack.c.b16 %v1838, %v1826
    %v2655 = vpack.c.b16 %v1839, %v1827
    %v2656 = vpack.c.b16 %v1840, %v1828
    %v2657 = vpack.c.b16 %v1841, %v1829
    %v2658 = vpack.c.b16 %v1842, %v1830
    %v2659 = vpack.c.b16 %v1843, %v1831
    %v2660 = vpack.c.b16 %v1844, %v1832
    %v2661 = vpack.c.b16 %v1845, %v1833
    %v2662 = vpack.c.b16 %v1846, %v1834
    %v2663 = vpack.c.b16 %v1847, %v1835
    %v2664 = vpack.c.b16 %v1848, %v1836
    %v2665 = vpack.c.b16 %v1861, %v1849
    %v2666 = vpack.c.b16 %v1862, %v1850
    %v2667 = vpack.c.b16 %v1863, %v1851
    %v2668 = vpack.c.b16 %v1864, %v1852
    %v2669 = vpack.c.b16 %v1865, %v1853
    %v2670 = vpack.c.b16 %v1866, %v1854
    %v2671 = vpack.c.b16 %v1867, %v1855
    %v2672 = vpack.c.b16 %v1868, %v1856
    %v2673 = vpack.c.b16 %v1869, %v1857
    %v2674 = vpack.c.b16 %v1870, %v1858
    %v2675 = vpack.c.b16 %v1871, %v1859
    %v2676 = vpack.c.b16 %v1872, %v1860
    %v2677 = vpack.c.b16 %v1885, %v1873
    %v2678 = vpack.c.b16 %v1886, %v1874
    %v2679 = vpack.c.b16 %v1887, %v1875
    %v2680 = vpack.c.b16 %v1888, %v1876
    %v2681 = vpack.c.b16 %v1889, %v1877
    %v2682 = vpack.c.b16 %v1890, %v1878
    %v2683 = vpack.c.b16 %v1891, %v1879
    %v2684 = vpack.c.b16 %v1892, %v1880
    %v2685 = vpack.c.b16 %v1893, %v1881
    %v2686 = vpack.c.b16 %v1894, %v1882
    %v2687 = vpack.c.b16 %v1895, %v1883
    %v2688 = vpack.c.b16 %v1896, %v1884
    %v2689 = vpack.c.b16 %v1909, %v1897
    %v2690 = vpack.c.b16 %v1910, %v1898
    %v2691 = vpack.c.b16 %v1911, %v1899
    %v2692 = vpack.c.b16 %v1912, %v1900
    %v2693 = vpack.c.b16 %v1913, %v1901
    %v2694 = vpack.c.b16 %v1914, %v1902
    %v2695 = vpack.c.b16 %v1915, %v1903
    %v2696 = vpack.c.b16 %v1916, %v1904
    %v2697 = vpack.c.b16 %v1917, %v1905
    %v2698 = vpack.c.b16 %v1918, %v1906
    %v2699 = vpack.c.b16 %v1919, %v1907
    %v2700 = vpack.c.b16 %v1920, %v1908
    %v2701 = vpack.c.b16 %v1933, %v1921
    %v2702 = vpack.c.b16 %v1934, %v1922
    %v2703 = vpack.c.b16 %v1935, %v1923
    %v2704 = vpack.c.b16 %v1936, %v1924
    %v2705 = vpack.c.b16 %v1937, %v1925
    %v2706 = vpack.c.b16 %v1938, %v1926
    %v2707 = vpack.c.b16 %v1939, %v1927
    %v2708 = vpack.c.b16 %v1940, %v1928
    %v2709 = vpack.c.b16 %v1941, %v1929
    %v2710 = vpack.c.b16 %v1942, %v1930
    %v2711 = vpack.c.b16 %v1943, %v1931
    %v2712 = vpack.c.b16 %v1944, %v1932
    %v2713 = vpack.c.b16 %v1957, %v1945
    %v2714 = vpack.c.b16 %v1958, %v1946
    %v2715 = vpack.c.b16 %v1959, %v1947
    %v2716 = vpack.c.b16 %v1960, %v1948
    %v2717 = vpack.c.b16 %v1961, %v1949
    %v2718 = vpack.c.b16 %v1962, %v1950
    %v2719 = vpack.c.b16 %v1963, %v1951
    %v2720 = vpack.c.b16 %v1964, %v1952
    %v2721 = vpack.c.b16 %v1965, %v1953
    %v2722 = vpack.c.b16 %v1966, %v1954
    %v2723 = vpack.c.b16 %v1967, %v1955
    %v2724 = vpack.c.b16 %v1968, %v1956
    %v2725 = vpack.c.b16 %v1981, %v1969
    %v2726 = vpack.c.b16 %v1982, %v1970
    %v2727 = vpack.c.b16 %v1983, %v1971
    %v2728 = vpack.c.b16 %v1984, %v1972
    %v2729 = vpack.c.b16 %v1985, %v1973
    %v2730 = vpack.c.b16 %v1986, %v1974
    %v2731 = vpack.c.b16 %v1987, %v1975
    %v2732 = vpack.c.b16 %v1988, %v1976
    %v2733 = vpack.c.b16 %v1989, %v1977
    %v2734 = vpack.c.b16 %v1990, %v1978
    %v2735 = vpack.c.b16 %v1991, %v1979
    %v2736 = vpack.c.b16 %v1992, %v1980
    %v2737 = vpack.c.b16 %v2005, %v1993
    %v2738 = vpack.c.b16 %v2006, %v1994
    %v2739 = vpack.c.b16 %v2007, %v1995
    %v2740 = vpack.c.b16 %v2008, %v1996
    %v2741 = vpack.c.b16 %v2009, %v1997
    %v2742 = vpack.c.b16 %v2010, %v1998
    %v2743 = vpack.c.b16 %v2011, %v1999
    %v2744 = vpack.c.b16 %v2012, %v2000
    %v2745 = vpack.c.b16 %v2013, %v2001
    %v2746 = vpack.c.b16 %v2014, %v2002
    %v2747 = vpack.c.b16 %v2015, %v2003
    %v2748 = vpack.c.b16 %v2016, %v2004
    %v2749 = vpack.c.b16 %v2029, %v2017
    %v2750 = vpack.c.b16 %v2030, %v2018
    %v2751 = vpack.c.b16 %v2031, %v2019
    %v2752 = vpack.c.b16 %v2032, %v2020
    %v2753 = vpack.c.b16 %v2033, %v2021
    %v2754 = vpack.c.b16 %v2034, %v2022
    %v2755 = vpack.c.b16 %v2035, %v2023
    %v2756 = vpack.c.b16 %v2036, %v2024
    %v2757 = vpack.c.b16 %v2037, %v2025
    %v2758 = vpack.c.b16 %v2038, %v2026
    %v2759 = vpack.c.b16 %v2039, %v2027
    %v2760 = vpack.c.b16 %v2040, %v2028
    %v2761 = vpack.c.b16 %v2053, %v2041
    %v2762 = vpack.c.b16 %v2054, %v2042
    %v2763 = vpack.c.b16 %v2055, %v2043
    %v2764 = vpack.c.b16 %v2056, %v2044
    %v2765 = vpack.c.b16 %v2057, %v2045
    %v2766 = vpack.c.b16 %v2058, %v2046
    %v2767 = vpack.c.b16 %v2059, %v2047
    %v2768 = vpack.c.b16 %v2060, %v2048
    %v2769 = vpack.c.b16 %v2061, %v2049
    %v2770 = vpack.c.b16 %v2062, %v2050
    %v2771 = vpack.c.b16 %v2063, %v2051
    %v2772 = vpack.c.b16 %v2064, %v2052
    %v2773 = vpack.c.b16 %v2077, %v2065
    %v2774 = vpack.c.b16 %v2078, %v2066
    %v2775 = vpack.c.b16 %v2079, %v2067
    %v2776 = vpack.c.b16 %v2080, %v2068
    %v2777 = vpack.c.b16 %v2081, %v2069
    %v2778 = vpack.c.b16 %v2082, %v2070
    %v2779 = vpack.c.b16 %v2083, %v2071
    %v2780 = vpack.c.b16 %v2084, %v2072
    %v2781 = vpack.c.b16 %v2085, %v2073
    %v2782 = vpack.c.b16 %v2086, %v2074
    %v2783 = vpack.c.b16 %v2087, %v2075
    %v2784 = vpack.c.b16 %v2088, %v2076
    %v2785 = vpack.c.b16 %v2101, %v2089
    %v2786 = vpack.c.b16 %v2102, %v2090
    %v2787 = vpack.c.b16 %v2103, %v2091
    %v2788 = vpack.c.b16 %v2104, %v2092
    %v2789 = vpack.c.b16 %v2105, %v2093
    %v2790 = vpack.c.b16 %v2106, %v2094
    %v2791 = vpack.c.b16 %v2107, %v2095
    %v2792 = vpack.c.b16 %v2108, %v2096
    %v2793 = vpack.c.b16 %v2109, %v2097
    %v2794 = vpack.c.b16 %v2110, %v2098
    %v2795 = vpack.c.b16 %v2111, %v2099
    %v2796 = vpack.c.b16 %v2112, %v2100
    %v2797 = vpack.c.b16 %v2125, %v2113
    %v2798 = vpack.c.b16 %v2126, %v2114
    %v2799 = vpack.c.b16 %v2127, %v2115
    %v2800 = vpack.c.b16 %v2128, %v2116
    %v2801 = vpack.c.b16 %v2129, %v2117
    %v2802 = vpack.c.b16 %v2130, %v2118
    %v2803 = vpack.c.b16 %v2131, %v2119
    %v2804 = vpack.c.b16 %v2132, %v2120
    %v2805 = vpack.c.b16 %v2133, %v2121
    %v2806 = vpack.c.b16 %v2134, %v2122
    %v2807 = vpack.c.b16 %v2135, %v2123
    %v2808 = vpack.c.b16 %v2136, %v2124
    %v2809 = vpack.c.b16 %v2149, %v2137
    %v2810 = vpack.c.b16 %v2150, %v2138
    %v2811 = vpack.c.b16 %v2151, %v2139
    %v2812 = vpack.c.b16 %v2152, %v2140
    %v2813 = vpack.c.b16 %v2153, %v2141
    %v2814 = vpack.c.b16 %v2154, %v2142
    %v2815 = vpack.c.b16 %v2155, %v2143
    %v2816 = vpack.c.b16 %v2156, %v2144
    %v2817 = vpack.c.b16 %v2157, %v2145
    %v2818 = vpack.c.b16 %v2158, %v2146
    %v2819 = vpack.c.b16 %v2159, %v2147
    %v2820 = vpack.c.b16 %v2160, %v2148
    %v2821 = vpack.c.b16 %v2173, %v2161
    %v2822 = vpack.c.b16 %v2174, %v2162
    %v2823 = vpack.c.b16 %v2175, %v2163
    %v2824 = vpack.c.b16 %v2176, %v2164
    %v2825 = vpack.c.b16 %v2177, %v2165
    %v2826 = vpack.c.b16 %v2178, %v2166
    %v2827 = vpack.c.b16 %v2179, %v2167
    %v2828 = vpack.c.b16 %v2180, %v2168
    %v2829 = vpack.c.b16 %v2181, %v2169
    %v2830 = vpack.c.b16 %v2182, %v2170
    %v2831 = vpack.c.b16 %v2183, %v2171
    %v2832 = vpack.c.b16 %v2184, %v2172
    %v2833 = vpack.c.b16 %v2197, %v2185
    %v2834 = vpack.c.b16 %v2198, %v2186
    %v2835 = vpack.c.b16 %v2199, %v2187
    %v2836 = vpack.c.b16 %v2200, %v2188
    %v2837 = vpack.c.b16 %v2201, %v2189
    %v2838 = vpack.c.b16 %v2202, %v2190
    %v2839 = vpack.c.b16 %v2203, %v2191
    %v2840 = vpack.c.b16 %v2204, %v2192
    %v2841 = vpack.c.b16 %v2205, %v2193
    %v2842 = vpack.c.b16 %v2206, %v2194
    %v2843 = vpack.c.b16 %v2207, %v2195
    %v2844 = vpack.c.b16 %v2208, %v2196
    %v2845 = vpack.c.b16 %v2221, %v2209
    %v2846 = vpack.c.b16 %v2222, %v2210
    %v2847 = vpack.c.b16 %v2223, %v2211
    %v2848 = vpack.c.b16 %v2224, %v2212
    %v2849 = vpack.c.b16 %v2225, %v2213
    %v2850 = vpack.c.b16 %v2226, %v2214
    %v2851 = vpack.c.b16 %v2227, %v2215
    %v2852 = vpack.c.b16 %v2228, %v2216
    %v2853 = vpack.c.b16 %v2229, %v2217
    %v2854 = vpack.c.b16 %v2230, %v2218
    %v2855 = vpack.c.b16 %v2231, %v2219
    %v2856 = vpack.c.b16 %v2232, %v2220
    %v2857 = vpack.c.b16 %v2245, %v2233
    %v2858 = vpack.c.b16 %v2246, %v2234
    %v2859 = vpack.c.b16 %v2247, %v2235
    %v2860 = vpack.c.b16 %v2248, %v2236
    %v2861 = vpack.c.b16 %v2249, %v2237
    %v2862 = vpack.c.b16 %v2250, %v2238
    %v2863 = vpack.c.b16 %v2251, %v2239
    %v2864 = vpack.c.b16 %v2252, %v2240
    %v2865 = vpack.c.b16 %v2253, %v2241
    %v2866 = vpack.c.b16 %v2254, %v2242
    %v2867 = vpack.c.b16 %v2255, %v2243
    %v2868 = vpack.c.b16 %v2256, %v2244
    %v2869 = vpack.c.b16 %v2269, %v2257
    %v2870 = vpack.c.b16 %v2270, %v2258
    %v2871 = vpack.c.b16 %v2271, %v2259
    %v2872 = vpack.c.b16 %v2272, %v2260
    %v2873 = vpack.c.b16 %v2273, %v2261
    %v2874 = vpack.c.b16 %v2274, %v2262
    %v2875 = vpack.c.b16 %v2275, %v2263
    %v2876 = vpack.c.b16 %v2276, %v2264
    %v2877 = vpack.c.b16 %v2277, %v2265
    %v2878 = vpack.c.b16 %v2278, %v2266
    %v2879 = vpack.c.b16 %v2279, %v2267
    %v2880 = vpack.c.b16 %v2280, %v2268
    %v2881 = vpack.c.b16 %v2293, %v2281
    %v2882 = vpack.c.b16 %v2294, %v2282
    %v2883 = vpack.c.b16 %v2295, %v2283
    %v2884 = vpack.c.b16 %v2296, %v2284
    %v2885 = vpack.c.b16 %v2297, %v2285
    %v2886 = vpack.c.b16 %v2298, %v2286
    %v2887 = vpack.c.b16 %v2299, %v2287
    %v2888 = vpack.c.b16 %v2300, %v2288
    %v2889 = vpack.c.b16 %v2301, %v2289
    %v2890 = vpack.c.b16 %v2302, %v2290
    %v2891 = vpack.c.b16 %v2303, %v2291
    %v2892 = vpack.c.b16 %v2304, %v2292
    %v2893 = vpack.c.b16 %v2317, %v2305
    %v2894 = vpack.c.b16 %v2318, %v2306
    %v2895 = vpack.c.b16 %v2319, %v2307
    %v2896 = vpack.c.b16 %v2320, %v2308
    %v2897 = vpack.c.b16 %v2321, %v2309
    %v2898 = vpack.c.b16 %v2322, %v2310
    %v2899 = vpack.c.b16 %v2323, %v2311
    %v2900 = vpack.c.b16 %v2324, %v2312
    %v2901 = vpack.c.b16 %v2325, %v2313
    %v2902 = vpack.c.b16 %v2326, %v2314
    %v2903 = vpack.c.b16 %v2327, %v2315
    %v2904 = vpack.c.b16 %v2328, %v2316
    %v2905 = vpack.c.b16 %v2341, %v2329
    %v2906 = vpack.c.b16 %v2342, %v2330
    %v2907 = vpack.c.b16 %v2343, %v2331
    %v2908 = vpack.c.b16 %v2344, %v2332
    %v2909 = vpack.c.b16 %v2345, %v2333
    %v2910 = vpack.c.b16 %v2346, %v2334
    %v2911 = vpack.c.b16 %v2347, %v2335
    %v2912 = vpack.c.b16 %v2348, %v2336
    %v2913 = vpack.c.b16 %v2349, %v2337
    %v2914 = vpack.c.b16 %v2350, %v2338
    %v2915 = vpack.c.b16 %v2351, %v2339
    %v2916 = vpack.c.b16 %v2352, %v2340
    %v2917 = vpack.c.b16 %v2365, %v2353
    %v2918 = vpack.c.b16 %v2366, %v2354
    %v2919 = vpack.c.b16 %v2367, %v2355
    %v2920 = vpack.c.b16 %v2368, %v2356
    %v2921 = vpack.c.b16 %v2369, %v2357
    %v2922 = vpack.c.b16 %v2370, %v2358
    %v2923 = vpack.c.b16 %v2371, %v2359
    %v2924 = vpack.c.b16 %v2372, %v2360
    %v2925 = vpack.c.b16 %v2373, %v2361
    %v2926 = vpack.c.b16 %v2374, %v2362
    %v2927 = vpack.c.b16 %v2375, %v2363
    %v2928 = vpack.c.b16 %v2376, %v2364
    %v2929 = vpack.c.b16 %v2389, %v2377
    %v2930 = vpack.c.b16 %v2390, %v2378
    %v2931 = vpack.c.b16 %v2391, %v2379
    %v2932 = vpack.c.b16 %v2392, %v2380
    %v2933 = vpack.c.b16 %v2393, %v2381
    %v2934 = vpack.c.b16 %v2394, %v2382
    %v2935 = vpack.c.b16 %v2395, %v2383
    %v2936 = vpack.c.b16 %v2396, %v2384
    %v2937 = vpack.c.b16 %v2397, %v2385
    %v2938 = vpack.c.b16 %v2398, %v2386
    %v2939 = vpack.c.b16 %v2399, %v2387
    %v2940 = vpack.c.b16 %v2400, %v2388
    %v2941 = vpack.c.b16 %v2413, %v2401
    %v2942 = vpack.c.b16 %v2414, %v2402
    %v2943 = vpack.c.b16 %v2415, %v2403
    %v2944 = vpack.c.b16 %v2416, %v2404
    %v2945 = vpack.c.b16 %v2417, %v2405
    %v2946 = vpack.c.b16 %v2418, %v2406
    %v2947 = vpack.c.b16 %v2419, %v2407
    %v2948 = vpack.c.b16 %v2420, %v2408
    %v2949 = vpack.c.b16 %v2421, %v2409
    %v2950 = vpack.c.b16 %v2422, %v2410
    %v2951 = vpack.c.b16 %v2423, %v2411
    %v2952 = vpack.c.b16 %v2424, %v2412
    %v2953 = vpack.c.b16 %v2437, %v2425
    %v2954 = vpack.c.b16 %v2438, %v2426
    %v2955 = vpack.c.b16 %v2439, %v2427
    %v2956 = vpack.c.b16 %v2440, %v2428
    %v2957 = vpack.c.b16 %v2441, %v2429
    %v2958 = vpack.c.b16 %v2442, %v2430
    %v2959 = vpack.c.b16 %v2443, %v2431
    %v2960 = vpack.c.b16 %v2444, %v2432
    %v2961 = vpack.c.b16 %v2445, %v2433
    %v2962 = vpack.c.b16 %v2446, %v2434
    %v2963 = vpack.c.b16 %v2447, %v2435
    %v2964 = vpack.c.b16 %v2448, %v2436
    %v2965 = vpack.c.b16 %v2461, %v2449
    %v2966 = vpack.c.b16 %v2462, %v2450
    %v2967 = vpack.c.b16 %v2463, %v2451
    %v2968 = vpack.c.b16 %v2464, %v2452
    %v2969 = vpack.c.b16 %v2465, %v2453
    %v2970 = vpack.c.b16 %v2466, %v2454
    %v2971 = vpack.c.b16 %v2467, %v2455
    %v2972 = vpack.c.b16 %v2468, %v2456
    %v2973 = vpack.c.b16 %v2469, %v2457
    %v2974 = vpack.c.b16 %v2470, %v2458
    %v2975 = vpack.c.b16 %v2471, %v2459
    %v2976 = vpack.c.b16 %v2472, %v2460
    %v2977 = vpack.c.b16 %v2485, %v2473
    %v2978 = vpack.c.b16 %v2486, %v2474
    %v2979 = vpack.c.b16 %v2487, %v2475
    %v2980 = vpack.c.b16 %v2488, %v2476
    %v2981 = vpack.c.b16 %v2489, %v2477
    %v2982 = vpack.c.b16 %v2490, %v2478
    %v2983 = vpack.c.b16 %v2491, %v2479
    %v2984 = vpack.c.b16 %v2492, %v2480
    %v2985 = vpack.c.b16 %v2493, %v2481
    %v2986 = vpack.c.b16 %v2494, %v2482
    %v2987 = vpack.c.b16 %v2495, %v2483
    %v2988 = vpack.c.b16 %v2496, %v2484
    %v2989 = vpack.c.b16 %v2497, %v2497
    %v2990 = vpack.c.b16 %v2498, %v2498
    %v2991 = vpack.c.b16 %v2499, %v2499
    %v2992 = vpack.c.b16 %v2500, %v2500
    %v2993 = vpack.c.b16 %v2501, %v2501
    %v2994 = vpack.c.b16 %v2502, %v2502
    %v2995 = vpack.c.b16 %v2503, %v2503
    %v2996 = vpack.c.b16 %v2504, %v2504
    %v2997 = vpack.c.b16 %v2505, %v2505
    %v2998 = vpack.c.b16 %v2506, %v2506
    %v2999 = vpack.c.b16 %v2507, %v2507
    %v3000 = vpack.c.b16 %v2508, %v2508
    %vm3481 = vcmask 64512
    %v3483 = vsel %vm3481, %v988, 0
    %vm3485 = vcmask 1043456
    %v3487 = vsel %vm3485, %v2989, 0
    %v3490 = vsel %vm3485, %v2990, 0
    %v3493 = vsel %vm3485, %v2991, 0
    %v3496 = vsel %vm3485, %v2992, 0
    %v3499 = vsel %vm3485, %v2993, 0
    %v3502 = vsel %vm3485, %v2994, 0
    %v3505 = vsel %vm3485, %v2995, 0
    %v3508 = vsel %vm3485, %v2996, 0
    %v3511 = vsel %vm3485, %v2997, 0
    %v3514 = vsel %vm3485, %v2998, 0
    %v3517 = vsel %vm3485, %v2999, 0
    %v3520 = vsel %vm3485, %v3000, 0
    %3522 = vmatprep.subr.bf16.mxu0 %v2510
    %3523 = vmatpush1.bf16.msra.mxu0 %v2509
    %3524 = vmatprep.subr.bf16.mxu0 %v2522
    %3525 = vmatpush1.bf16.msra.mxu0 %v2521
    %3526 = vmatprep.subr.bf16.mxu0 %v2534
    %3527 = vmatpush1.bf16.msra.mxu0 %v2533
    %3528 = vmatprep.subr.bf16.mxu0 %v2546
    %3529 = vmatpush1.bf16.msra.mxu0 %v2545
    %3530 = vmatprep.subr.bf16.mxu0 %v2558
    %3531 = vmatpush1.bf16.msra.mxu0 %v2557
    %3532 = vmatprep.subr.bf16.mxu0 %v2570
    %3533 = vmatpush1.bf16.msra.mxu0 %v2569
    %3534 = vmatprep.subr.bf16.mxu0 %v2582
    %3535 = vmatpush1.bf16.msra.mxu0 %v2581
    %3536 = vmatprep.subr.bf16.mxu0 %v2594
    %3537 = vmatpush1.bf16.msra.mxu0 %v2593
    %3538 = vmatprep.subr.bf16.mxu0 %v2606
    %3539 = vmatpush1.bf16.msra.mxu0 %v2605
    %3540 = vmatprep.subr.bf16.mxu0 %v2618
    %3541 = vmatpush1.bf16.msra.mxu0 %v2617
    %3542 = vmatprep.subr.bf16.mxu0 %v2630
    %3543 = vmatpush1.bf16.msra.mxu0 %v2629
    %3544 = vmatprep.subr.bf16.mxu0 %v2642
    %3545 = vmatpush1.bf16.msra.mxu0 %v2641
    %3546 = vmatprep.subr.bf16.mxu0 %v2654
    %3547 = vmatpush1.bf16.msra.mxu0 %v2653
    %3548 = vmatprep.subr.bf16.mxu0 %v2666
    %3549 = vmatpush1.bf16.msra.mxu0 %v2665
    %3550 = vmatprep.subr.bf16.mxu0 %v2678
    %3551 = vmatpush1.bf16.msra.mxu0 %v2677
    %3552 = vmatprep.subr.bf16.mxu0 %v2690
    %3553 = vmatpush1.bf16.msra.mxu0 %v2689
    %3554 = vmatprep.mubr.bf16.mxu0 %v984
    %3555 = vmatmul.mubr.bf16.gmra.mrb[0].mxu0 %v983
    %v3556 = vpop.f32.mrb[0].mxu0
    %v3557 = vadd.f32 %v994, %v3556
    %v3558 = vpop.f32.mrb[0].mxu0
    %v3559 = vadd.f32 %v998, %v3558
    %v3560 = vpop.f32.mrb[0].mxu0
    %v3561 = vpop.f32.mrb[0].mxu0
    %3562 = vdwg.mxu0
    %3563 = vmatprep.subr.bf16.mxu0 %v2702
    %3564 = vmatpush1.bf16.msra.mxu0 %v2701
    %3565 = vmatprep.subr.bf16.mxu0 %v2714
    %3566 = vmatpush1.bf16.msra.mxu0 %v2713
    %3567 = vmatprep.subr.bf16.mxu0 %v2726
    %3568 = vmatpush1.bf16.msra.mxu0 %v2725
    %3569 = vmatprep.subr.bf16.mxu0 %v2738
    %3570 = vmatpush1.bf16.msra.mxu0 %v2737
    %3571 = vmatprep.subr.bf16.mxu0 %v2750
    %3572 = vmatpush1.bf16.msra.mxu0 %v2749
    %3573 = vmatprep.subr.bf16.mxu0 %v2762
    %3574 = vmatpush1.bf16.msra.mxu0 %v2761
    %3575 = vmatprep.subr.bf16.mxu0 %v2774
    %3576 = vmatpush1.bf16.msra.mxu0 %v2773
    %3577 = vmatprep.subr.bf16.mxu0 %v2786
    %3578 = vmatpush1.bf16.msra.mxu0 %v2785
    %3579 = vmatprep.subr.bf16.mxu0 %v2798
    %3580 = vmatpush1.bf16.msra.mxu0 %v2797
    %3581 = vmatprep.subr.bf16.mxu0 %v2810
    %3582 = vmatpush1.bf16.msra.mxu0 %v2809
    %3583 = vmatprep.subr.bf16.mxu0 %v2822
    %3584 = vmatpush1.bf16.msra.mxu0 %v2821
    %3585 = vmatprep.subr.bf16.mxu0 %v2834
    %3586 = vmatpush1.bf16.msra.mxu0 %v2833
    %3587 = vmatprep.subr.bf16.mxu0 %v2846
    %3588 = vmatpush1.bf16.msra.mxu0 %v2845
    %3589 = vmatprep.subr.bf16.mxu0 %v2858
    %3590 = vmatpush1.bf16.msra.mxu0 %v2857
    %3591 = vmatprep.subr.bf16.mxu0 %v2870
    %3592 = vmatpush1.bf16.msra.mxu0 %v2869
    %3593 = vmatprep.subr.bf16.mxu0 %v2882
    %3594 = vmatpush1.bf16.msra.mxu0 %v2881
    %3595 = vmatprep.mubr.bf16.mxu0 %v986
    %3596 = vmatmul.mubr.bf16.gmra.mrb[0].mxu0 %v985
    %v3597 = vpop.f32.mrb[0].mxu0
    %v3598 = vadd.f32 %v3557, %v3597
    %v3599 = vpop.f32.mrb[0].mxu0
    %v3600 = vadd.f32 %v3559, %v3599
    %v3601 = vpop.f32.mrb[0].mxu0
    %v3602 = vpop.f32.mrb[0].mxu0
    %3603 = vdwg.mxu0
    %3604 = vmatprep.subr.bf16.mxu0 %v2894
    %3605 = vmatpush1.bf16.msra.mxu0 %v2893
    %3606 = vmatprep.subr.bf16.mxu0 %v2906
    %3607 = vmatpush1.bf16.msra.mxu0 %v2905
    %3608 = vmatprep.subr.bf16.mxu0 %v2918
    %3609 = vmatpush1.bf16.msra.mxu0 %v2917
    %3610 = vmatprep.subr.bf16.mxu0 %v2930
    %3611 = vmatpush1.bf16.msra.mxu0 %v2929
    %3612 = vmatprep.subr.bf16.mxu0 %v2942
    %3613 = vmatpush1.bf16.msra.mxu0 %v2941
    %3614 = vmatprep.subr.bf16.mxu0 %v2954
    %3615 = vmatpush1.bf16.msra.mxu0 %v2953
    %3616 = vmatprep.subr.bf16.mxu0 %v2966
    %3617 = vmatpush1.bf16.msra.mxu0 %v2965
    %3618 = vmatprep.subr.bf16.mxu0 %v2978
    %3619 = vmatpush1.bf16.msra.mxu0 %v2977
    %3620 = vmatprep.subr.bf16.mxu0 %v3490
    %3621 = vmatpush1.bf16.msra.mxu0 %v3487
    %3622 = vmatprep.subr.bf16.mxu0 0
    %3623 = vmatpush1.bf16.msra.mxu0 0
    %3624 = vmatprep.subr.bf16.mxu0 0
    %3625 = vmatpush1.bf16.msra.mxu0 0
    %3626 = vmatprep.subr.bf16.mxu0 0
    %3627 = vmatpush1.bf16.msra.mxu0 0
    %3628 = vmatprep.subr.bf16.mxu0 0
    %3629 = vmatpush1.bf16.msra.mxu0 0
    %3630 = vmatprep.subr.bf16.mxu0 0
    %3631 = vmatpush1.bf16.msra.mxu0 0
    %3632 = vmatprep.subr.bf16.mxu0 0
    %3633 = vmatpush1.bf16.msra.mxu0 0
    %3634 = vmatprep.subr.bf16.mxu0 0
    %3635 = vmatpush1.bf16.msra.mxu0 0
    %3636 = vmatprep.mubr.bf16.mxu0 %v3483
    %3637 = vmatmul.mubr.bf16.gmra.mrb[0].mxu0 %v987
    %v3638 = vpop.f32.mrb[0].mxu0
    %v3639 = vadd.f32 %v3598, %v3638
    %v3640 = vpop.f32.mrb[0].mxu0
    %v3641 = vadd.f32 %v3600, %v3640
    %v3642 = vpop.f32.mrb[0].mxu0
    %v3643 = vpop.f32.mrb[0].mxu0
    %3644 = vdwg.mxu0
    %3645 = vmatprep.subr.bf16.mxu0 %v2512
    %3646 = vmatpush1.bf16.msra.mxu0 %v2511
    %3647 = vmatprep.subr.bf16.mxu0 %v2524
    %3648 = vmatpush1.bf16.msra.mxu0 %v2523
    %3649 = vmatprep.subr.bf16.mxu0 %v2536
    %3650 = vmatpush1.bf16.msra.mxu0 %v2535
    %3651 = vmatprep.subr.bf16.mxu0 %v2548
    %3652 = vmatpush1.bf16.msra.mxu0 %v2547
    %3653 = vmatprep.subr.bf16.mxu0 %v2560
    %3654 = vmatpush1.bf16.msra.mxu0 %v2559
    %3655 = vmatprep.subr.bf16.mxu0 %v2572
    %3656 = vmatpush1.bf16.msra.mxu0 %v2571
    %3657 = vmatprep.subr.bf16.mxu0 %v2584
    %3658 = vmatpush1.bf16.msra.mxu0 %v2583
    %3659 = vmatprep.subr.bf16.mxu0 %v2596
    %3660 = vmatpush1.bf16.msra.mxu0 %v2595
    %3661 = vmatprep.subr.bf16.mxu0 %v2608
    %3662 = vmatpush1.bf16.msra.mxu0 %v2607
    %3663 = vmatprep.subr.bf16.mxu0 %v2620
    %3664 = vmatpush1.bf16.msra.mxu0 %v2619
    %3665 = vmatprep.subr.bf16.mxu0 %v2632
    %3666 = vmatpush1.bf16.msra.mxu0 %v2631
    %3667 = vmatprep.subr.bf16.mxu0 %v2644
    %3668 = vmatpush1.bf16.msra.mxu0 %v2643
    %3669 = vmatprep.subr.bf16.mxu0 %v2656
    %3670 = vmatpush1.bf16.msra.mxu0 %v2655
    %3671 = vmatprep.subr.bf16.mxu0 %v2668
    %3672 = vmatpush1.bf16.msra.mxu0 %v2667
    %3673 = vmatprep.subr.bf16.mxu0 %v2680
    %3674 = vmatpush1.bf16.msra.mxu0 %v2679
    %3675 = vmatprep.subr.bf16.mxu0 %v2692
    %3676 = vmatpush1.bf16.msra.mxu0 %v2691
    %3677 = vmatprep.mubr.bf16.mxu0 %v984
    %3678 = vmatmul.mubr.bf16.gmra.mrb[0].mxu0 %v983
    %v3679 = vpop.f32.mrb[0].mxu0
    %v3680 = vadd.f32 %v1002, %v3679
    %v3681 = vpop.f32.mrb[0].mxu0
    %v3682 = vadd.f32 %v1006, %v3681
    %v3683 = vpop.f32.mrb[0].mxu0
    %v3684 = vpop.f32.mrb[0].mxu0
    %3685 = vdwg.mxu0
    %3686 = vmatprep.subr.bf16.mxu0 %v2704
    %3687 = vmatpush1.bf16.msra.mxu0 %v2703
    %3688 = vmatprep.subr.bf16.mxu0 %v2716
    %3689 = vmatpush1.bf16.msra.mxu0 %v2715
    %3690 = vmatprep.subr.bf16.mxu0 %v2728
    %3691 = vmatpush1.bf16.msra.mxu0 %v2727
    %3692 = vmatprep.subr.bf16.mxu0 %v2740
    %3693 = vmatpush1.bf16.msra.mxu0 %v2739
    %3694 = vmatprep.subr.bf16.mxu0 %v2752
    %3695 = vmatpush1.bf16.msra.mxu0 %v2751
    %3696 = vmatprep.subr.bf16.mxu0 %v2764
    %3697 = vmatpush1.bf16.msra.mxu0 %v2763
    %3698 = vmatprep.subr.bf16.mxu0 %v2776
    %3699 = vmatpush1.bf16.msra.mxu0 %v2775
    %3700 = vmatprep.subr.bf16.mxu0 %v2788
    %3701 = vmatpush1.bf16.msra.mxu0 %v2787
    %3702 = vmatprep.subr.bf16.mxu0 %v2800
    %3703 = vmatpush1.bf16.msra.mxu0 %v2799
    %3704 = vmatprep.subr.bf16.mxu0 %v2812
    %3705 = vmatpush1.bf16.msra.mxu0 %v2811
    %3706 = vmatprep.subr.bf16.mxu0 %v2824
    %3707 = vmatpush1.bf16.msra.mxu0 %v2823
    %3708 = vmatprep.subr.bf16.mxu0 %v2836
    %3709 = vmatpush1.bf16.msra.mxu0 %v2835
    %3710 = vmatprep.subr.bf16.mxu0 %v2848
    %3711 = vmatpush1.bf16.msra.mxu0 %v2847
    %3712 = vmatprep.subr.bf16.mxu0 %v2860
    %3713 = vmatpush1.bf16.msra.mxu0 %v2859
    %3714 = vmatprep.subr.bf16.mxu0 %v2872
    %3715 = vmatpush1.bf16.msra.mxu0 %v2871
    %3716 = vmatprep.subr.bf16.mxu0 %v2884
    %3717 = vmatpush1.bf16.msra.mxu0 %v2883
    %3718 = vmatprep.mubr.bf16.mxu0 %v986
    %3719 = vmatmul.mubr.bf16.gmra.mrb[0].mxu0 %v985
    %v3720 = vpop.f32.mrb[0].mxu0
    %v3721 = vadd.f32 %v3680, %v3720
    %v3722 = vpop.f32.mrb[0].mxu0
    %v3723 = vadd.f32 %v3682, %v3722
    %v3724 = vpop.f32.mrb[0].mxu0
    %v3725 = vpop.f32.mrb[0].mxu0
    %3726 = vdwg.mxu0
    %3727 = vmatprep.subr.bf16.mxu0 %v2896
    %3728 = vmatpush1.bf16.msra.mxu0 %v2895
    %3729 = vmatprep.subr.bf16.mxu0 %v2908
    %3730 = vmatpush1.bf16.msra.mxu0 %v2907
    %3731 = vmatprep.subr.bf16.mxu0 %v2920
    %3732 = vmatpush1.bf16.msra.mxu0 %v2919
    %3733 = vmatprep.subr.bf16.mxu0 %v2932
    %3734 = vmatpush1.bf16.msra.mxu0 %v2931
    %3735 = vmatprep.subr.bf16.mxu0 %v2944
    %3736 = vmatpush1.bf16.msra.mxu0 %v2943
    %3737 = vmatprep.subr.bf16.mxu0 %v2956
    %3738 = vmatpush1.bf16.msra.mxu0 %v2955
    %3739 = vmatprep.subr.bf16.mxu0 %v2968
    %3740 = vmatpush1.bf16.msra.mxu0 %v2967
    %3741 = vmatprep.subr.bf16.mxu0 %v2980
    %3742 = vmatpush1.bf16.msra.mxu0 %v2979
    %3743 = vmatprep.subr.bf16.mxu0 %v3496
    %3744 = vmatpush1.bf16.msra.mxu0 %v3493
    %3745 = vmatprep.subr.bf16.mxu0 0
    %3746 = vmatpush1.bf16.msra.mxu0 0
    %3747 = vmatprep.subr.bf16.mxu0 0
    %3748 = vmatpush1.bf16.msra.mxu0 0
    %3749 = vmatprep.subr.bf16.mxu0 0
    %3750 = vmatpush1.bf16.msra.mxu0 0
    %3751 = vmatprep.subr.bf16.mxu0 0
    %3752 = vmatpush1.bf16.msra.mxu0 0
    %3753 = vmatprep.subr.bf16.mxu0 0
    %3754 = vmatpush1.bf16.msra.mxu0 0
    %3755 = vmatprep.subr.bf16.mxu0 0
    %3756 = vmatpush1.bf16.msra.mxu0 0
    %3757 = vmatprep.subr.bf16.mxu0 0
    %3758 = vmatpush1.bf16.msra.mxu0 0
    %3759 = vmatprep.mubr.bf16.mxu0 %v3483
    %3760 = vmatmul.mubr.bf16.gmra.mrb[0].mxu0 %v987
    %v3761 = vpop.f32.mrb[0].mxu0
    %v3762 = vadd.f32 %v3721, %v3761
    %v3763 = vpop.f32.mrb[0].mxu0
    %v3764 = vadd.f32 %v3723, %v3763
    %v3765 = vpop.f32.mrb[0].mxu0
    %v3766 = vpop.f32.mrb[0].mxu0
    %3767 = vdwg.mxu0
    %3768 = vmatprep.subr.bf16.mxu0 %v2514
    %3769 = vmatpush1.bf16.msra.mxu0 %v2513
    %3770 = vmatprep.subr.bf16.mxu0 %v2526
    %3771 = vmatpush1.bf16.msra.mxu0 %v2525
    %3772 = vmatprep.subr.bf16.mxu0 %v2538
    %3773 = vmatpush1.bf16.msra.mxu0 %v2537
    %3774 = vmatprep.subr.bf16.mxu0 %v2550
    %3775 = vmatpush1.bf16.msra.mxu0 %v2549
    %3776 = vmatprep.subr.bf16.mxu0 %v2562
    %3777 = vmatpush1.bf16.msra.mxu0 %v2561
    %3778 = vmatprep.subr.bf16.mxu0 %v2574
    %3779 = vmatpush1.bf16.msra.mxu0 %v2573
    %3780 = vmatprep.subr.bf16.mxu0 %v2586
    %3781 = vmatpush1.bf16.msra.mxu0 %v2585
    %3782 = vmatprep.subr.bf16.mxu0 %v2598
    %3783 = vmatpush1.bf16.msra.mxu0 %v2597
    %3784 = vmatprep.subr.bf16.mxu0 %v2610
    %3785 = vmatpush1.bf16.msra.mxu0 %v2609
    %3786 = vmatprep.subr.bf16.mxu0 %v2622
    %3787 = vmatpush1.bf16.msra.mxu0 %v2621
    %3788 = vmatprep.subr.bf16.mxu0 %v2634
    %3789 = vmatpush1.bf16.msra.mxu0 %v2633
    %3790 = vmatprep.subr.bf16.mxu0 %v2646
    %3791 = vmatpush1.bf16.msra.mxu0 %v2645
    %3792 = vmatprep.subr.bf16.mxu0 %v2658
    %3793 = vmatpush1.bf16.msra.mxu0 %v2657
    %3794 = vmatprep.subr.bf16.mxu0 %v2670
    %3795 = vmatpush1.bf16.msra.mxu0 %v2669
    %3796 = vmatprep.subr.bf16.mxu0 %v2682
    %3797 = vmatpush1.bf16.msra.mxu0 %v2681
    %3798 = vmatprep.subr.bf16.mxu0 %v2694
    %3799 = vmatpush1.bf16.msra.mxu0 %v2693
    %3800 = vmatprep.mubr.bf16.mxu0 %v984
    %3801 = vmatmul.mubr.bf16.gmra.mrb[0].mxu0 %v983
    %v3802 = vpop.f32.mrb[0].mxu0
    %v3803 = vadd.f32 %v1010, %v3802
    %v3804 = vpop.f32.mrb[0].mxu0
    %v3805 = vadd.f32 %v1014, %v3804
    %v3806 = vpop.f32.mrb[0].mxu0
    %v3807 = vpop.f32.mrb[0].mxu0
    %3808 = vdwg.mxu0
    %3809 = vmatprep.subr.bf16.mxu0 %v2706
    %3810 = vmatpush1.bf16.msra.mxu0 %v2705
    %3811 = vmatprep.subr.bf16.mxu0 %v2718
    %3812 = vmatpush1.bf16.msra.mxu0 %v2717
    %3813 = vmatprep.subr.bf16.mxu0 %v2730
    %3814 = vmatpush1.bf16.msra.mxu0 %v2729
    %3815 = vmatprep.subr.bf16.mxu0 %v2742
    %3816 = vmatpush1.bf16.msra.mxu0 %v2741
    %3817 = vmatprep.subr.bf16.mxu0 %v2754
    %3818 = vmatpush1.bf16.msra.mxu0 %v2753
    %3819 = vmatprep.subr.bf16.mxu0 %v2766
    %3820 = vmatpush1.bf16.msra.mxu0 %v2765
    %3821 = vmatprep.subr.bf16.mxu0 %v2778
    %3822 = vmatpush1.bf16.msra.mxu0 %v2777
    %3823 = vmatprep.subr.bf16.mxu0 %v2790
    %3824 = vmatpush1.bf16.msra.mxu0 %v2789
    %3825 = vmatprep.subr.bf16.mxu0 %v2802
    %3826 = vmatpush1.bf16.msra.mxu0 %v2801
    %3827 = vmatprep.subr.bf16.mxu0 %v2814
    %3828 = vmatpush1.bf16.msra.mxu0 %v2813
    %3829 = vmatprep.subr.bf16.mxu0 %v2826
    %3830 = vmatpush1.bf16.msra.mxu0 %v2825
    %3831 = vmatprep.subr.bf16.mxu0 %v2838
    %3832 = vmatpush1.bf16.msra.mxu0 %v2837
    %3833 = vmatprep.subr.bf16.mxu0 %v2850
    %3834 = vmatpush1.bf16.msra.mxu0 %v2849
    %3835 = vmatprep.subr.bf16.mxu0 %v2862
    %3836 = vmatpush1.bf16.msra.mxu0 %v2861
    %3837 = vmatprep.subr.bf16.mxu0 %v2874
    %3838 = vmatpush1.bf16.msra.mxu0 %v2873
    %3839 = vmatprep.subr.bf16.mxu0 %v2886
    %3840 = vmatpush1.bf16.msra.mxu0 %v2885
    %3841 = vmatprep.mubr.bf16.mxu0 %v986
    %3842 = vmatmul.mubr.bf16.gmra.mrb[0].mxu0 %v985
    %v3843 = vpop.f32.mrb[0].mxu0
    %v3844 = vadd.f32 %v3803, %v3843
    %v3845 = vpop.f32.mrb[0].mxu0
    %v3846 = vadd.f32 %v3805, %v3845
    %v3847 = vpop.f32.mrb[0].mxu0
    %v3848 = vpop.f32.mrb[0].mxu0
    %3849 = vdwg.mxu0
    %3850 = vmatprep.subr.bf16.mxu0 %v2898
    %3851 = vmatpush1.bf16.msra.mxu0 %v2897
    %3852 = vmatprep.subr.bf16.mxu0 %v2910
    %3853 = vmatpush1.bf16.msra.mxu0 %v2909
    %3854 = vmatprep.subr.bf16.mxu0 %v2922
    %3855 = vmatpush1.bf16.msra.mxu0 %v2921
    %3856 = vmatprep.subr.bf16.mxu0 %v2934
    %3857 = vmatpush1.bf16.msra.mxu0 %v2933
    %3858 = vmatprep.subr.bf16.mxu0 %v2946
    %3859 = vmatpush1.bf16.msra.mxu0 %v2945
    %3860 = vmatprep.subr.bf16.mxu0 %v2958
    %3861 = vmatpush1.bf16.msra.mxu0 %v2957
    %3862 = vmatprep.subr.bf16.mxu0 %v2970
    %3863 = vmatpush1.bf16.msra.mxu0 %v2969
    %3864 = vmatprep.subr.bf16.mxu0 %v2982
    %3865 = vmatpush1.bf16.msra.mxu0 %v2981
    %3866 = vmatprep.subr.bf16.mxu0 %v3502
    %3867 = vmatpush1.bf16.msra.mxu0 %v3499
    %3868 = vmatprep.subr.bf16.mxu0 0
    %3869 = vmatpush1.bf16.msra.mxu0 0
    %3870 = vmatprep.subr.bf16.mxu0 0
    %3871 = vmatpush1.bf16.msra.mxu0 0
    %3872 = vmatprep.subr.bf16.mxu0 0
    %3873 = vmatpush1.bf16.msra.mxu0 0
    %3874 = vmatprep.subr.bf16.mxu0 0
    %3875 = vmatpush1.bf16.msra.mxu0 0
    %3876 = vmatprep.subr.bf16.mxu0 0
    %3877 = vmatpush1.bf16.msra.mxu0 0
    %3878 = vmatprep.subr.bf16.mxu0 0
    %3879 = vmatpush1.bf16.msra.mxu0 0
    %3880 = vmatprep.subr.bf16.mxu0 0
    %3881 = vmatpush1.bf16.msra.mxu0 0
    %3882 = vmatprep.mubr.bf16.mxu0 %v3483
    %3883 = vmatmul.mubr.bf16.gmra.mrb[0].mxu0 %v987
    %v3884 = vpop.f32.mrb[0].mxu0
    %v3885 = vadd.f32 %v3844, %v3884
    %v3886 = vpop.f32.mrb[0].mxu0
    %v3887 = vadd.f32 %v3846, %v3886
    %v3888 = vpop.f32.mrb[0].mxu0
    %v3889 = vpop.f32.mrb[0].mxu0
    %3890 = vdwg.mxu0
    %3891 = vmatprep.subr.bf16.mxu0 %v2516
    %3892 = vmatpush1.bf16.msra.mxu0 %v2515
    %3893 = vmatprep.subr.bf16.mxu0 %v2528
    %3894 = vmatpush1.bf16.msra.mxu0 %v2527
    %3895 = vmatprep.subr.bf16.mxu0 %v2540
    %3896 = vmatpush1.bf16.msra.mxu0 %v2539
    %3897 = vmatprep.subr.bf16.mxu0 %v2552
    %3898 = vmatpush1.bf16.msra.mxu0 %v2551
    %3899 = vmatprep.subr.bf16.mxu0 %v2564
    %3900 = vmatpush1.bf16.msra.mxu0 %v2563
    %3901 = vmatprep.subr.bf16.mxu0 %v2576
    %3902 = vmatpush1.bf16.msra.mxu0 %v2575
    %3903 = vmatprep.subr.bf16.mxu0 %v2588
    %3904 = vmatpush1.bf16.msra.mxu0 %v2587
    %3905 = vmatprep.subr.bf16.mxu0 %v2600
    %3906 = vmatpush1.bf16.msra.mxu0 %v2599
    %3907 = vmatprep.subr.bf16.mxu0 %v2612
    %3908 = vmatpush1.bf16.msra.mxu0 %v2611
    %3909 = vmatprep.subr.bf16.mxu0 %v2624
    %3910 = vmatpush1.bf16.msra.mxu0 %v2623
    %3911 = vmatprep.subr.bf16.mxu0 %v2636
    %3912 = vmatpush1.bf16.msra.mxu0 %v2635
    %3913 = vmatprep.subr.bf16.mxu0 %v2648
    %3914 = vmatpush1.bf16.msra.mxu0 %v2647
    %3915 = vmatprep.subr.bf16.mxu0 %v2660
    %3916 = vmatpush1.bf16.msra.mxu0 %v2659
    %3917 = vmatprep.subr.bf16.mxu0 %v2672
    %3918 = vmatpush1.bf16.msra.mxu0 %v2671
    %3919 = vmatprep.subr.bf16.mxu0 %v2684
    %3920 = vmatpush1.bf16.msra.mxu0 %v2683
    %3921 = vmatprep.subr.bf16.mxu0 %v2696
    %3922 = vmatpush1.bf16.msra.mxu0 %v2695
    %3923 = vmatprep.mubr.bf16.mxu0 %v984
    %3924 = vmatmul.mubr.bf16.gmra.mrb[0].mxu0 %v983
    %v3925 = vpop.f32.mrb[0].mxu0
    %v3926 = vadd.f32 %v1018, %v3925
    %v3927 = vpop.f32.mrb[0].mxu0
    %v3928 = vadd.f32 %v1022, %v3927
    %v3929 = vpop.f32.mrb[0].mxu0
    %v3930 = vpop.f32.mrb[0].mxu0
    %3931 = vdwg.mxu0
    %3932 = vmatprep.subr.bf16.mxu0 %v2708
    %3933 = vmatpush1.bf16.msra.mxu0 %v2707
    %3934 = vmatprep.subr.bf16.mxu0 %v2720
    %3935 = vmatpush1.bf16.msra.mxu0 %v2719
    %3936 = vmatprep.subr.bf16.mxu0 %v2732
    %3937 = vmatpush1.bf16.msra.mxu0 %v2731
    %3938 = vmatprep.subr.bf16.mxu0 %v2744
    %3939 = vmatpush1.bf16.msra.mxu0 %v2743
    %3940 = vmatprep.subr.bf16.mxu0 %v2756
    %3941 = vmatpush1.bf16.msra.mxu0 %v2755
    %3942 = vmatprep.subr.bf16.mxu0 %v2768
    %3943 = vmatpush1.bf16.msra.mxu0 %v2767
    %3944 = vmatprep.subr.bf16.mxu0 %v2780
    %3945 = vmatpush1.bf16.msra.mxu0 %v2779
    %3946 = vmatprep.subr.bf16.mxu0 %v2792
    %3947 = vmatpush1.bf16.msra.mxu0 %v2791
    %3948 = vmatprep.subr.bf16.mxu0 %v2804
    %3949 = vmatpush1.bf16.msra.mxu0 %v2803
    %3950 = vmatprep.subr.bf16.mxu0 %v2816
    %3951 = vmatpush1.bf16.msra.mxu0 %v2815
    %3952 = vmatprep.subr.bf16.mxu0 %v2828
    %3953 = vmatpush1.bf16.msra.mxu0 %v2827
    %3954 = vmatprep.subr.bf16.mxu0 %v2840
    %3955 = vmatpush1.bf16.msra.mxu0 %v2839
    %3956 = vmatprep.subr.bf16.mxu0 %v2852
    %3957 = vmatpush1.bf16.msra.mxu0 %v2851
    %3958 = vmatprep.subr.bf16.mxu0 %v2864
    %3959 = vmatpush1.bf16.msra.mxu0 %v2863
    %3960 = vmatprep.subr.bf16.mxu0 %v2876
    %3961 = vmatpush1.bf16.msra.mxu0 %v2875
    %3962 = vmatprep.subr.bf16.mxu0 %v2888
    %3963 = vmatpush1.bf16.msra.mxu0 %v2887
    %3964 = vmatprep.mubr.bf16.mxu0 %v986
    %3965 = vmatmul.mubr.bf16.gmra.mrb[0].mxu0 %v985
    %v3966 = vpop.f32.mrb[0].mxu0
    %v3967 = vadd.f32 %v3926, %v3966
    %v3968 = vpop.f32.mrb[0].mxu0
    %v3969 = vadd.f32 %v3928, %v3968
    %v3970 = vpop.f32.mrb[0].mxu0
    %v3971 = vpop.f32.mrb[0].mxu0
    %3972 = vdwg.mxu0
    %3973 = vmatprep.subr.bf16.mxu0 %v2900
    %3974 = vmatpush1.bf16.msra.mxu0 %v2899
    %3975 = vmatprep.subr.bf16.mxu0 %v2912
    %3976 = vmatpush1.bf16.msra.mxu0 %v2911
    %3977 = vmatprep.subr.bf16.mxu0 %v2924
    %3978 = vmatpush1.bf16.msra.mxu0 %v2923
    %3979 = vmatprep.subr.bf16.mxu0 %v2936
    %3980 = vmatpush1.bf16.msra.mxu0 %v2935
    %3981 = vmatprep.subr.bf16.mxu0 %v2948
    %3982 = vmatpush1.bf16.msra.mxu0 %v2947
    %3983 = vmatprep.subr.bf16.mxu0 %v2960
    %3984 = vmatpush1.bf16.msra.mxu0 %v2959
    %3985 = vmatprep.subr.bf16.mxu0 %v2972
    %3986 = vmatpush1.bf16.msra.mxu0 %v2971
    %3987 = vmatprep.subr.bf16.mxu0 %v2984
    %3988 = vmatpush1.bf16.msra.mxu0 %v2983
    %3989 = vmatprep.subr.bf16.mxu0 %v3508
    %3990 = vmatpush1.bf16.msra.mxu0 %v3505
    %3991 = vmatprep.subr.bf16.mxu0 0
    %3992 = vmatpush1.bf16.msra.mxu0 0
    %3993 = vmatprep.subr.bf16.mxu0 0
    %3994 = vmatpush1.bf16.msra.mxu0 0
    %3995 = vmatprep.subr.bf16.mxu0 0
    %3996 = vmatpush1.bf16.msra.mxu0 0
    %3997 = vmatprep.subr.bf16.mxu0 0
    %3998 = vmatpush1.bf16.msra.mxu0 0
    %3999 = vmatprep.subr.bf16.mxu0 0
    %4000 = vmatpush1.bf16.msra.mxu0 0
    %4001 = vmatprep.subr.bf16.mxu0 0
    %4002 = vmatpush1.bf16.msra.mxu0 0
    %4003 = vmatprep.subr.bf16.mxu0 0
    %4004 = vmatpush1.bf16.msra.mxu0 0
    %4005 = vmatprep.mubr.bf16.mxu0 %v3483
    %4006 = vmatmul.mubr.bf16.gmra.mrb[0].mxu0 %v987
    %v4007 = vpop.f32.mrb[0].mxu0
    %v4008 = vadd.f32 %v3967, %v4007
    %v4009 = vpop.f32.mrb[0].mxu0
    %v4010 = vadd.f32 %v3969, %v4009
    %v4011 = vpop.f32.mrb[0].mxu0
    %v4012 = vpop.f32.mrb[0].mxu0
    %4013 = vdwg.mxu0
    %4014 = vmatprep.subr.bf16.mxu0 %v2518
    %4015 = vmatpush1.bf16.msra.mxu0 %v2517
    %4016 = vmatprep.subr.bf16.mxu0 %v2530
    %4017 = vmatpush1.bf16.msra.mxu0 %v2529
    %4018 = vmatprep.subr.bf16.mxu0 %v2542
    %4019 = vmatpush1.bf16.msra.mxu0 %v2541
    %4020 = vmatprep.subr.bf16.mxu0 %v2554
    %4021 = vmatpush1.bf16.msra.mxu0 %v2553
    %4022 = vmatprep.subr.bf16.mxu0 %v2566
    %4023 = vmatpush1.bf16.msra.mxu0 %v2565
    %4024 = vmatprep.subr.bf16.mxu0 %v2578
    %4025 = vmatpush1.bf16.msra.mxu0 %v2577
    %4026 = vmatprep.subr.bf16.mxu0 %v2590
    %4027 = vmatpush1.bf16.msra.mxu0 %v2589
    %4028 = vmatprep.subr.bf16.mxu0 %v2602
    %4029 = vmatpush1.bf16.msra.mxu0 %v2601
    %4030 = vmatprep.subr.bf16.mxu0 %v2614
    %4031 = vmatpush1.bf16.msra.mxu0 %v2613
    %4032 = vmatprep.subr.bf16.mxu0 %v2626
    %4033 = vmatpush1.bf16.msra.mxu0 %v2625
    %4034 = vmatprep.subr.bf16.mxu0 %v2638
    %4035 = vmatpush1.bf16.msra.mxu0 %v2637
    %4036 = vmatprep.subr.bf16.mxu0 %v2650
    %4037 = vmatpush1.bf16.msra.mxu0 %v2649
    %4038 = vmatprep.subr.bf16.mxu0 %v2662
    %4039 = vmatpush1.bf16.msra.mxu0 %v2661
    %4040 = vmatprep.subr.bf16.mxu0 %v2674
    %4041 = vmatpush1.bf16.msra.mxu0 %v2673
    %4042 = vmatprep.subr.bf16.mxu0 %v2686
    %4043 = vmatpush1.bf16.msra.mxu0 %v2685
    %4044 = vmatprep.subr.bf16.mxu0 %v2698
    %4045 = vmatpush1.bf16.msra.mxu0 %v2697
    %4046 = vmatprep.mubr.bf16.mxu0 %v984
    %4047 = vmatmul.mubr.bf16.gmra.mrb[0].mxu0 %v983
    %v4048 = vpop.f32.mrb[0].mxu0
    %v4049 = vadd.f32 %v1026, %v4048
    %v4050 = vpop.f32.mrb[0].mxu0
    %v4051 = vadd.f32 %v1030, %v4050
    %v4052 = vpop.f32.mrb[0].mxu0
    %v4053 = vpop.f32.mrb[0].mxu0
    %4054 = vdwg.mxu0
    %4055 = vmatprep.subr.bf16.mxu0 %v2710
    %4056 = vmatpush1.bf16.msra.mxu0 %v2709
    %4057 = vmatprep.subr.bf16.mxu0 %v2722
    %4058 = vmatpush1.bf16.msra.mxu0 %v2721
    %4059 = vmatprep.subr.bf16.mxu0 %v2734
    %4060 = vmatpush1.bf16.msra.mxu0 %v2733
    %4061 = vmatprep.subr.bf16.mxu0 %v2746
    %4062 = vmatpush1.bf16.msra.mxu0 %v2745
    %4063 = vmatprep.subr.bf16.mxu0 %v2758
    %4064 = vmatpush1.bf16.msra.mxu0 %v2757
    %4065 = vmatprep.subr.bf16.mxu0 %v2770
    %4066 = vmatpush1.bf16.msra.mxu0 %v2769
    %4067 = vmatprep.subr.bf16.mxu0 %v2782
    %4068 = vmatpush1.bf16.msra.mxu0 %v2781
    %4069 = vmatprep.subr.bf16.mxu0 %v2794
    %4070 = vmatpush1.bf16.msra.mxu0 %v2793
    %4071 = vmatprep.subr.bf16.mxu0 %v2806
    %4072 = vmatpush1.bf16.msra.mxu0 %v2805
    %4073 = vmatprep.subr.bf16.mxu0 %v2818
    %4074 = vmatpush1.bf16.msra.mxu0 %v2817
    %4075 = vmatprep.subr.bf16.mxu0 %v2830
    %4076 = vmatpush1.bf16.msra.mxu0 %v2829
    %4077 = vmatprep.subr.bf16.mxu0 %v2842
    %4078 = vmatpush1.bf16.msra.mxu0 %v2841
    %4079 = vmatprep.subr.bf16.mxu0 %v2854
    %4080 = vmatpush1.bf16.msra.mxu0 %v2853
    %4081 = vmatprep.subr.bf16.mxu0 %v2866
    %4082 = vmatpush1.bf16.msra.mxu0 %v2865
    %4083 = vmatprep.subr.bf16.mxu0 %v2878
    %4084 = vmatpush1.bf16.msra.mxu0 %v2877
    %4085 = vmatprep.subr.bf16.mxu0 %v2890
    %4086 = vmatpush1.bf16.msra.mxu0 %v2889
    %4087 = vmatprep.mubr.bf16.mxu0 %v986
    %4088 = vmatmul.mubr.bf16.gmra.mrb[0].mxu0 %v985
    %v4089 = vpop.f32.mrb[0].mxu0
    %v4090 = vadd.f32 %v4049, %v4089
    %v4091 = vpop.f32.mrb[0].mxu0
    %v4092 = vadd.f32 %v4051, %v4091
    %v4093 = vpop.f32.mrb[0].mxu0
    %v4094 = vpop.f32.mrb[0].mxu0
    %4095 = vdwg.mxu0
    %4096 = vmatprep.subr.bf16.mxu0 %v2902
    %4097 = vmatpush1.bf16.msra.mxu0 %v2901
    %4098 = vmatprep.subr.bf16.mxu0 %v2914
    %4099 = vmatpush1.bf16.msra.mxu0 %v2913
    %4100 = vmatprep.subr.bf16.mxu0 %v2926
    %4101 = vmatpush1.bf16.msra.mxu0 %v2925
    %4102 = vmatprep.subr.bf16.mxu0 %v2938
    %4103 = vmatpush1.bf16.msra.mxu0 %v2937
    %4104 = vmatprep.subr.bf16.mxu0 %v2950
    %4105 = vmatpush1.bf16.msra.mxu0 %v2949
    %4106 = vmatprep.subr.bf16.mxu0 %v2962
    %4107 = vmatpush1.bf16.msra.mxu0 %v2961
    %4108 = vmatprep.subr.bf16.mxu0 %v2974
    %4109 = vmatpush1.bf16.msra.mxu0 %v2973
    %4110 = vmatprep.subr.bf16.mxu0 %v2986
    %4111 = vmatpush1.bf16.msra.mxu0 %v2985
    %4112 = vmatprep.subr.bf16.mxu0 %v3514
    %4113 = vmatpush1.bf16.msra.mxu0 %v3511
    %4114 = vmatprep.subr.bf16.mxu0 0
    %4115 = vmatpush1.bf16.msra.mxu0 0
    %4116 = vmatprep.subr.bf16.mxu0 0
    %4117 = vmatpush1.bf16.msra.mxu0 0
    %4118 = vmatprep.subr.bf16.mxu0 0
    %4119 = vmatpush1.bf16.msra.mxu0 0
    %4120 = vmatprep.subr.bf16.mxu0 0
    %4121 = vmatpush1.bf16.msra.mxu0 0
    %4122 = vmatprep.subr.bf16.mxu0 0
    %4123 = vmatpush1.bf16.msra.mxu0 0
    %4124 = vmatprep.subr.bf16.mxu0 0
    %4125 = vmatpush1.bf16.msra.mxu0 0
    %4126 = vmatprep.subr.bf16.mxu0 0
    %4127 = vmatpush1.bf16.msra.mxu0 0
    %4128 = vmatprep.mubr.bf16.mxu0 %v3483
    %4129 = vmatmul.mubr.bf16.gmra.mrb[0].mxu0 %v987
    %v4130 = vpop.f32.mrb[0].mxu0
    %v4131 = vadd.f32 %v4090, %v4130
    %v4132 = vpop.f32.mrb[0].mxu0
    %v4133 = vadd.f32 %v4092, %v4132
    %v4134 = vpop.f32.mrb[0].mxu0
    %v4135 = vpop.f32.mrb[0].mxu0
    %4136 = vdwg.mxu0
    %4137 = vmatprep.subr.bf16.mxu0 %v2520
    %4138 = vmatpush1.bf16.msra.mxu0 %v2519
    %4139 = vmatprep.subr.bf16.mxu0 %v2532
    %4140 = vmatpush1.bf16.msra.mxu0 %v2531
    %4141 = vmatprep.subr.bf16.mxu0 %v2544
    %4142 = vmatpush1.bf16.msra.mxu0 %v2543
    %4143 = vmatprep.subr.bf16.mxu0 %v2556
    %4144 = vmatpush1.bf16.msra.mxu0 %v2555
    %4145 = vmatprep.subr.bf16.mxu0 %v2568
    %4146 = vmatpush1.bf16.msra.mxu0 %v2567
    %4147 = vmatprep.subr.bf16.mxu0 %v2580
    %4148 = vmatpush1.bf16.msra.mxu0 %v2579
    %4149 = vmatprep.subr.bf16.mxu0 %v2592
    %4150 = vmatpush1.bf16.msra.mxu0 %v2591
    %4151 = vmatprep.subr.bf16.mxu0 %v2604
    %4152 = vmatpush1.bf16.msra.mxu0 %v2603
    %4153 = vmatprep.subr.bf16.mxu0 %v2616
    %4154 = vmatpush1.bf16.msra.mxu0 %v2615
    %4155 = vmatprep.subr.bf16.mxu0 %v2628
    %4156 = vmatpush1.bf16.msra.mxu0 %v2627
    %4157 = vmatprep.subr.bf16.mxu0 %v2640
    %4158 = vmatpush1.bf16.msra.mxu0 %v2639
    %4159 = vmatprep.subr.bf16.mxu0 %v2652
    %4160 = vmatpush1.bf16.msra.mxu0 %v2651
    %4161 = vmatprep.subr.bf16.mxu0 %v2664
    %4162 = vmatpush1.bf16.msra.mxu0 %v2663
    %4163 = vmatprep.subr.bf16.mxu0 %v2676
    %4164 = vmatpush1.bf16.msra.mxu0 %v2675
    %4165 = vmatprep.subr.bf16.mxu0 %v2688
    %4166 = vmatpush1.bf16.msra.mxu0 %v2687
    %4167 = vmatprep.subr.bf16.mxu0 %v2700
    %4168 = vmatpush1.bf16.msra.mxu0 %v2699
    %4169 = vmatprep.mubr.bf16.mxu0 %v984
    %4170 = vmatmul.mubr.bf16.gmra.mrb[0].mxu0 %v983
    %v4171 = vpop.f32.mrb[0].mxu0
    %v4172 = vadd.f32 %v1034, %v4171
    %v4173 = vpop.f32.mrb[0].mxu0
    %v4174 = vadd.f32 %v1038, %v4173
    %v4175 = vpop.f32.mrb[0].mxu0
    %v4176 = vpop.f32.mrb[0].mxu0
    %4177 = vdwg.mxu0
    %4178 = vmatprep.subr.bf16.mxu0 %v2712
    %4179 = vmatpush1.bf16.msra.mxu0 %v2711
    %4180 = vmatprep.subr.bf16.mxu0 %v2724
    %4181 = vmatpush1.bf16.msra.mxu0 %v2723
    %4182 = vmatprep.subr.bf16.mxu0 %v2736
    %4183 = vmatpush1.bf16.msra.mxu0 %v2735
    %4184 = vmatprep.subr.bf16.mxu0 %v2748
    %4185 = vmatpush1.bf16.msra.mxu0 %v2747
    %4186 = vmatprep.subr.bf16.mxu0 %v2760
    %4187 = vmatpush1.bf16.msra.mxu0 %v2759
    %4188 = vmatprep.subr.bf16.mxu0 %v2772
    %4189 = vmatpush1.bf16.msra.mxu0 %v2771
    %4190 = vmatprep.subr.bf16.mxu0 %v2784
    %4191 = vmatpush1.bf16.msra.mxu0 %v2783
    %4192 = vmatprep.subr.bf16.mxu0 %v2796
    %4193 = vmatpush1.bf16.msra.mxu0 %v2795
    %4194 = vmatprep.subr.bf16.mxu0 %v2808
    %4195 = vmatpush1.bf16.msra.mxu0 %v2807
    %4196 = vmatprep.subr.bf16.mxu0 %v2820
    %4197 = vmatpush1.bf16.msra.mxu0 %v2819
    %4198 = vmatprep.subr.bf16.mxu0 %v2832
    %4199 = vmatpush1.bf16.msra.mxu0 %v2831
    %4200 = vmatprep.subr.bf16.mxu0 %v2844
    %4201 = vmatpush1.bf16.msra.mxu0 %v2843
    %4202 = vmatprep.subr.bf16.mxu0 %v2856
    %4203 = vmatpush1.bf16.msra.mxu0 %v2855
    %4204 = vmatprep.subr.bf16.mxu0 %v2868
    %4205 = vmatpush1.bf16.msra.mxu0 %v2867
    %4206 = vmatprep.subr.bf16.mxu0 %v2880
    %4207 = vmatpush1.bf16.msra.mxu0 %v2879
    %4208 = vmatprep.subr.bf16.mxu0 %v2892
    %4209 = vmatpush1.bf16.msra.mxu0 %v2891
    %4210 = vmatprep.mubr.bf16.mxu0 %v986
    %4211 = vmatmul.mubr.bf16.gmra.mrb[0].mxu0 %v985
    %v4212 = vpop.f32.mrb[0].mxu0
    %v4213 = vadd.f32 %v4172, %v4212
    %v4214 = vpop.f32.mrb[0].mxu0
    %v4215 = vadd.f32 %v4174, %v4214
    %v4216 = vpop.f32.mrb[0].mxu0
    %v4217 = vpop.f32.mrb[0].mxu0
    %4218 = vdwg.mxu0
    %4219 = vmatprep.subr.bf16.mxu0 %v2904
    %4220 = vmatpush1.bf16.msra.mxu0 %v2903
    %4221 = vmatprep.subr.bf16.mxu0 %v2916
    %4222 = vmatpush1.bf16.msra.mxu0 %v2915
    %4223 = vmatprep.subr.bf16.mxu0 %v2928
    %4224 = vmatpush1.bf16.msra.mxu0 %v2927
    %4225 = vmatprep.subr.bf16.mxu0 %v2940
    %4226 = vmatpush1.bf16.msra.mxu0 %v2939
    %4227 = vmatprep.subr.bf16.mxu0 %v2952
    %4228 = vmatpush1.bf16.msra.mxu0 %v2951
    %4229 = vmatprep.subr.bf16.mxu0 %v2964
    %4230 = vmatpush1.bf16.msra.mxu0 %v2963
    %4231 = vmatprep.subr.bf16.mxu0 %v2976
    %4232 = vmatpush1.bf16.msra.mxu0 %v2975
    %4233 = vmatprep.subr.bf16.mxu0 %v2988
    %4234 = vmatpush1.bf16.msra.mxu0 %v2987
    %4235 = vmatprep.subr.bf16.mxu0 %v3520
    %4236 = vmatpush1.bf16.msra.mxu0 %v3517
    %4237 = vmatprep.subr.bf16.mxu0 0
    %4238 = vmatpush1.bf16.msra.mxu0 0
    %4239 = vmatprep.subr.bf16.mxu0 0
    %4240 = vmatpush1.bf16.msra.mxu0 0
    %4241 = vmatprep.subr.bf16.mxu0 0
    %4242 = vmatpush1.bf16.msra.mxu0 0
    %4243 = vmatprep.subr.bf16.mxu0 0
    %4244 = vmatpush1.bf16.msra.mxu0 0
    %4245 = vmatprep.subr.bf16.mxu0 0
    %4246 = vmatpush1.bf16.msra.mxu0 0
    %4247 = vmatprep.subr.bf16.mxu0 0
    %4248 = vmatpush1.bf16.msra.mxu0 0
    %4249 = vmatprep.subr.bf16.mxu0 0
    %4250 = vmatpush1.bf16.msra.mxu0 0
    %4251 = vmatprep.mubr.bf16.mxu0 %v3483
    %4252 = vmatmul.mubr.bf16.gmra.mrb[0].mxu0 %v987
    %v4253 = vpop.f32.mrb[0].mxu0
    %v4254 = vadd.f32 %v4213, %v4253
    %v4255 = vpop.f32.mrb[0].mxu0
    %v4256 = vadd.f32 %v4215, %v4255
    %v4257 = vpop.f32.mrb[0].mxu0
    %v4258 = vpop.f32.mrb[0].mxu0
    %4259 = vdwg.mxu0
    %4260 = vst [vmem:[#allocation14] sm:$0xff] %v3639
    %4261 = vst [vmem:[#allocation14 + $0x8] sm:$0xff] %v3641
    %4262 = vst [vmem:[#allocation14 + $0x10] sm:$0xff] %v3762
    %4263 = vst [vmem:[#allocation14 + $0x18] sm:$0xff] %v3764
    %4264 = vst [vmem:[#allocation14 + $0x20] sm:$0xff] %v3885
    %4265 = vst [vmem:[#allocation14 + $0x28] sm:$0xff] %v3887
    %4266 = vst [vmem:[#allocation14 + $0x30] sm:$0xff] %v4008
    %4267 = vst [vmem:[#allocation14 + $0x38] sm:$0xff] %v4010
    %4268 = vst [vmem:[#allocation14 + $0x40] sm:$0xff] %v4131
    %4269 = vst [vmem:[#allocation14 + $0x48] sm:$0xff] %v4133
    %4270 = vst [vmem:[#allocation14 + $0x50] sm:$0xff] %v4254
    %vm4271 = vcmask 293888
    %4272 = vst.msk [vmem:[#allocation14 + $0x58] sm:$0xff] %vm4271, %v4256
    // Predicated region
    $region58: #{tpu_custom_call.1} parent=1 // pred_check
      _
    $region59: #{tpu_custom_call.1} parent=1 // pred_check_branch
      %4274 = sbr.rel (0) target = $region61
    $region60: #{tpu_custom_call.1} parent=1 // pred_region
      %s4276 = ssub.s32 1536, 1536
      %4277 = vsyncadd [#allocation4], %s4276
      %s4279 = sshll.u32 [#allocation14], 4
      %s4280 = int_to_ptr.vmem [resolvable:$true] %s4279
      %4282 = dma.vmem_to_hbm [thread:$0]  %s4280, 1536, %s7, [#allocation4]
    $region61: #{tpu_custom_call.1} parent=1 // pred_fallthru
      _
    // Predicated region
    $region62: #{tpu_custom_call.1} parent=1 // pred_check
      _
    $region63: #{tpu_custom_call.1} parent=1 // pred_check_branch
      %4284 = sbr.rel (0) target = $region65
    $region64: #{tpu_custom_call.1} parent=1 // pred_region
      %4285 = dma.done [#allocation4], 1536
    $region65: #{tpu_custom_call.1} parent=1 // pred_fallthru
      _
    %4286 = vsyncpa [#allocation3], 1
    %4287 = vsyncpa [#allocation6], 1
    %4288 = vsyncpa [#allocation9], 1
    %4289 = vsyncpa [#allocation12], 1
    %4290 = vsyncpa [#allocation4], 1

</llo_original>
